<compile_context>
chip_gen: v6e
topology: v6e:2x2x1
jax: 0.10.0
libtpu: 0.0.40
codegen_flags: <defaults>
</compile_context>

<pallas_src>
import jax
import jax.numpy as jnp
from jax import lax
from jax.experimental import pallas as pl
from jax.experimental.pallas import tpu as pltpu


# ------------------------- VMEM planning -------------------------

def _vmem_plan():
    """Per-generation scoped-VMEM limit and tile budget (v7x-safe fallback)."""
    phys = 64 * 1024 * 1024                       # v7x: 64 MiB per TensorCore
    try:
        kind = jax.devices()[0].device_kind.lower()
        if any(tag in kind for tag in ("v4", "v5", "v6")):
            phys = 128 * 1024 * 1024              # v5e / v6e: 128 MiB
    except Exception:
        pass
    limit = min(phys * 3 // 4, 100 * 1024 * 1024)  # 48 MiB v7x, 96 MiB v5e/v6e
    budget = min(limit // 4, 24 * 1024 * 1024)     # 12 MiB v7x, 24 MiB v5e/v6e
    return limit, budget


_VMEM_LIMIT, _VMEM_BUDGET = _vmem_plan()


def _mosaic_params(n_grid_dims):
    return pltpu.CompilerParams(
        dimension_semantics=("parallel",) * n_grid_dims,
        vmem_limit_bytes=_VMEM_LIMIT)


def _silu(y):
    # SiLU in f32; approx reciprocal rides the EUP slot instead of the VALU.
    return y * pl.reciprocal(1.0 + jnp.exp(-y), approx=True)


# ------------------------- Tile pickers -------------------------

def _pick_tile_m(hw, batch, bytes_per_row, budget=_VMEM_BUDGET):
    """Largest spatial tile (multiple of 128 dividing H*W) whose
    double-buffered blocks fit the budget; prefers >= 4 total grid steps so
    both v7x TensorCores get pipelined work."""
    best = None
    for tm in (4096, 2048, 1024, 512, 256, 128):
        if hw % tm:
            continue
        if 2 * tm * bytes_per_row > budget:
            continue
        if best is None:
            best = tm
        if batch * (hw // tm) >= 4:
            return tm
    if best is not None:
        return best
    # TODO(synk): H*W not a multiple of 128 falls back to one block per image;
    # pad the spatial dim or add a masked tail for very large ragged shapes.
    return hw


def _pick_tile_rows(batch, h, w, cin, cout, budget=_VMEM_BUDGET):
    """Largest row tile th (dividing H) whose 3x3-conv working set fits the
    budget; prefers >= 4 grid steps (batch * H/th)."""
    best = None
    for th in sorted((d for d in range(1, h + 1) if h % d == 0), reverse=True):
        m = th * w
        need = (2 * 2 * m * cin              # main input rows, 2 buffers, bf16
                + 2 * 2 * 2 * w * cin        # halo rows
                + 2 * 2 * m * cout           # output
                + 2 * 2 * m * cout           # residual (worst case)
                + 2 * (th + 2) * (w + 2) * cin   # padded scratch window
                + 2 * m * 9 * cin            # im2col slab
                + 4 * m * cout               # f32 matmul result
                + 2 * 9 * cin * cout + 4 * cout)
        if need > budget:
            continue
        if best is None:
            best = th
        if batch * (h // th) >= 4:
            return th
    return best if best is not None else 1


# ------------------------- Pallas kernels -------------------------

def _conv1x1_cf_in_kernel(x_ref, w_ref, b_ref, o_ref):
    # x_ref: (1, Cin, tm) f32 NCHW slab | w_ref: (Cin, Cout) bf16
    # b_ref: (1, Cout) f32              | o_ref: (1, tm, Cout) bf16 (NHWC)
    # Transpose + cast fused: read NCHW f32, contract Cin via dot_general.
    x = x_ref[0].astype(jnp.bfloat16)
    y = lax.dot_general(x, w_ref[...], (((0,), (0,)), ((), ())),
                        preferred_element_type=jnp.float32)        # (tm, Cout)
    o_ref[0] = _silu(y + b_ref[...]).astype(o_ref.dtype)


def _conv1x1_cl_kernel(x_ref, w_ref, b_ref, o_ref):
    # NHWC -> NHWC 1x1 conv (+BN+SiLU): plain matmul on the MXU.
    y = jnp.dot(x_ref[0], w_ref[...], preferred_element_type=jnp.float32)
    o_ref[0] = _silu(y + b_ref[...]).astype(o_ref.dtype)


def _concat_conv1x1_cf_out_kernel(x1_ref, x2_ref, w1_ref, w2_ref, b_ref, o_ref):
    # Fused torch.cat((y1,y2),1) + cv3.  x*_ref: (1, tm, c_) bf16,
    # w*_ref: (Cout, c_) bf16 (pre-transposed), b_ref: (Cout, 1) f32,
    # o_ref: (1, Cout, tm) f32 -- writes the module output in NCHW directly
    # (lane-dense stores; no [M, 2c_] concat tensor ever exists in HBM).
    dn = (((1,), (1,)), ((), ()))
    y = lax.dot_general(w1_ref[...], x1_ref[0], dn,
                        preferred_element_type=jnp.float32)        # (Cout, tm)
    y = y + lax.dot_general(w2_ref[...], x2_ref[0], dn,
                            preferred_element_type=jnp.float32)
    o_ref[0] = _silu(y + b_ref[...]).astype(o_ref.dtype)


def _conv3x3_body(top_ref, x_ref, bot_ref, w_ref, b_ref, o_ref, xpad_ref,
                  r_ref=None):
    # top/bot_ref: (1, 1, W, Cin) halo rows (clamped at the border)
    # x_ref:       (1, th, W, Cin) bf16 main rows
    # w_ref:       (9*Cin, Cout) bf16 (BN scale folded in)
    # b_ref:       (1, Cout) f32
    # r_ref:       (1, th, W, Cout) bf16 residual (Bottleneck shortcut)
    # o_ref:       (1, th, W, Cout)
    # xpad_ref:    VMEM scratch (th+2, W+2, Cin) bf16
    i = pl.program_id(1)
    n = pl.num_programs(1)
    th, w, cin = x_ref.shape[1], x_ref.shape[2], x_ref.shape[3]
    cout = o_ref.shape[3]

    # Assemble the zero-padded (th+2, W+2, Cin) window in VMEM scratch.
    xpad_ref[...] = jnp.zeros(xpad_ref.shape, xpad_ref.dtype)
    xpad_ref[1:th + 1, 1:w + 1, :] = x_ref[0]

    @pl.when(i > 0)                      # top halo row (zero at image border)
    def _():
        xpad_ref[0:1, 1:w + 1, :] = top_ref[0]

    @pl.when(i < n - 1)                  # bottom halo row
    def _():
        xpad_ref[th + 1:th + 2, 1:w + 1, :] = bot_ref[0]

    # In-VMEM im2col: (th*W, 9*Cin) slab, ONE MXU dot with K = 9*Cin.
    xp = xpad_ref[...]
    taps = [xp[dy:dy + th, dx:dx + w, :].reshape(th * w, cin)
            for dy in range(3) for dx in range(3)]
    slab = jnp.concatenate(taps, axis=1)
    y = jnp.dot(slab, w_ref[...], preferred_element_type=jnp.float32)
    y = _silu(y + b_ref[...]).reshape(th, w, cout)
    if r_ref is not None:
        y = y + r_ref[0].astype(jnp.float32)
    o_ref[0] = y.astype(o_ref.dtype)


def _conv3x3_kernel(top_ref, x_ref, bot_ref, w_ref, b_ref, o_ref, xpad_ref):
    _conv3x3_body(top_ref, x_ref, bot_ref, w_ref, b_ref, o_ref, xpad_ref)


def _conv3x3_res_kernel(top_ref, x_ref, bot_ref, w_ref, b_ref, r_ref, o_ref,
                        xpad_ref):
    _conv3x3_body(top_ref, x_ref, bot_ref, w_ref, b_ref, o_ref, xpad_ref,
                  r_ref=r_ref)


# ------------------------- Conv wrappers -------------------------

def conv1x1_cf_in(x_cf, p, out_dtype=jnp.bfloat16):
    """1x1 Conv + folded BN + SiLU.  Input: NCHW-flat f32 (B, Cin, H*W);
    layout change and f32->bf16 cast happen inside the kernel (no extra HBM
    passes).  Output: NHWC-flat bf16 (B, H*W, Cout)."""
    batch, cin, hw = x_cf.shape
    cout = p["w"].shape[-1]
    w = p["w"].astype(jnp.bfloat16)
    b = p["bias"].reshape(1, cout).astype(jnp.float32)
    tm = _pick_tile_m(hw, batch, 4 * cin + 2 * cout)
    return pl.pallas_call(
        _conv1x1_cf_in_kernel,
        out_shape=jax.ShapeDtypeStruct((batch, hw, cout), out_dtype),
        grid=(batch, hw // tm),
        in_specs=[pl.BlockSpec((1, cin, tm), lambda bi, j: (bi, 0, j)),
                  pl.BlockSpec((cin, cout), lambda bi, j: (0, 0)),
                  pl.BlockSpec((1, cout), lambda bi, j: (0, 0))],
        out_specs=pl.BlockSpec((1, tm, cout), lambda bi, j: (bi, j, 0)),
        compiler_params=_mosaic_params(2),
    )(x_cf, w, b)


def conv1x1_cl(x_cl, p, out_dtype=jnp.bfloat16):
    """1x1 Conv + folded BN + SiLU on NHWC-flat bf16 activations."""
    batch, hw, cin = x_cl.shape
    cout = p["w"].shape[-1]
    w = p["w"].astype(jnp.bfloat16)
    b = p["bias"].reshape(1, cout).astype(jnp.float32)
    tm = _pick_tile_m(hw, batch, 2 * cin + 2 * cout)
    return pl.pallas_call(
        _conv1x1_cl_kernel,
        out_shape=jax.ShapeDtypeStruct((batch, hw, cout), out_dtype),
        grid=(batch, hw // tm),
        in_specs=[pl.BlockSpec((1, tm, cin), lambda bi, j: (bi, j, 0)),
                  pl.BlockSpec((cin, cout), lambda bi, j: (0, 0)),
                  pl.BlockSpec((1, cout), lambda bi, j: (0, 0))],
        out_specs=pl.BlockSpec((1, tm, cout), lambda bi, j: (bi, j, 0)),
        compiler_params=_mosaic_params(2),
    )(x_cl, w, b)


def conv1x1_concat_cf_out(y1, y2, p):
    """Fused channel-concat + cv3 (1x1 Conv + BN + SiLU).  Writes the module
    output directly as NCHW f32 (B, C2, H*W)."""
    batch, hw, c = y1.shape
    cout = p["w"].shape[-1]
    w1t = p["w"][:c].T.astype(jnp.bfloat16)          # (Cout, c_)
    w2t = p["w"][c:].T.astype(jnp.bfloat16)
    b = p["bias"].reshape(cout, 1).astype(jnp.float32)
    tm = _pick_tile_m(hw, batch, 4 * c + 4 * cout)
    return pl.pallas_call(
        _concat_conv1x1_cf_out_kernel,
        out_shape=jax.ShapeDtypeStruct((batch, cout, hw), jnp.float32),
        grid=(batch, hw // tm),
        in_specs=[pl.BlockSpec((1, tm, c), lambda bi, j: (bi, j, 0)),
                  pl.BlockSpec((1, tm, c), lambda bi, j: (bi, j, 0)),
                  pl.BlockSpec((cout, c), lambda bi, j: (0, 0)),
                  pl.BlockSpec((cout, c), lambda bi, j: (0, 0)),
                  pl.BlockSpec((cout, 1), lambda bi, j: (0, 0))],
        out_specs=pl.BlockSpec((1, cout, tm), lambda bi, j: (bi, 0, j)),
        compiler_params=_mosaic_params(2),
    )(y1, y2, w1t, w2t, b)


def conv3x3(x_nhwc, p, residual=None, out_dtype=jnp.bfloat16):
    """3x3 Conv (stride 1, pad 1) + folded BN + SiLU (+ Bottleneck residual).
    Row-tiled grid (B, H//th); halos come from two clamped single-row blocks
    (no host-side pad); the 9 taps are one in-VMEM im2col dot."""
    batch, h, w, cin = x_nhwc.shape
    cout = p["w"].shape[-1]
    w9 = p["w"].reshape(9 * cin, cout).astype(jnp.bfloat16)
    b = p["bias"].reshape(1, cout).astype(jnp.float32)
    th = _pick_tile_rows(batch, h, w, cin, cout)

    x_spec = pl.BlockSpec((1, th, w, cin), lambda bi, i: (bi, i, 0, 0))
    top_spec = pl.BlockSpec(
        (1, 1, w, cin), lambda bi, i: (bi, jnp.maximum(i * th - 1, 0), 0, 0))
    bot_spec = pl.BlockSpec(
        (1, 1, w, cin), lambda bi, i: (bi, jnp.minimum(i * th + th, h - 1), 0, 0))
    w_spec = pl.BlockSpec((9 * cin, cout), lambda bi, i: (0, 0))
    b_spec = pl.BlockSpec((1, cout), lambda bi, i: (0, 0))
    o_spec = pl.BlockSpec((1, th, w, cout), lambda bi, i: (bi, i, 0, 0))
    scratch = [pltpu.VMEM((th + 2, w + 2, cin), jnp.bfloat16)]
    out_shape = jax.ShapeDtypeStruct((batch, h, w, cout), out_dtype)

    if residual is None:
        return pl.pallas_call(
            _conv3x3_kernel, out_shape=out_shape, grid=(batch, h // th),
            in_specs=[top_spec, x_spec, bot_spec, w_spec, b_spec],
            out_specs=o_spec, scratch_shapes=scratch,
            compiler_params=_mosaic_params(2),
        )(x_nhwc, x_nhwc, x_nhwc, w9, b)
    r_spec = pl.BlockSpec((1, th, w, cout), lambda bi, i: (bi, i, 0, 0))
    return pl.pallas_call(
        _conv3x3_res_kernel, out_shape=out_shape, grid=(batch, h // th),
        in_specs=[top_spec, x_spec, bot_spec, w_spec, b_spec, r_spec],
        out_specs=o_spec, scratch_shapes=scratch,
        compiler_params=_mosaic_params(2),
    )(x_nhwc, x_nhwc, x_nhwc, w9, b, residual)


# ------------------------- Parameter construction -------------------------

def _bn_fold(key, c, eps=1e-5):
    # eval-mode BatchNorm2d folded into per-channel scale/bias
    k1, k2, k3, k4 = jax.random.split(key, 4)
    gamma = 1.0 + 0.1 * jax.random.normal(k1, (c,), jnp.float32)
    beta = 0.1 * jax.random.normal(k2, (c,), jnp.float32)
    mean = 0.1 * jax.random.normal(k3, (c,), jnp.float32)
    var = jax.random.uniform(k4, (c,), jnp.float32, minval=0.5, maxval=1.5)
    scale = gamma / jnp.sqrt(var + eps)
    bias = beta - mean * scale
    return scale, bias


def make_conv_params(key, cin, cout, k):
    kw, kb = jax.random.split(key)
    fan_in = cin * k * k
    scale, bias = _bn_fold(kb, cout)
    if k == 1:
        w = jax.random.normal(kw, (cin, cout), jnp.float32) / jnp.sqrt(fan_in)
    else:
        # (ky, kx, cin, cout); PyTorch [cout,cin,kh,kw] -> permute(2,3,1,0)
        w = jax.random.normal(kw, (k, k, cin, cout), jnp.float32) / jnp.sqrt(fan_in)
    w = w * scale                      # fold BN scale into conv weight columns
    return {"w": w, "bias": bias}


def make_c3_params(key, c1, c2, n=1, e=0.5):
    c_ = int(c2 * e)
    keys = jax.random.split(key, 3 + 2 * n)
    params = {
        "cv1": make_conv_params(keys[0], c1, c_, 1),
        "cv2": make_conv_params(keys[1], c1, c_, 1),
        "cv3": make_conv_params(keys[2], 2 * c_, c2, 1),
        "m": [],
    }
    for i in range(n):
        params["m"].append({
            "cv1": make_conv_params(keys[3 + 2 * i], c_, c_, 1),  # Bottleneck e=1.0
            "cv2": make_conv_params(keys[4 + 2 * i], c_, c_, 3),
        })
    return params


# ------------------------- C3 forward -------------------------

def bottleneck_forward(y_cl, p, h, w, shortcut=True):
    batch, hw, c = y_cl.shape
    t = conv1x1_cl(y_cl, p["cv1"])                       # (B, HW, c_)
    res = y_cl.reshape(batch, h, w, c) if shortcut else None   # c1 == c2 in C3
    out = conv3x3(t.reshape(batch, h, w, c), p["cv2"], residual=res)
    return out.reshape(batch, hw, c)


def c3_forward(x_nchw, params, shortcut=True):
    batch, c1, h, w = x_nchw.shape
    c2 = params["cv3"]["w"].shape[-1]
    x_cf = x_nchw.reshape(batch, c1, h * w)              # free view of NCHW
    y1 = conv1x1_cf_in(x_cf, params["cv1"])              # transpose+cast fused
    y2 = conv1x1_cf_in(x_cf, params["cv2"])
    for bp in params["m"]:
        y1 = bottleneck_forward(y1, bp, h, w, shortcut)
    out_cf = conv1x1_concat_cf_out(y1, y2, params["cv3"])   # (B, C2, HW) f32
    return out_cf.reshape(batch, c2, h, w)                  # NCHW, free view


# ------------------------- main -------------------------

if __name__ == "__main__":
    key = jax.random.PRNGKey(0)
    kx, kp = jax.random.split(key)

    B, C1, H, W = 2, 4, 16, 16
    C2, N_BOTTLENECK = 4, 1

    x = jax.random.normal(kx, (B, C1, H, W), jnp.float32)   # NCHW, like PyTorch
    params = make_c3_params(kp, C1, C2, n=N_BOTTLENECK, e=0.5)

    fwd = jax.jit(c3_forward)
    out = jax.block_until_ready(fwd(x, params))
    assert out.shape == (B, C2, H, W), out.shape
    assert bool(jnp.all(jnp.isfinite(out))), "non-finite output"
    print("KERNEL_OK")
</pallas_src>

<mosaic_0001>
module attributes {stable_mosaic.version = 11 : i64} {
  func.func @_conv1x1_cf_in_kernel(%arg0: i32, %arg1: i32, %arg2: memref<1x4x128xf32, #tpu.memory_space<vmem>>, %arg3: memref<4x2xbf16, #tpu.memory_space<vmem>>, %arg4: memref<1x2xf32, #tpu.memory_space<vmem>>, %arg5: memref<1x128x2xbf16, #tpu.memory_space<vmem>>) attributes {dimension_semantics = [#tpu.dimension_semantics<parallel>, #tpu.dimension_semantics<parallel>], iteration_bounds = array<i64: 2, 2>, scalar_prefetch = 0 : i64, scratch_operands = 0 : i64, tpu.core_type = #tpu.core_type<tc>, window_params = [{transform_indices = @transform_0, window_bounds = array<i64: 1, 4, 128>}, {pipeline_mode = #tpu.pipeline_mode<synchronous>, transform_indices = @transform_1, window_bounds = array<i64: 4, 2>}, {pipeline_mode = #tpu.pipeline_mode<synchronous>, transform_indices = @transform_2, window_bounds = array<i64: 1, 2>}, {transform_indices = @transform_3, window_bounds = array<i64: 1, 128, 2>}]} {
    %c0 = arith.constant 0 : index
    %c0_0 = arith.constant 0 : index
    %c0_1 = arith.constant 0 : index
    %0 = vector.load %arg2[%c0, %c0_0, %c0_1] : memref<1x4x128xf32, #tpu.memory_space<vmem>>, vector<1x4x128xf32>
    %1 = vector.shape_cast %0 : vector<1x4x128xf32> to vector<4x128xf32>
    %2 = arith.truncf %1 : vector<4x128xf32> to vector<4x128xbf16>
    %c0_2 = arith.constant 0 : index
    %c0_3 = arith.constant 0 : index
    %3 = vector.load %arg3[%c0_2, %c0_3] : memref<4x2xbf16, #tpu.memory_space<vmem>>, vector<4x2xbf16>
    %cst = arith.constant dense<0.000000e+00> : vector<128x2xf32>
    %4 = tpu.matmul %2, %3, %cst {dimension_numbers = #tpu.dot_dimension_numbers<[0], [0], [1], [1], [0, 1, 1, 1], [], []>} : vector<4x128xbf16>, vector<4x2xbf16>, vector<128x2xf32> -> vector<128x2xf32>
    %c0_4 = arith.constant 0 : index
    %c0_5 = arith.constant 0 : index
    %5 = vector.load %arg4[%c0_4, %c0_5] : memref<1x2xf32, #tpu.memory_space<vmem>>, vector<1x2xf32>
    %6 = vector.broadcast %5 : vector<1x2xf32> to vector<128x2xf32>
    %7 = arith.addf %4, %6 : vector<128x2xf32>
    %cst_6 = arith.constant 0.000000e+00 : f32
    %8 = vector.broadcast %cst_6 : f32 to vector<128x2xf32>
    %9 = arith.subf %8, %7 : vector<128x2xf32>
    %10 = math.exp %9 : vector<128x2xf32>
    %cst_7 = arith.constant 1.000000e+00 : f32
    %11 = vector.broadcast %cst_7 : f32 to vector<128x2xf32>
    %12 = arith.addf %11, %10 : vector<128x2xf32>
    %13 = tpu.reciprocal %12 {approx = true} : vector<128x2xf32> -> vector<128x2xf32>
    %14 = arith.mulf %7, %13 : vector<128x2xf32>
    %15 = arith.truncf %14 : vector<128x2xf32> to vector<128x2xbf16>
    %c0_8 = arith.constant 0 : index
    %c0_9 = arith.constant 0 : index
    %c0_10 = arith.constant 0 : index
    %16 = vector.load %arg5[%c0_8, %c0_9, %c0_10] : memref<1x128x2xbf16, #tpu.memory_space<vmem>>, vector<1x128x2xbf16>
    %17 = vector.shape_cast %16 : vector<1x128x2xbf16> to vector<128x2xbf16>
    %18 = vector.shape_cast %15 : vector<128x2xbf16> to vector<1x128x2xbf16>
    tpu.vector_store %arg5[%c0_8, %c0_9, %c0_10], %18 {strides = array<i32>} : memref<1x128x2xbf16, #tpu.memory_space<vmem>>, vector<1x128x2xbf16>,
    return
  }
  func.func @transform_0(%arg0: i32, %arg1: i32) -> (i32, i32, i32) {
    %c0_i32 = arith.constant 0 : i32
    %c0_i32_0 = arith.constant 0 : i32
    return %arg0, %c0_i32, %arg1 : i32, i32, i32
  }
  func.func @transform_1(%arg0: i32, %arg1: i32) -> (i32, i32) {
    %c0_i32 = arith.constant 0 : i32
    %c0_i32_0 = arith.constant 0 : i32
    %c0_i32_1 = arith.constant 0 : i32
    return %c0_i32, %c0_i32_0 : i32, i32
  }
  func.func @transform_2(%arg0: i32, %arg1: i32) -> (i32, i32) {
    %c0_i32 = arith.constant 0 : i32
    %c0_i32_0 = arith.constant 0 : i32
    %c0_i32_1 = arith.constant 0 : i32
    return %c0_i32, %c0_i32_0 : i32, i32
  }
  func.func @transform_3(%arg0: i32, %arg1: i32) -> (i32, i32, i32) {
    %c0_i32 = arith.constant 0 : i32
    %c0_i32_0 = arith.constant 0 : i32
    return %arg0, %arg1, %c0_i32 : i32, i32, i32
  }
}

module attributes {stable_mosaic.version = 11 : i64} {
  func.func @_conv1x1_cl_kernel(%arg0: i32, %arg1: i32, %arg2: memref<1x128x2xbf16, #tpu.memory_space<vmem>>, %arg3: memref<2x2xbf16, #tpu.memory_space<vmem>>, %arg4: memref<1x2xf32, #tpu.memory_space<vmem>>, %arg5: memref<1x128x2xbf16, #tpu.memory_space<vmem>>) attributes {dimension_semantics = [#tpu.dimension_semantics<parallel>, #tpu.dimension_semantics<parallel>], iteration_bounds = array<i64: 2, 2>, scalar_prefetch = 0 : i64, scratch_operands = 0 : i64, tpu.core_type = #tpu.core_type<tc>, window_params = [{transform_indices = @transform_0, window_bounds = array<i64: 1, 128, 2>}, {pipeline_mode = #tpu.pipeline_mode<synchronous>, transform_indices = @transform_1, window_bounds = array<i64: 2, 2>}, {pipeline_mode = #tpu.pipeline_mode<synchronous>, transform_indices = @transform_2, window_bounds = array<i64: 1, 2>}, {transform_indices = @transform_3, window_bounds = array<i64: 1, 128, 2>}]} {
    %c0 = arith.constant 0 : index
    %c0_0 = arith.constant 0 : index
    %c0_1 = arith.constant 0 : index
    %0 = vector.load %arg2[%c0, %c0_0, %c0_1] : memref<1x128x2xbf16, #tpu.memory_space<vmem>>, vector<1x128x2xbf16>
    %1 = vector.shape_cast %0 : vector<1x128x2xbf16> to vector<128x2xbf16>
    %c0_2 = arith.constant 0 : index
    %c0_3 = arith.constant 0 : index
    %2 = vector.load %arg3[%c0_2, %c0_3] : memref<2x2xbf16, #tpu.memory_space<vmem>>, vector<2x2xbf16>
    %cst = arith.constant dense<0.000000e+00> : vector<128x2xf32>
    %3 = tpu.matmul %1, %2, %cst {dimension_numbers = #tpu.dot_dimension_numbers<[1], [0], [0], [1], [0, 0, 1, 1], [], []>} : vector<128x2xbf16>, vector<2x2xbf16>, vector<128x2xf32> -> vector<128x2xf32>
    %c0_4 = arith.constant 0 : index
    %c0_5 = arith.constant 0 : index
    %4 = vector.load %arg4[%c0_4, %c0_5] : memref<1x2xf32, #tpu.memory_space<vmem>>, vector<1x2xf32>
    %5 = vector.broadcast %4 : vector<1x2xf32> to vector<128x2xf32>
    %6 = arith.addf %3, %5 : vector<128x2xf32>
    %cst_6 = arith.constant 0.000000e+00 : f32
    %7 = vector.broadcast %cst_6 : f32 to vector<128x2xf32>
    %8 = arith.subf %7, %6 : vector<128x2xf32>
    %9 = math.exp %8 : vector<128x2xf32>
    %cst_7 = arith.constant 1.000000e+00 : f32
    %10 = vector.broadcast %cst_7 : f32 to vector<128x2xf32>
    %11 = arith.addf %10, %9 : vector<128x2xf32>
    %12 = tpu.reciprocal %11 {approx = true} : vector<128x2xf32> -> vector<128x2xf32>
    %13 = arith.mulf %6, %12 : vector<128x2xf32>
    %14 = arith.truncf %13 : vector<128x2xf32> to vector<128x2xbf16>
    %c0_8 = arith.constant 0 : index
    %c0_9 = arith.constant 0 : index
    %c0_10 = arith.constant 0 : index
    %15 = vector.load %arg5[%c0_8, %c0_9, %c0_10] : memref<1x128x2xbf16, #tpu.memory_space<vmem>>, vector<1x128x2xbf16>
    %16 = vector.shape_cast %15 : vector<1x128x2xbf16> to vector<128x2xbf16>
    %17 = vector.shape_cast %14 : vector<128x2xbf16> to vector<1x128x2xbf16>
    tpu.vector_store %arg5[%c0_8, %c0_9, %c0_10], %17 {strides = array<i32>} : memref<1x128x2xbf16, #tpu.memory_space<vmem>>, vector<1x128x2xbf16>,
    return
  }
  func.func @transform_0(%arg0: i32, %arg1: i32) -> (i32, i32, i32) {
    %c0_i32 = arith.constant 0 : i32
    %c0_i32_0 = arith.constant 0 : i32
    return %arg0, %arg1, %c0_i32 : i32, i32, i32
  }
  func.func @transform_1(%arg0: i32, %arg1: i32) -> (i32, i32) {
    %c0_i32 = arith.constant 0 : i32
    %c0_i32_0 = arith.constant 0 : i32
    %c0_i32_1 = arith.constant 0 : i32
    return %c0_i32, %c0_i32_0 : i32, i32
  }
  func.func @transform_2(%arg0: i32, %arg1: i32) -> (i32, i32) {
    %c0_i32 = arith.constant 0 : i32
    %c0_i32_0 = arith.constant 0 : i32
    %c0_i32_1 = arith.constant 0 : i32
    return %c0_i32, %c0_i32_0 : i32, i32
  }
  func.func @transform_3(%arg0: i32, %arg1: i32) -> (i32, i32, i32) {
    %c0_i32 = arith.constant 0 : i32
    %c0_i32_0 = arith.constant 0 : i32
    return %arg0, %arg1, %c0_i32 : i32, i32, i32
  }
}

module attributes {stable_mosaic.version = 11 : i64} {
  func.func @_conv3x3_res_kernel(%arg0: i32, %arg1: i32, %arg2: memref<1x1x16x2xbf16, #tpu.memory_space<vmem>>, %arg3: memref<1x8x16x2xbf16, #tpu.memory_space<vmem>>, %arg4: memref<1x1x16x2xbf16, #tpu.memory_space<vmem>>, %arg5: memref<18x2xbf16, #tpu.memory_space<vmem>>, %arg6: memref<1x2xf32, #tpu.memory_space<vmem>>, %arg7: memref<1x8x16x2xbf16, #tpu.memory_space<vmem>>, %arg8: memref<1x8x16x2xbf16, #tpu.memory_space<vmem>>, %arg9: memref<10x18x2xbf16, #tpu.memory_space<vmem>>) attributes {dimension_semantics = [#tpu.dimension_semantics<parallel>, #tpu.dimension_semantics<parallel>], iteration_bounds = array<i64: 2, 2>, scalar_prefetch = 0 : i64, scratch_operands = 1 : i64, tpu.core_type = #tpu.core_type<tc>, window_params = [{transform_indices = @transform_0, window_bounds = array<i64: 1, 1, 16, 2>}, {transform_indices = @transform_1, window_bounds = array<i64: 1, 8, 16, 2>}, {transform_indices = @transform_2, window_bounds = array<i64: 1, 1, 16, 2>}, {pipeline_mode = #tpu.pipeline_mode<synchronous>, transform_indices = @transform_3, window_bounds = array<i64: 18, 2>}, {pipeline_mode = #tpu.pipeline_mode<synchronous>, transform_indices = @transform_4, window_bounds = array<i64: 1, 2>}, {transform_indices = @transform_5, window_bounds = array<i64: 1, 8, 16, 2>}, {transform_indices = @transform_6, window_bounds = array<i64: 1, 8, 16, 2>}]} {
    %cst = arith.constant 0.000000e+00 : bf16
    %0 = vector.broadcast %cst : bf16 to vector<10x18x2xbf16>
    %c0 = arith.constant 0 : index
    %c0_0 = arith.constant 0 : index
    %c0_1 = arith.constant 0 : index
    %1 = vector.load %arg9[%c0, %c0_0, %c0_1] : memref<10x18x2xbf16, #tpu.memory_space<vmem>>, vector<10x18x2xbf16>
    tpu.vector_store %arg9[%c0, %c0_0, %c0_1], %0 {strides = array<i32>} : memref<10x18x2xbf16, #tpu.memory_space<vmem>>, vector<10x18x2xbf16>,
    %c0_2 = arith.constant 0 : index
    %c0_3 = arith.constant 0 : index
    %c0_4 = arith.constant 0 : index
    %c0_5 = arith.constant 0 : index
    %2 = vector.load %arg3[%c0_2, %c0_3, %c0_4, %c0_5] : memref<1x8x16x2xbf16, #tpu.memory_space<vmem>>, vector<1x8x16x2xbf16>
    %3 = vector.shape_cast %2 : vector<1x8x16x2xbf16> to vector<8x16x2xbf16>
    %c1 = arith.constant 1 : index
    %c1_6 = arith.constant 1 : index
    %c0_7 = arith.constant 0 : index
    %4 = vector.load %arg9[%c1, %c1_6, %c0_7] : memref<10x18x2xbf16, #tpu.memory_space<vmem>>, vector<8x16x2xbf16>
    tpu.vector_store %arg9[%c1, %c1_6, %c0_7], %3 {strides = array<i32>} : memref<10x18x2xbf16, #tpu.memory_space<vmem>>, vector<8x16x2xbf16>,
    %c0_i32 = arith.constant 0 : i32
    %5 = arith.cmpi sgt, %arg1, %c0_i32 : i32
    %6 = arith.extui %5 : i1 to i32
    %c0_i32_8 = arith.constant 0 : i32
    %7 = arith.cmpi ne, %6, %c0_i32_8 : i32
    scf.if %7 {
      %c0_28 = arith.constant 0 : index
      %c0_29 = arith.constant 0 : index
      %c0_30 = arith.constant 0 : index
      %c0_31 = arith.constant 0 : index
      %52 = vector.load %arg2[%c0_28, %c0_29, %c0_30, %c0_31] : memref<1x1x16x2xbf16, #tpu.memory_space<vmem>>, vector<1x1x16x2xbf16>
      %53 = vector.shape_cast %52 : vector<1x1x16x2xbf16> to vector<1x16x2xbf16>
      %c0_32 = arith.constant 0 : index
      %c1_33 = arith.constant 1 : index
      %c0_34 = arith.constant 0 : index
      %54 = vector.load %arg9[%c0_32, %c1_33, %c0_34] : memref<10x18x2xbf16, #tpu.memory_space<vmem>>, vector<1x16x2xbf16>
      tpu.vector_store %arg9[%c0_32, %c1_33, %c0_34], %53 {strides = array<i32>} : memref<10x18x2xbf16, #tpu.memory_space<vmem>>, vector<1x16x2xbf16>,
    } else {
    }
    %c1_i32 = arith.constant 1 : i32
    %8 = arith.cmpi slt, %arg1, %c1_i32 : i32
    %9 = arith.extui %8 : i1 to i32
    %c0_i32_9 = arith.constant 0 : i32
    %10 = arith.cmpi ne, %9, %c0_i32_9 : i32
    scf.if %10 {
      %c0_28 = arith.constant 0 : index
      %c0_29 = arith.constant 0 : index
      %c0_30 = arith.constant 0 : index
      %c0_31 = arith.constant 0 : index
      %52 = vector.load %arg4[%c0_28, %c0_29, %c0_30, %c0_31] : memref<1x1x16x2xbf16, #tpu.memory_space<vmem>>, vector<1x1x16x2xbf16>
      %53 = vector.shape_cast %52 : vector<1x1x16x2xbf16> to vector<1x16x2xbf16>
      %c9 = arith.constant 9 : index
      %c1_32 = arith.constant 1 : index
      %c0_33 = arith.constant 0 : index
      %54 = vector.load %arg9[%c9, %c1_32, %c0_33] : memref<10x18x2xbf16, #tpu.memory_space<vmem>>, vector<1x16x2xbf16>
      tpu.vector_store %arg9[%c9, %c1_32, %c0_33], %53 {strides = array<i32>} : memref<10x18x2xbf16, #tpu.memory_space<vmem>>, vector<1x16x2xbf16>,
    } else {
    }
    %c0_10 = arith.constant 0 : index
    %c0_11 = arith.constant 0 : index
    %c0_12 = arith.constant 0 : index
    %11 = vector.load %arg9[%c0_10, %c0_11, %c0_12] : memref<10x18x2xbf16, #tpu.memory_space<vmem>>, vector<10x18x2xbf16>
    %12 = vector.extract_strided_slice %11 {offsets = [0, 0, 0], sizes = [8, 16, 2], strides = [1, 1, 1]} : vector<10x18x2xbf16> to vector<8x16x2xbf16>
    %13 = vector.shape_cast %12 : vector<8x16x2xbf16> to vector<128x2xbf16>
    %14 = vector.extract_strided_slice %11 {offsets = [0, 1, 0], sizes = [8, 16, 2], strides = [1, 1, 1]} : vector<10x18x2xbf16> to vector<8x16x2xbf16>
    %15 = vector.shape_cast %14 : vector<8x16x2xbf16> to vector<128x2xbf16>
    %16 = vector.extract_strided_slice %11 {offsets = [0, 2, 0], sizes = [8, 16, 2], strides = [1, 1, 1]} : vector<10x18x2xbf16> to vector<8x16x2xbf16>
    %17 = vector.shape_cast %16 : vector<8x16x2xbf16> to vector<128x2xbf16>
    %18 = vector.extract_strided_slice %11 {offsets = [1, 0, 0], sizes = [8, 16, 2], strides = [1, 1, 1]} : vector<10x18x2xbf16> to vector<8x16x2xbf16>
    %19 = vector.shape_cast %18 : vector<8x16x2xbf16> to vector<128x2xbf16>
    %20 = vector.extract_strided_slice %11 {offsets = [1, 1, 0], sizes = [8, 16, 2], strides = [1, 1, 1]} : vector<10x18x2xbf16> to vector<8x16x2xbf16>
    %21 = vector.shape_cast %20 : vector<8x16x2xbf16> to vector<128x2xbf16>
    %22 = vector.extract_strided_slice %11 {offsets = [1, 2, 0], sizes = [8, 16, 2], strides = [1, 1, 1]} : vector<10x18x2xbf16> to vector<8x16x2xbf16>
    %23 = vector.shape_cast %22 : vector<8x16x2xbf16> to vector<128x2xbf16>
    %24 = vector.extract_strided_slice %11 {offsets = [2, 0, 0], sizes = [8, 16, 2], strides = [1, 1, 1]} : vector<10x18x2xbf16> to vector<8x16x2xbf16>
    %25 = vector.shape_cast %24 : vector<8x16x2xbf16> to vector<128x2xbf16>
    %26 = vector.extract_strided_slice %11 {offsets = [2, 1, 0], sizes = [8, 16, 2], strides = [1, 1, 1]} : vector<10x18x2xbf16> to vector<8x16x2xbf16>
    %27 = vector.shape_cast %26 : vector<8x16x2xbf16> to vector<128x2xbf16>
    %28 = vector.extract_strided_slice %11 {offsets = [2, 2, 0], sizes = [8, 16, 2], strides = [1, 1, 1]} : vector<10x18x2xbf16> to vector<8x16x2xbf16>
    %29 = vector.shape_cast %28 : vector<8x16x2xbf16> to vector<128x2xbf16>
    %30 = tpu.concatenate %13, %15, %17, %19, %21, %23, %25, %27, %29 in 1 : vector<128x2xbf16>, vector<128x2xbf16>, vector<128x2xbf16>, vector<128x2xbf16>, vector<128x2xbf16>, vector<128x2xbf16>, vector<128x2xbf16>, vector<128x2xbf16>, vector<128x2xbf16> -> vector<128x18xbf16>
    %c0_13 = arith.constant 0 : index
    %c0_14 = arith.constant 0 : index
    %31 = vector.load %arg5[%c0_13, %c0_14] : memref<18x2xbf16, #tpu.memory_space<vmem>>, vector<18x2xbf16>
    %cst_15 = arith.constant dense<0.000000e+00> : vector<128x2xf32>
    %32 = tpu.matmul %30, %31, %cst_15 {dimension_numbers = #tpu.dot_dimension_numbers<[1], [0], [0], [1], [0, 0, 1, 1], [], []>} : vector<128x18xbf16>, vector<18x2xbf16>, vector<128x2xf32> -> vector<128x2xf32>
    %c0_16 = arith.constant 0 : index
    %c0_17 = arith.constant 0 : index
    %33 = vector.load %arg6[%c0_16, %c0_17] : memref<1x2xf32, #tpu.memory_space<vmem>>, vector<1x2xf32>
    %34 = vector.broadcast %33 : vector<1x2xf32> to vector<128x2xf32>
    %35 = arith.addf %32, %34 : vector<128x2xf32>
    %cst_18 = arith.constant 0.000000e+00 : f32
    %36 = vector.broadcast %cst_18 : f32 to vector<128x2xf32>
    %37 = arith.subf %36, %35 : vector<128x2xf32>
    %38 = math.exp %37 : vector<128x2xf32>
    %cst_19 = arith.constant 1.000000e+00 : f32
    %39 = vector.broadcast %cst_19 : f32 to vector<128x2xf32>
    %40 = arith.addf %39, %38 : vector<128x2xf32>
    %41 = tpu.reciprocal %40 {approx = true} : vector<128x2xf32> -> vector<128x2xf32>
    %42 = arith.mulf %35, %41 : vector<128x2xf32>
    %43 = vector.shape_cast %42 : vector<128x2xf32> to vector<8x16x2xf32>
    %c0_20 = arith.constant 0 : index
    %c0_21 = arith.constant 0 : index
    %c0_22 = arith.constant 0 : index
    %c0_23 = arith.constant 0 : index
    %44 = vector.load %arg7[%c0_20, %c0_21, %c0_22, %c0_23] : memref<1x8x16x2xbf16, #tpu.memory_space<vmem>>, vector<1x8x16x2xbf16>
    %45 = vector.shape_cast %44 : vector<1x8x16x2xbf16> to vector<8x16x2xbf16>
    %46 = arith.extf %45 : vector<8x16x2xbf16> to vector<8x16x2xf32>
    %47 = arith.addf %43, %46 : vector<8x16x2xf32>
    %48 = arith.truncf %47 : vector<8x16x2xf32> to vector<8x16x2xbf16>
    %c0_24 = arith.constant 0 : index
    %c0_25 = arith.constant 0 : index
    %c0_26 = arith.constant 0 : index
    %c0_27 = arith.constant 0 : index
    %49 = vector.load %arg8[%c0_24, %c0_25, %c0_26, %c0_27] : memref<1x8x16x2xbf16, #tpu.memory_space<vmem>>, vector<1x8x16x2xbf16>
    %50 = vector.shape_cast %49 : vector<1x8x16x2xbf16> to vector<8x16x2xbf16>
    %51 = vector.shape_cast %48 : vector<8x16x2xbf16> to vector<1x8x16x2xbf16>
    tpu.vector_store %arg8[%c0_24, %c0_25, %c0_26, %c0_27], %51 {strides = array<i32>} : memref<1x8x16x2xbf16, #tpu.memory_space<vmem>>, vector<1x8x16x2xbf16>,
    return
  }
  func.func @transform_0(%arg0: i32, %arg1: i32) -> (i32, i32, i32, i32) {
    %c8_i32 = arith.constant 8 : i32
    %0 = arith.muli %arg1, %c8_i32 : i32
    %c1_i32 = arith.constant 1 : i32
    %1 = arith.subi %0, %c1_i32 : i32
    %c0_i32 = arith.constant 0 : i32
    %2 = arith.maxsi %1, %c0_i32 : i32
    %c0_i32_0 = arith.constant 0 : i32
    %c0_i32_1 = arith.constant 0 : i32
    %c0_i32_2 = arith.constant 0 : i32
    return %arg0, %2, %c0_i32_0, %c0_i32_1 : i32, i32, i32, i32
  }
  func.func @transform_1(%arg0: i32, %arg1: i32) -> (i32, i32, i32, i32) {
    %c0_i32 = arith.constant 0 : i32
    %c0_i32_0 = arith.constant 0 : i32
    %c0_i32_1 = arith.constant 0 : i32
    return %arg0, %arg1, %c0_i32, %c0_i32_0 : i32, i32, i32, i32
  }
  func.func @transform_2(%arg0: i32, %arg1: i32) -> (i32, i32, i32, i32) {
    %c8_i32 = arith.constant 8 : i32
    %0 = arith.muli %arg1, %c8_i32 : i32
    %c8_i32_0 = arith.constant 8 : i32
    %1 = arith.addi %0, %c8_i32_0 : i32
    %c15_i32 = arith.constant 15 : i32
    %2 = arith.minsi %1, %c15_i32 : i32
    %c0_i32 = arith.constant 0 : i32
    %c0_i32_1 = arith.constant 0 : i32
    %c0_i32_2 = arith.constant 0 : i32
    return %arg0, %2, %c0_i32, %c0_i32_1 : i32, i32, i32, i32
  }
  func.func @transform_3(%arg0: i32, %arg1: i32) -> (i32, i32) {
    %c0_i32 = arith.constant 0 : i32
    %c0_i32_0 = arith.constant 0 : i32
    %c0_i32_1 = arith.constant 0 : i32
    return %c0_i32, %c0_i32_0 : i32, i32
  }
  func.func @transform_4(%arg0: i32, %arg1: i32) -> (i32, i32) {
    %c0_i32 = arith.constant 0 : i32
    %c0_i32_0 = arith.constant 0 : i32
    %c0_i32_1 = arith.constant 0 : i32
    return %c0_i32, %c0_i32_0 : i32, i32
  }
  func.func @transform_5(%arg0: i32, %arg1: i32) -> (i32, i32, i32, i32) {
    %c0_i32 = arith.constant 0 : i32
    %c0_i32_0 = arith.constant 0 : i32
    %c0_i32_1 = arith.constant 0 : i32
    return %arg0, %arg1, %c0_i32, %c0_i32_0 : i32, i32, i32, i32
  }
  func.func @transform_6(%arg0: i32, %arg1: i32) -> (i32, i32, i32, i32) {
    %c0_i32 = arith.constant 0 : i32
    %c0_i32_0 = arith.constant 0 : i32
    %c0_i32_1 = arith.constant 0 : i32
    return %arg0, %arg1, %c0_i32, %c0_i32_0 : i32, i32, i32, i32
  }
}

module attributes {stable_mosaic.version = 11 : i64} {
  func.func @_concat_conv1x1_cf_out_kernel(%arg0: i32, %arg1: i32, %arg2: memref<1x128x2xbf16, #tpu.memory_space<vmem>>, %arg3: memref<1x128x2xbf16, #tpu.memory_space<vmem>>, %arg4: memref<4x2xbf16, #tpu.memory_space<vmem>>, %arg5: memref<4x2xbf16, #tpu.memory_space<vmem>>, %arg6: memref<4x1xf32, #tpu.memory_space<vmem>>, %arg7: memref<1x4x128xf32, #tpu.memory_space<vmem>>) attributes {dimension_semantics = [#tpu.dimension_semantics<parallel>, #tpu.dimension_semantics<parallel>], iteration_bounds = array<i64: 2, 2>, scalar_prefetch = 0 : i64, scratch_operands = 0 : i64, tpu.core_type = #tpu.core_type<tc>, window_params = [{transform_indices = @transform_0, window_bounds = array<i64: 1, 128, 2>}, {transform_indices = @transform_1, window_bounds = array<i64: 1, 128, 2>}, {pipeline_mode = #tpu.pipeline_mode<synchronous>, transform_indices = @transform_2, window_bounds = array<i64: 4, 2>}, {pipeline_mode = #tpu.pipeline_mode<synchronous>, transform_indices = @transform_3, window_bounds = array<i64: 4, 2>}, {pipeline_mode = #tpu.pipeline_mode<synchronous>, transform_indices = @transform_4, window_bounds = array<i64: 4, 1>}, {transform_indices = @transform_5, window_bounds = array<i64: 1, 4, 128>}]} {
    %c0 = arith.constant 0 : index
    %c0_0 = arith.constant 0 : index
    %0 = vector.load %arg4[%c0, %c0_0] : memref<4x2xbf16, #tpu.memory_space<vmem>>, vector<4x2xbf16>
    %c0_1 = arith.constant 0 : index
    %c0_2 = arith.constant 0 : index
    %c0_3 = arith.constant 0 : index
    %1 = vector.load %arg2[%c0_1, %c0_2, %c0_3] : memref<1x128x2xbf16, #tpu.memory_space<vmem>>, vector<1x128x2xbf16>
    %2 = vector.shape_cast %1 : vector<1x128x2xbf16> to vector<128x2xbf16>
    %cst = arith.constant dense<0.000000e+00> : vector<4x128xf32>
    %3 = tpu.matmul %0, %2, %cst {dimension_numbers = #tpu.dot_dimension_numbers<[1], [1], [0], [0], [0, 0, 1, 0], [], []>} : vector<4x2xbf16>, vector<128x2xbf16>, vector<4x128xf32> -> vector<4x128xf32>
    %c0_4 = arith.constant 0 : index
    %c0_5 = arith.constant 0 : index
    %4 = vector.load %arg5[%c0_4, %c0_5] : memref<4x2xbf16, #tpu.memory_space<vmem>>, vector<4x2xbf16>
    %c0_6 = arith.constant 0 : index
    %c0_7 = arith.constant 0 : index
    %c0_8 = arith.constant 0 : index
    %5 = vector.load %arg3[%c0_6, %c0_7, %c0_8] : memref<1x128x2xbf16, #tpu.memory_space<vmem>>, vector<1x128x2xbf16>
    %6 = vector.shape_cast %5 : vector<1x128x2xbf16> to vector<128x2xbf16>
    %cst_9 = arith.constant dense<0.000000e+00> : vector<4x128xf32>
    %7 = tpu.matmul %4, %6, %cst_9 {dimension_numbers = #tpu.dot_dimension_numbers<[1], [1], [0], [0], [0, 0, 1, 0], [], []>} : vector<4x2xbf16>, vector<128x2xbf16>, vector<4x128xf32> -> vector<4x128xf32>
    %8 = arith.addf %3, %7 : vector<4x128xf32>
    %c0_10 = arith.constant 0 : index
    %c0_11 = arith.constant 0 : index
    %9 = vector.load %arg6[%c0_10, %c0_11] : memref<4x1xf32, #tpu.memory_space<vmem>>, vector<4x1xf32>
    %10 = vector.broadcast %9 : vector<4x1xf32> to vector<4x128xf32>
    %11 = arith.addf %8, %10 : vector<4x128xf32>
    %cst_12 = arith.constant 0.000000e+00 : f32
    %12 = vector.broadcast %cst_12 : f32 to vector<4x128xf32>
    %13 = arith.subf %12, %11 : vector<4x128xf32>
    %14 = math.exp %13 : vector<4x128xf32>
    %cst_13 = arith.constant 1.000000e+00 : f32
    %15 = vector.broadcast %cst_13 : f32 to vector<4x128xf32>
    %16 = arith.addf %15, %14 : vector<4x128xf32>
    %17 = tpu.reciprocal %16 {approx = true} : vector<4x128xf32> -> vector<4x128xf32>
    %18 = arith.mulf %11, %17 : vector<4x128xf32>
    %c0_14 = arith.constant 0 : index
    %c0_15 = arith.constant 0 : index
    %c0_16 = arith.constant 0 : index
    %19 = vector.load %arg7[%c0_14, %c0_15, %c0_16] : memref<1x4x128xf32, #tpu.memory_space<vmem>>, vector<1x4x128xf32>
    %20 = vector.shape_cast %19 : vector<1x4x128xf32> to vector<4x128xf32>
    %21 = vector.shape_cast %18 : vector<4x128xf32> to vector<1x4x128xf32>
    tpu.vector_store %arg7[%c0_14, %c0_15, %c0_16], %21 {strides = array<i32>} : memref<1x4x128xf32, #tpu.memory_space<vmem>>, vector<1x4x128xf32>,
    return
  }
  func.func @transform_0(%arg0: i32, %arg1: i32) -> (i32, i32, i32) {
    %c0_i32 = arith.constant 0 : i32
    %c0_i32_0 = arith.constant 0 : i32
    return %arg0, %arg1, %c0_i32 : i32, i32, i32
  }
  func.func @transform_1(%arg0: i32, %arg1: i32) -> (i32, i32, i32) {
    %c0_i32 = arith.constant 0 : i32
    %c0_i32_0 = arith.constant 0 : i32
    return %arg0, %arg1, %c0_i32 : i32, i32, i32
  }
  func.func @transform_2(%arg0: i32, %arg1: i32) -> (i32, i32) {
    %c0_i32 = arith.constant 0 : i32
    %c0_i32_0 = arith.constant 0 : i32
    %c0_i32_1 = arith.constant 0 : i32
    return %c0_i32, %c0_i32_0 : i32, i32
  }
  func.func @transform_3(%arg0: i32, %arg1: i32) -> (i32, i32) {
    %c0_i32 = arith.constant 0 : i32
    %c0_i32_0 = arith.constant 0 : i32
    %c0_i32_1 = arith.constant 0 : i32
    return %c0_i32, %c0_i32_0 : i32, i32
  }
  func.func @transform_4(%arg0: i32, %arg1: i32) -> (i32, i32) {
    %c0_i32 = arith.constant 0 : i32
    %c0_i32_0 = arith.constant 0 : i32
    %c0_i32_1 = arith.constant 0 : i32
    return %c0_i32, %c0_i32_0 : i32, i32
  }
  func.func @transform_5(%arg0: i32, %arg1: i32) -> (i32, i32, i32) {
    %c0_i32 = arith.constant 0 : i32
    %c0_i32_0 = arith.constant 0 : i32
    return %arg0, %c0_i32, %arg1 : i32, i32, i32
  }
}

</mosaic_0001>

<llo_original>
// kernel: c3_forward.5
$region0: #{c3_forward.5}
  #allocation0 [shape = 'u32[]', space=smem, size = 0x4, offset = 0x4, fixed_abs, tag = 'smem constant byte address 0x4 - core index']
  #allocation1 [shape = 'u32[144,128]{1,0:T(1,128)}', space=vmem, size = 0x12000, scoped, tag = 'internal scratch']
  %s0 = inlined_call_operand.vmem [shape: f32[2,4,256], index: 0, kind: input, shape index: {}]
  %s1 = inlined_call_operand.vmem [shape: bf16[4,2], index: 1, kind: input, shape index: {}]
  %s2 = inlined_call_operand.vmem [shape: f32[1,2], index: 2, kind: input, shape index: {}]
  %s3 = inlined_call_operand.vmem [shape: bf16[2,256,2], index: 3, kind: output, shape index: {}]
  %s4 = sld [smem:[#allocation0]]
  $region45: #{c3_forward.5} parent=0
    _
  %s6 = ssub.s32 1, %s4
  %s7 = scalar_select 0, %s6, %s4
  loop: start=0, step=1, limit=6
  $region2: #{c3_forward.5} parent=0 // loop_pre_header
    _
  $region3: #{c3_forward.5} parent=0 // loop_header
    %s9 = sphi 0, %s13
    %p10 = scmp.ge.s32.totalorder %s9, 6
    %s16 = sphi 0, %s28
    %s17 = sphi 0, %s24
    %s18 = sphi 0, %s16
    %s19 = sphi 0, %s17
    %s20 = sphi 0, %s18
    %s21 = sphi 0, %s19
    %s33 = sphi 0, %s35
    %s36 = sphi 0, %s33
    %s37 = sphi 0, %s36
    %s53 = sphi 0, %s37
    %s57 = sphi 0, %s57
    %s59 = sphi 0, %s57
    %s60 = sphi 0, %s59
    %s74 = sphi 0, %s60
    %s78 = sphi 0, %s78
    %s80 = sphi 0, %s78
    %s81 = sphi 0, %s80
    %s95 = sphi 0, %s81
    %s103 = sphi 0, %s105
    %s106 = sphi 0, %s103
    %s107 = sphi 0, %s106
    %s123 = sphi 0, %s107
  $region4: #{c3_forward.5} parent=0 // loop_header_branch
    %12 = sbr.rel (%p10) target = $region8
  $region5: #{c3_forward.5} parent=0 // loop_body
    %s14 = ssub.s32 %s9, 1
    %s15 = ssub.s32 %s9, 2
    %s22 = sadd.s32 1, %s17
    %p23 = scmp.ge.s32.totalorder %s22, 2
    %s24 = scalar_select %p23, 0, %s22
    %s25 = sadd.s32 1, %s16
    %s26 = scalar_select %p23, %s25, %s16
    %p27 = scmp.ge.s32.totalorder %s26, 2
    %s28 = scalar_select %p27, 0, %s26
    %s29 = ssub.s32 %s16, %s28
    %s30 = ssub.s32 %s17, %s24
    %s31 = sor.u32 %s29, %s30
    %p32 = scmp.eq.s32.totalorder %s31, 0
    %s34 = sadd.s32 %s33, 1
    %s35 = scalar_select %p32, %s33, %s34
    %p38 = pneg %p32
    %p39 = scmp.eq.s32.totalorder %s9, 3
    %p40 = por %p38, %p39
    %p41 = scmp.ne.s32.totalorder %s33, %s36
    %p42 = scmp.eq.s32.totalorder %s9, 0
    %p43 = por %p41, %p42
    %p44 = scmp.ne.s32.totalorder %s33, %s36
    %p45 = scmp.eq.s32.totalorder %s14, 3
    %p46 = por %p44, %p45
    %p47 = scmp.ne.s32.totalorder %s36, %s37
    %p48 = scmp.eq.s32.totalorder %s14, 0
    %p49 = por %p47, %p48
    %p50 = scmp.ne.s32.totalorder %s36, %s37
    %p51 = scmp.eq.s32.totalorder %s15, 3
    %p52 = por %p50, %p51
    %p54 = scmp.ne.s32.totalorder %s37, %s53
    %p55 = scmp.eq.s32.totalorder %s15, 0
    %p56 = por %p54, %p55
    %s58 = sadd.s32 %s57, 1
    %p61 = scmp.eq.s32.totalorder %s9, 3
    %p62 = scmp.ne.s32.totalorder %s57, %s59
    %p63 = scmp.eq.s32.totalorder %s9, 0
    %p64 = por %p62, %p63
    %p65 = scmp.ne.s32.totalorder %s57, %s59
    %p66 = scmp.eq.s32.totalorder %s14, 3
    %p67 = por %p65, %p66
    %p68 = scmp.ne.s32.totalorder %s59, %s60
    %p69 = scmp.eq.s32.totalorder %s14, 0
    %p70 = por %p68, %p69
    %p71 = scmp.ne.s32.totalorder %s59, %s60
    %p72 = scmp.eq.s32.totalorder %s15, 3
    %p73 = por %p71, %p72
    %p75 = scmp.ne.s32.totalorder %s60, %s74
    %p76 = scmp.eq.s32.totalorder %s15, 0
    %p77 = por %p75, %p76
    %s79 = sadd.s32 %s78, 1
    %p82 = scmp.eq.s32.totalorder %s9, 3
    %p83 = scmp.ne.s32.totalorder %s78, %s80
    %p84 = scmp.eq.s32.totalorder %s9, 0
    %p85 = por %p83, %p84
    %p86 = scmp.ne.s32.totalorder %s78, %s80
    %p87 = scmp.eq.s32.totalorder %s14, 3
    %p88 = por %p86, %p87
    %p89 = scmp.ne.s32.totalorder %s80, %s81
    %p90 = scmp.eq.s32.totalorder %s14, 0
    %p91 = por %p89, %p90
    %p92 = scmp.ne.s32.totalorder %s80, %s81
    %p93 = scmp.eq.s32.totalorder %s15, 3
    %p94 = por %p92, %p93
    %p96 = scmp.ne.s32.totalorder %s81, %s95
    %p97 = scmp.eq.s32.totalorder %s15, 0
    %p98 = por %p96, %p97
    %s99 = ssub.s32 %s16, %s28
    %s100 = ssub.s32 %s17, %s24
    %s101 = sor.u32 %s99, %s100
    %p102 = scmp.eq.s32.totalorder %s101, 0
    %s104 = sadd.s32 %s103, 1
    %s105 = scalar_select %p102, %s103, %s104
    %p108 = pneg %p102
    %p109 = scmp.eq.s32.totalorder %s9, 3
    %p110 = por %p108, %p109
    %p111 = scmp.ne.s32.totalorder %s103, %s106
    %p112 = scmp.eq.s32.totalorder %s9, 0
    %p113 = por %p111, %p112
    %p114 = scmp.ne.s32.totalorder %s103, %s106
    %p115 = scmp.eq.s32.totalorder %s14, 3
    %p116 = por %p114, %p115
    %p117 = scmp.ne.s32.totalorder %s106, %s107
    %p118 = scmp.eq.s32.totalorder %s14, 0
    %p119 = por %p117, %p118
    %p120 = scmp.ne.s32.totalorder %s106, %s107
    %p121 = scmp.eq.s32.totalorder %s15, 3
    %p122 = por %p120, %p121
    %p124 = scmp.ne.s32.totalorder %s107, %s123
    %p125 = scmp.eq.s32.totalorder %s15, 0
    %p126 = por %p124, %p125
    %p127 = scmp.le.s32.totalorder 1, %s9
    %p128 = scmp.lt.s32.totalorder %s9, 5
    %p129 = pnand %p127, %p128
    %p130 = pneg %p129
    // Predicated region
    $region9: #{c3_forward.5} parent=5 // pred_check
      _
    $region10: #{c3_forward.5} parent=5 // pred_check_branch
      %132 = sbr.rel (%p129) target = $region12
    $region11: #{c3_forward.5} parent=5 // pred_region
      %s133 = ssub.s32 %s9, 1
      // Predicated region
      $region13: #{c3_forward.5} parent=11 // pred_check
        %p134 = pneg %p70
      $region14: #{c3_forward.5} parent=11 // pred_check_branch
        %136 = sbr.rel (%p134) target = $region16
      $region15: #{c3_forward.5} parent=11 // pred_region
        _
      $region16: #{c3_forward.5} parent=11 // pred_fallthru
        _
      // Predicated region
      $region17: #{c3_forward.5} parent=11 // pred_check
        %p137 = pneg %p91
      $region18: #{c3_forward.5} parent=11 // pred_check_branch
        %139 = sbr.rel (%p137) target = $region20
      $region19: #{c3_forward.5} parent=11 // pred_region
        _
      $region20: #{c3_forward.5} parent=11 // pred_fallthru
        _
    $region12: #{c3_forward.5} parent=5 // pred_fallthru
      _
    %p140 = scmp.lt.s32.totalorder %s9, 4
    // Predicated region
    $region21: #{c3_forward.5} parent=5 // pred_check
      %p141 = pneg %p140
    $region22: #{c3_forward.5} parent=5 // pred_check_branch
      %143 = sbr.rel (%p141) target = $region24
    $region23: #{c3_forward.5} parent=5 // pred_region
      // Predicated region
      $region25: #{c3_forward.5} parent=23 // pred_check
        %p144 = pneg %p43
      $region26: #{c3_forward.5} parent=23 // pred_check_branch
        %146 = sbr.rel (%p144) target = $region28
      $region27: #{c3_forward.5} parent=23 // pred_region
        %p147 = scmp.lt.s32.totalorder %s16, 1
        %s148 = scalar_select %p147, %s16, 1
        %p149 = scmp.lt.s32.totalorder %s17, 1
        %s150 = scalar_select %p149, %s17, 1
        %s151 = smul.addr %s148, 2
        %s152 = sadd.s32 %s150, %s151
        %s153 = smul.addr %s152, 4
        %s154 = scalar_lea.vmem %s0, %s153
      $region28: #{c3_forward.5} parent=23 // pred_fallthru
        _
    $region24: #{c3_forward.5} parent=5 // pred_fallthru
      _
    %p155 = scmp.le.s32.totalorder 1, %s9
    %p156 = scmp.lt.s32.totalorder %s9, 5
    %p157 = pnand %p155, %p156
    %p158 = pneg %p157
    // Predicated region
    $region29: #{c3_forward.5} parent=5 // pred_check
      _
    $region30: #{c3_forward.5} parent=5 // pred_check_branch
      %160 = sbr.rel (%p157) target = $region32
    $region31: #{c3_forward.5} parent=5 // pred_region
      %s161 = ssub.s32 %s9, 1
      %p162 = scmp.lt.s32.totalorder %s18, 1
      %s163 = scalar_select %p162, %s18, 1
      %p164 = scmp.lt.s32.totalorder %s19, 1
      %s165 = scalar_select %p164, %s19, 1
      %s166 = smul.addr %s163, 2
      %s167 = sadd.s32 %s165, %s166
      %s168 = smul.addr %s167, 4
      %s169 = scalar_lea.vmem %s0, %s168
      %p170 = pneg %p49
      %p171 = pneg %p46
      %p172 = pneg %p70
      %p173 = pneg %p67
      %p174 = pneg %p91
      %p175 = pneg %p88
      %p176 = pneg %p119
      %p177 = pneg %p116
      %s178 = smul.u32 16, %s19
      %p179 = scmp.lt.s32.totalorder %s18, 1
      %s180 = scalar_select %p179, %s18, 1
      %p181 = scmp.lt.s32.totalorder %s178, 31
      %s182 = scalar_select %p181, %s178, 31
      %s183 = smul.addr %s180, 32
      %s184 = sadd.s32 %s182, %s183
      %s185 = smul.addr %s184, 4
      %s186 = scalar_lea.vmem %s3, %s185
      %p187 = scmp.lt.s32.totalorder %s18, 1
      %s188 = scalar_select %p187, %s18, 1
      %p189 = scmp.lt.s32.totalorder %s19, 1
      %s190 = scalar_select %p189, %s19, 1
      %s191 = smul.addr %s188, 2
      %s192 = sadd.s32 %s190, %s191
      %s193 = smul.addr %s192, 4
      %s194 = scalar_lea.vmem %s0, %s193
      %s195 = smul.u32 16, %s19
      %p196 = scmp.lt.s32.totalorder %s18, 1
      %s197 = scalar_select %p196, %s18, 1
      %p198 = scmp.lt.s32.totalorder %s195, 31
      %s199 = scalar_select %p198, %s195, 31
      %s200 = smul.addr %s197, 32
      %s201 = sadd.s32 %s199, %s200
      %s202 = smul.addr %s201, 4
      %s203 = scalar_lea.vmem %s3, %s202
      %s204 = smul.u32 16, %s19
      %v206 = vld [vmem:[%s194] sm:$0xf]
      %v207 = vpack.c.bf16 %v206, %v206
      %v208 = vld [vmem:[%s1] sm:$0x3]
      %v209 = vld [vmem:[%s2] sm:$0x1]
      %v211 = vlaneseq
      %v212 = vshrl.u32 %v211, 7
      %v213 = vsub.s32 0, %v212
      %v214 = vrot.slane %v209, %v213
      %216 = vxpose.xlu0.c.b16.start [1/8] %v207, 128
      %217 = vxpose.xlu0.c.b16.cont [2/8] 0, 128
      %218 = vxpose.xlu0.c.b16.cont [3/8] 0, 128
      %219 = vxpose.xlu0.c.b16.cont [4/8] 0, 128
      %220 = vxpose.xlu0.c.b16.cont [5/8] 0, 128
      %221 = vxpose.xlu0.c.b16.cont [6/8] 0, 128
      %222 = vxpose.xlu0.c.b16.cont [7/8] 0, 128
      %223 = vxpose.xlu0.c.b16.end [8/8] 0, 128
      %v224 = vpop.trf.xlu0
      %v225 = vpop.trf.xlu0
      %v226 = vpop.trf.xlu0
      %v227 = vpop.trf.xlu0
      %v228 = vpop.trf.xlu0
      %v229 = vpop.trf.xlu0
      %v230 = vpop.trf.xlu0
      %v231 = vpop.trf.xlu0
      %vm232 = vcmask 31744
      %v234 = vsel %vm232, %v224, 0
      %v237 = vsel %vm232, %v225, 0
      %v240 = vsel %vm232, %v226, 0
      %v243 = vsel %vm232, %v227, 0
      %v246 = vsel %vm232, %v228, 0
      %v249 = vsel %vm232, %v229, 0
      %v252 = vsel %vm232, %v230, 0
      %v255 = vsel %vm232, %v231, 0
      %vm257 = vcmask 1041408
      %v259 = vsel %vm257, %v208, 0
      %261 = vmatprep.subr.bf16.mxu0 0
      %262 = vmatpush1.bf16.msra.mxu0 0
      %263 = vmatprep.subr.bf16.mxu0 0
      %264 = vmatpush1.bf16.msra.mxu0 0
      %265 = vmatprep.subr.bf16.mxu0 0
      %266 = vmatpush1.bf16.msra.mxu0 0
      %267 = vmatprep.subr.bf16.mxu0 0
      %268 = vmatpush1.bf16.msra.mxu0 0
      %269 = vmatprep.subr.bf16.mxu0 0
      %270 = vmatpush1.bf16.msra.mxu0 0
      %271 = vmatprep.subr.bf16.mxu0 0
      %272 = vmatpush1.bf16.msra.mxu0 0
      %273 = vmatprep.subr.bf16.mxu0 0
      %274 = vmatpush1.bf16.msra.mxu0 0
      %275 = vmatprep.subr.bf16.mxu0 0
      %276 = vmatpush1.bf16.msra.mxu0 %v259
      %277 = vmatprep.subr.bf16.mxu0 0
      %278 = vmatpush2.bf16.msra.mxu0 0
      %279 = vmatprep.subr.bf16.mxu0 0
      %280 = vmatpush2.bf16.msra.mxu0 0
      %281 = vmatprep.subr.bf16.mxu0 0
      %282 = vmatpush2.bf16.msra.mxu0 0
      %283 = vmatprep.subr.bf16.mxu0 0
      %284 = vmatpush2.bf16.msra.mxu0 0
      %285 = vmatprep.subr.bf16.mxu0 0
      %286 = vmatpush2.bf16.msra.mxu0 0
      %287 = vmatprep.subr.bf16.mxu0 0
      %288 = vmatpush2.bf16.msra.mxu0 0
      %289 = vmatprep.subr.bf16.mxu0 0
      %290 = vmatpush2.bf16.msra.mxu0 0
      %291 = vmatprep.subr.bf16.mxu0 0
      %292 = vmatpush2.bf16.msra.mxu0 0
      %293 = vmatprep.mubr.bf16.mxu0 0
      %294 = vmatmul.mubr.bf16.gmra.mxu0 %v234
      %v295 = vpop.f32.mrf.mxu0
      %v296 = vadd.f32 %v214, %v295
      %v297 = vpop.f32.mrf.mxu0
      %v298 = vpop.f32.mrf.mxu0
      %v299 = vadd.f32 %v214, %v298
      %v300 = vpop.f32.mrf.mxu0
      %301 = vmatprep.mubr.bf16.mxu0 0
      %302 = vmatmul.mubr.bf16.gmra.mxu0 %v237
      %v303 = vpop.f32.mrf.mxu0
      %v304 = vadd.f32 %v214, %v303
      %v305 = vpop.f32.mrf.mxu0
      %v306 = vpop.f32.mrf.mxu0
      %v307 = vadd.f32 %v214, %v306
      %v308 = vpop.f32.mrf.mxu0
      %309 = vmatprep.mubr.bf16.mxu0 0
      %310 = vmatmul.mubr.bf16.gmra.mxu0 %v240
      %v311 = vpop.f32.mrf.mxu0
      %v312 = vadd.f32 %v214, %v311
      %v313 = vpop.f32.mrf.mxu0
      %v314 = vpop.f32.mrf.mxu0
      %v315 = vadd.f32 %v214, %v314
      %v316 = vpop.f32.mrf.mxu0
      %317 = vmatprep.mubr.bf16.mxu0 0
      %318 = vmatmul.mubr.bf16.gmra.mxu0 %v243
      %v319 = vpop.f32.mrf.mxu0
      %v320 = vadd.f32 %v214, %v319
      %v321 = vpop.f32.mrf.mxu0
      %v322 = vpop.f32.mrf.mxu0
      %v323 = vadd.f32 %v214, %v322
      %v324 = vpop.f32.mrf.mxu0
      %325 = vmatprep.mubr.bf16.mxu0 0
      %326 = vmatmul.mubr.bf16.gmra.mxu0 %v246
      %v327 = vpop.f32.mrf.mxu0
      %v328 = vadd.f32 %v214, %v327
      %v329 = vpop.f32.mrf.mxu0
      %v330 = vpop.f32.mrf.mxu0
      %v331 = vadd.f32 %v214, %v330
      %v332 = vpop.f32.mrf.mxu0
      %333 = vmatprep.mubr.bf16.mxu0 0
      %334 = vmatmul.mubr.bf16.gmra.mxu0 %v249
      %v335 = vpop.f32.mrf.mxu0
      %v336 = vadd.f32 %v214, %v335
      %v337 = vpop.f32.mrf.mxu0
      %v338 = vpop.f32.mrf.mxu0
      %v339 = vadd.f32 %v214, %v338
      %v340 = vpop.f32.mrf.mxu0
      %341 = vmatprep.mubr.bf16.mxu0 0
      %342 = vmatmul.mubr.bf16.gmra.mxu0 %v252
      %v343 = vpop.f32.mrf.mxu0
      %v344 = vadd.f32 %v214, %v343
      %v345 = vpop.f32.mrf.mxu0
      %v346 = vpop.f32.mrf.mxu0
      %v347 = vadd.f32 %v214, %v346
      %v348 = vpop.f32.mrf.mxu0
      %349 = vmatprep.mubr.bf16.mxu0 0
      %350 = vmatmul.mubr.bf16.gmra.mxu0 %v255
      %v351 = vpop.f32.mrf.mxu0
      %v352 = vadd.f32 %v214, %v351
      %v353 = vpop.f32.mrf.mxu0
      %v354 = vpop.f32.mrf.mxu0
      %v355 = vadd.f32 %v214, %v354
      %v356 = vpop.f32.mrf.mxu0
      %357 = vdwg.mxu0
      %v358 = vsub.f32 0.0, %v296
      %v359 = vsub.f32 0.0, %v299
      %v360 = vsub.f32 0.0, %v304
      %v361 = vsub.f32 0.0, %v307
      %v362 = vsub.f32 0.0, %v312
      %v363 = vsub.f32 0.0, %v315
      %v364 = vsub.f32 0.0, %v320
      %v365 = vsub.f32 0.0, %v323
      %v366 = vsub.f32 0.0, %v328
      %v367 = vsub.f32 0.0, %v331
      %v368 = vsub.f32 0.0, %v336
      %v369 = vsub.f32 0.0, %v339
      %v370 = vsub.f32 0.0, %v344
      %v371 = vsub.f32 0.0, %v347
      %v372 = vsub.f32 0.0, %v352
      %v373 = vsub.f32 0.0, %v355
      %v374 = vmul.f32 %v358, 1.442695
      %v375 = vpow.pop %v374
      %v376 = vmul.f32 %v359, 1.442695
      %v377 = vpow.pop %v376
      %v378 = vmul.f32 %v360, 1.442695
      %v379 = vpow.pop %v378
      %v380 = vmul.f32 %v361, 1.442695
      %v381 = vpow.pop %v380
      %v382 = vmul.f32 %v362, 1.442695
      %v383 = vpow.pop %v382
      %v384 = vmul.f32 %v363, 1.442695
      %v385 = vpow.pop %v384
      %v386 = vmul.f32 %v364, 1.442695
      %v387 = vpow.pop %v386
      %v388 = vmul.f32 %v365, 1.442695
      %v389 = vpow.pop %v388
      %v390 = vmul.f32 %v366, 1.442695
      %v391 = vpow.pop %v390
      %v392 = vmul.f32 %v367, 1.442695
      %v393 = vpow.pop %v392
      %v394 = vmul.f32 %v368, 1.442695
      %v395 = vpow.pop %v394
      %v396 = vmul.f32 %v369, 1.442695
      %v397 = vpow.pop %v396
      %v398 = vmul.f32 %v370, 1.442695
      %v399 = vpow.pop %v398
      %v400 = vmul.f32 %v371, 1.442695
      %v401 = vpow.pop %v400
      %v402 = vmul.f32 %v372, 1.442695
      %v403 = vpow.pop %v402
      %v404 = vmul.f32 %v373, 1.442695
      %v405 = vpow.pop %v404
      %v406 = vadd.f32 %v375, 1.0
      %v407 = vadd.f32 %v377, 1.0
      %v408 = vadd.f32 %v379, 1.0
      %v409 = vadd.f32 %v381, 1.0
      %v410 = vadd.f32 %v383, 1.0
      %v411 = vadd.f32 %v385, 1.0
      %v412 = vadd.f32 %v387, 1.0
      %v413 = vadd.f32 %v389, 1.0
      %v414 = vadd.f32 %v391, 1.0
      %v415 = vadd.f32 %v393, 1.0
      %v416 = vadd.f32 %v395, 1.0
      %v417 = vadd.f32 %v397, 1.0
      %v418 = vadd.f32 %v399, 1.0
      %v419 = vadd.f32 %v401, 1.0
      %v420 = vadd.f32 %v403, 1.0
      %v421 = vadd.f32 %v405, 1.0
      %v422 = vrcp.pop %v406
      %v423 = vrcp.pop %v407
      %v424 = vrcp.pop %v408
      %v425 = vrcp.pop %v409
      %v426 = vrcp.pop %v410
      %v427 = vrcp.pop %v411
      %v428 = vrcp.pop %v412
      %v429 = vrcp.pop %v413
      %v430 = vrcp.pop %v414
      %v431 = vrcp.pop %v415
      %v432 = vrcp.pop %v416
      %v433 = vrcp.pop %v417
      %v434 = vrcp.pop %v418
      %v435 = vrcp.pop %v419
      %v436 = vrcp.pop %v420
      %v437 = vrcp.pop %v421
      %v438 = vmul.f32 %v296, %v422
      %v439 = vmul.f32 %v299, %v423
      %v440 = vmul.f32 %v304, %v424
      %v441 = vmul.f32 %v307, %v425
      %v442 = vmul.f32 %v312, %v426
      %v443 = vmul.f32 %v315, %v427
      %v444 = vmul.f32 %v320, %v428
      %v445 = vmul.f32 %v323, %v429
      %v446 = vmul.f32 %v328, %v430
      %v447 = vmul.f32 %v331, %v431
      %v448 = vmul.f32 %v336, %v432
      %v449 = vmul.f32 %v339, %v433
      %v450 = vmul.f32 %v344, %v434
      %v451 = vmul.f32 %v347, %v435
      %v452 = vmul.f32 %v352, %v436
      %v453 = vmul.f32 %v355, %v437
      %v454 = vpack.c.bf16 %v439, %v438
      %v455 = vpack.c.bf16 %v441, %v440
      %v456 = vpack.c.bf16 %v443, %v442
      %v457 = vpack.c.bf16 %v445, %v444
      %v458 = vpack.c.bf16 %v447, %v446
      %v459 = vpack.c.bf16 %v449, %v448
      %v460 = vpack.c.bf16 %v451, %v450
      %v461 = vpack.c.bf16 %v453, %v452
      %v470 = vunpack.c.l.b16 %v454
      %v471 = vunpack.c.h.b16 %v454
      %v472 = vunpack.c.l.b16 %v455
      %v473 = vunpack.c.h.b16 %v455
      %v474 = vunpack.c.l.b16 %v456
      %v475 = vunpack.c.h.b16 %v456
      %v476 = vunpack.c.l.b16 %v457
      %v477 = vunpack.c.h.b16 %v457
      %v478 = vunpack.c.l.b16 %v458
      %v479 = vunpack.c.h.b16 %v458
      %v480 = vunpack.c.l.b16 %v459
      %v481 = vunpack.c.h.b16 %v459
      %v482 = vunpack.c.l.b16 %v460
      %v483 = vunpack.c.h.b16 %v460
      %v484 = vunpack.c.l.b16 %v461
      %v485 = vunpack.c.h.b16 %v461
      %v486 = vpack.c.b16 %v470, %v470
      %v487 = vpack.c.b16 %v471, %v471
      %v488 = vpack.c.b16 %v472, %v472
      %v489 = vpack.c.b16 %v473, %v473
      %v490 = vpack.c.b16 %v474, %v474
      %v491 = vpack.c.b16 %v475, %v475
      %v492 = vpack.c.b16 %v476, %v476
      %v493 = vpack.c.b16 %v477, %v477
      %v494 = vpack.c.b16 %v478, %v478
      %v495 = vpack.c.b16 %v479, %v479
      %v496 = vpack.c.b16 %v480, %v480
      %v497 = vpack.c.b16 %v481, %v481
      %v498 = vpack.c.b16 %v482, %v482
      %v499 = vpack.c.b16 %v483, %v483
      %v500 = vpack.c.b16 %v484, %v484
      %v501 = vpack.c.b16 %v485, %v485
      %vm518 = vcmask 11264
      %519 = vst.msk [vmem:[%s203] sm:$0xf] %vm518, %v486
      %520 = vst.msk [vmem:[%s203 + $0x4] sm:$0xf] %vm518, %v487
      %521 = vst.msk [vmem:[%s203 + $0x8] sm:$0xf] %vm518, %v488
      %522 = vst.msk [vmem:[%s203 + $0xc] sm:$0xf] %vm518, %v489
      %523 = vst.msk [vmem:[%s203 + $0x10] sm:$0xf] %vm518, %v490
      %524 = vst.msk [vmem:[%s203 + $0x14] sm:$0xf] %vm518, %v491
      %525 = vst.msk [vmem:[%s203 + $0x18] sm:$0xf] %vm518, %v492
      %526 = vst.msk [vmem:[%s203 + $0x1c] sm:$0xf] %vm518, %v493
      %527 = vst.msk [vmem:[%s203 + $0x20] sm:$0xf] %vm518, %v494
      %528 = vst.msk [vmem:[%s203 + $0x24] sm:$0xf] %vm518, %v495
      %529 = vst.msk [vmem:[%s203 + $0x28] sm:$0xf] %vm518, %v496
      %530 = vst.msk [vmem:[%s203 + $0x2c] sm:$0xf] %vm518, %v497
      %531 = vst.msk [vmem:[%s203 + $0x30] sm:$0xf] %vm518, %v498
      %532 = vst.msk [vmem:[%s203 + $0x34] sm:$0xf] %vm518, %v499
      %533 = vst.msk [vmem:[%s203 + $0x38] sm:$0xf] %vm518, %v500
      %534 = vst.msk [vmem:[%s203 + $0x3c] sm:$0xf] %vm518, %v501
      %s535 = smul.u32 16, %s19
      %p536 = scmp.lt.s32.totalorder %s18, 1
      %s537 = scalar_select %p536, %s18, 1
      %p538 = scmp.lt.s32.totalorder %s535, 31
      %s539 = scalar_select %p538, %s535, 31
      %s540 = smul.addr %s537, 32
      %s541 = sadd.s32 %s539, %s540
      %s542 = smul.addr %s541, 4
      %s543 = scalar_lea.vmem %s3, %s542
      // Predicated region
      $region33: #{c3_forward.5} parent=31 // pred_check
        %p544 = pneg %p116
      $region34: #{c3_forward.5} parent=31 // pred_check_branch
        %546 = sbr.rel (%p544) target = $region36
      $region35: #{c3_forward.5} parent=31 // pred_region
        %s547 = smul.u32 16, %s19
      $region36: #{c3_forward.5} parent=31 // pred_fallthru
        _
    $region32: #{c3_forward.5} parent=5 // pred_fallthru
      _
    %p548 = scmp.le.s32.totalorder 2, %s9
    // Predicated region
    $region37: #{c3_forward.5} parent=5 // pred_check
      %p549 = pneg %p548
    $region38: #{c3_forward.5} parent=5 // pred_check_branch
      %551 = sbr.rel (%p549) target = $region40
    $region39: #{c3_forward.5} parent=5 // pred_region
      %s552 = ssub.s32 %s9, 2
      // Predicated region
      $region41: #{c3_forward.5} parent=39 // pred_check
        %p553 = pneg %p122
      $region42: #{c3_forward.5} parent=39 // pred_check_branch
        %555 = sbr.rel (%p553) target = $region44
      $region43: #{c3_forward.5} parent=39 // pred_region
        %s556 = smul.u32 16, %s21
        %p557 = scmp.lt.s32.totalorder %s20, 1
        %s558 = scalar_select %p557, %s20, 1
        %p559 = scmp.lt.s32.totalorder %s556, 31
        %s560 = scalar_select %p559, %s556, 31
        %s561 = smul.addr %s558, 32
        %s562 = sadd.s32 %s560, %s561
        %s563 = smul.addr %s562, 4
        %s564 = scalar_lea.vmem %s3, %s563
      $region44: #{c3_forward.5} parent=39 // pred_fallthru
        _
    $region40: #{c3_forward.5} parent=5 // pred_fallthru
      _
  $region6: #{c3_forward.5} parent=0 // loop_footer
    %s13 = sadd.s32 1, %s9
  $region7: #{c3_forward.5} parent=0 // loop_footer_branch
    %8 = sbr.rel target = $region3
  $region8: #{c3_forward.5} parent=0 // loop_exit
    _

// kernel: c3_forward.7
$region0: #{c3_forward.7}
  #allocation0 [shape = 'u32[]', space=smem, size = 0x4, offset = 0x4, fixed_abs, tag = 'smem constant byte address 0x4 - core index']
  #allocation1 [shape = 'u32[144,128]{1,0:T(1,128)}', space=vmem, size = 0x12000, scoped, tag = 'internal scratch']
  %s0 = inlined_call_operand.vmem [shape: bf16[2,256,2], index: 0, kind: input, shape index: {}]
  %s1 = inlined_call_operand.vmem [shape: bf16[2,2], index: 1, kind: input, shape index: {}]
  %s2 = inlined_call_operand.vmem [shape: f32[1,2], index: 2, kind: input, shape index: {}]
  %s3 = inlined_call_operand.vmem [shape: bf16[2,256,2], index: 3, kind: output, shape index: {}]
  %s4 = sld [smem:[#allocation0]]
  $region45: #{c3_forward.7} parent=0
    _
  %s6 = ssub.s32 1, %s4
  %s7 = scalar_select 0, %s6, %s4
  loop: start=0, step=1, limit=6
  $region2: #{c3_forward.7} parent=0 // loop_pre_header
    _
  $region3: #{c3_forward.7} parent=0 // loop_header
    %s9 = sphi 0, %s13
    %p10 = scmp.ge.s32.totalorder %s9, 6
    %s16 = sphi 0, %s28
    %s17 = sphi 0, %s24
    %s18 = sphi 0, %s16
    %s19 = sphi 0, %s17
    %s20 = sphi 0, %s18
    %s21 = sphi 0, %s19
    %s33 = sphi 0, %s35
    %s36 = sphi 0, %s33
    %s37 = sphi 0, %s36
    %s53 = sphi 0, %s37
    %s57 = sphi 0, %s57
    %s59 = sphi 0, %s57
    %s60 = sphi 0, %s59
    %s74 = sphi 0, %s60
    %s78 = sphi 0, %s78
    %s80 = sphi 0, %s78
    %s81 = sphi 0, %s80
    %s95 = sphi 0, %s81
    %s103 = sphi 0, %s105
    %s106 = sphi 0, %s103
    %s107 = sphi 0, %s106
    %s123 = sphi 0, %s107
  $region4: #{c3_forward.7} parent=0 // loop_header_branch
    %12 = sbr.rel (%p10) target = $region8
  $region5: #{c3_forward.7} parent=0 // loop_body
    %s14 = ssub.s32 %s9, 1
    %s15 = ssub.s32 %s9, 2
    %s22 = sadd.s32 1, %s17
    %p23 = scmp.ge.s32.totalorder %s22, 2
    %s24 = scalar_select %p23, 0, %s22
    %s25 = sadd.s32 1, %s16
    %s26 = scalar_select %p23, %s25, %s16
    %p27 = scmp.ge.s32.totalorder %s26, 2
    %s28 = scalar_select %p27, 0, %s26
    %s29 = ssub.s32 %s16, %s28
    %s30 = ssub.s32 %s17, %s24
    %s31 = sor.u32 %s29, %s30
    %p32 = scmp.eq.s32.totalorder %s31, 0
    %s34 = sadd.s32 %s33, 1
    %s35 = scalar_select %p32, %s33, %s34
    %p38 = pneg %p32
    %p39 = scmp.eq.s32.totalorder %s9, 3
    %p40 = por %p38, %p39
    %p41 = scmp.ne.s32.totalorder %s33, %s36
    %p42 = scmp.eq.s32.totalorder %s9, 0
    %p43 = por %p41, %p42
    %p44 = scmp.ne.s32.totalorder %s33, %s36
    %p45 = scmp.eq.s32.totalorder %s14, 3
    %p46 = por %p44, %p45
    %p47 = scmp.ne.s32.totalorder %s36, %s37
    %p48 = scmp.eq.s32.totalorder %s14, 0
    %p49 = por %p47, %p48
    %p50 = scmp.ne.s32.totalorder %s36, %s37
    %p51 = scmp.eq.s32.totalorder %s15, 3
    %p52 = por %p50, %p51
    %p54 = scmp.ne.s32.totalorder %s37, %s53
    %p55 = scmp.eq.s32.totalorder %s15, 0
    %p56 = por %p54, %p55
    %s58 = sadd.s32 %s57, 1
    %p61 = scmp.eq.s32.totalorder %s9, 3
    %p62 = scmp.ne.s32.totalorder %s57, %s59
    %p63 = scmp.eq.s32.totalorder %s9, 0
    %p64 = por %p62, %p63
    %p65 = scmp.ne.s32.totalorder %s57, %s59
    %p66 = scmp.eq.s32.totalorder %s14, 3
    %p67 = por %p65, %p66
    %p68 = scmp.ne.s32.totalorder %s59, %s60
    %p69 = scmp.eq.s32.totalorder %s14, 0
    %p70 = por %p68, %p69
    %p71 = scmp.ne.s32.totalorder %s59, %s60
    %p72 = scmp.eq.s32.totalorder %s15, 3
    %p73 = por %p71, %p72
    %p75 = scmp.ne.s32.totalorder %s60, %s74
    %p76 = scmp.eq.s32.totalorder %s15, 0
    %p77 = por %p75, %p76
    %s79 = sadd.s32 %s78, 1
    %p82 = scmp.eq.s32.totalorder %s9, 3
    %p83 = scmp.ne.s32.totalorder %s78, %s80
    %p84 = scmp.eq.s32.totalorder %s9, 0
    %p85 = por %p83, %p84
    %p86 = scmp.ne.s32.totalorder %s78, %s80
    %p87 = scmp.eq.s32.totalorder %s14, 3
    %p88 = por %p86, %p87
    %p89 = scmp.ne.s32.totalorder %s80, %s81
    %p90 = scmp.eq.s32.totalorder %s14, 0
    %p91 = por %p89, %p90
    %p92 = scmp.ne.s32.totalorder %s80, %s81
    %p93 = scmp.eq.s32.totalorder %s15, 3
    %p94 = por %p92, %p93
    %p96 = scmp.ne.s32.totalorder %s81, %s95
    %p97 = scmp.eq.s32.totalorder %s15, 0
    %p98 = por %p96, %p97
    %s99 = ssub.s32 %s16, %s28
    %s100 = ssub.s32 %s17, %s24
    %s101 = sor.u32 %s99, %s100
    %p102 = scmp.eq.s32.totalorder %s101, 0
    %s104 = sadd.s32 %s103, 1
    %s105 = scalar_select %p102, %s103, %s104
    %p108 = pneg %p102
    %p109 = scmp.eq.s32.totalorder %s9, 3
    %p110 = por %p108, %p109
    %p111 = scmp.ne.s32.totalorder %s103, %s106
    %p112 = scmp.eq.s32.totalorder %s9, 0
    %p113 = por %p111, %p112
    %p114 = scmp.ne.s32.totalorder %s103, %s106
    %p115 = scmp.eq.s32.totalorder %s14, 3
    %p116 = por %p114, %p115
    %p117 = scmp.ne.s32.totalorder %s106, %s107
    %p118 = scmp.eq.s32.totalorder %s14, 0
    %p119 = por %p117, %p118
    %p120 = scmp.ne.s32.totalorder %s106, %s107
    %p121 = scmp.eq.s32.totalorder %s15, 3
    %p122 = por %p120, %p121
    %p124 = scmp.ne.s32.totalorder %s107, %s123
    %p125 = scmp.eq.s32.totalorder %s15, 0
    %p126 = por %p124, %p125
    %p127 = scmp.le.s32.totalorder 1, %s9
    %p128 = scmp.lt.s32.totalorder %s9, 5
    %p129 = pnand %p127, %p128
    %p130 = pneg %p129
    // Predicated region
    $region9: #{c3_forward.7} parent=5 // pred_check
      _
    $region10: #{c3_forward.7} parent=5 // pred_check_branch
      %132 = sbr.rel (%p129) target = $region12
    $region11: #{c3_forward.7} parent=5 // pred_region
      %s133 = ssub.s32 %s9, 1
      // Predicated region
      $region13: #{c3_forward.7} parent=11 // pred_check
        %p134 = pneg %p70
      $region14: #{c3_forward.7} parent=11 // pred_check_branch
        %136 = sbr.rel (%p134) target = $region16
      $region15: #{c3_forward.7} parent=11 // pred_region
        _
      $region16: #{c3_forward.7} parent=11 // pred_fallthru
        _
      // Predicated region
      $region17: #{c3_forward.7} parent=11 // pred_check
        %p137 = pneg %p91
      $region18: #{c3_forward.7} parent=11 // pred_check_branch
        %139 = sbr.rel (%p137) target = $region20
      $region19: #{c3_forward.7} parent=11 // pred_region
        _
      $region20: #{c3_forward.7} parent=11 // pred_fallthru
        _
    $region12: #{c3_forward.7} parent=5 // pred_fallthru
      _
    %p140 = scmp.lt.s32.totalorder %s9, 4
    // Predicated region
    $region21: #{c3_forward.7} parent=5 // pred_check
      %p141 = pneg %p140
    $region22: #{c3_forward.7} parent=5 // pred_check_branch
      %143 = sbr.rel (%p141) target = $region24
    $region23: #{c3_forward.7} parent=5 // pred_region
      // Predicated region
      $region25: #{c3_forward.7} parent=23 // pred_check
        %p144 = pneg %p43
      $region26: #{c3_forward.7} parent=23 // pred_check_branch
        %146 = sbr.rel (%p144) target = $region28
      $region27: #{c3_forward.7} parent=23 // pred_region
        %s147 = smul.u32 16, %s17
        %p148 = scmp.lt.s32.totalorder %s16, 1
        %s149 = scalar_select %p148, %s16, 1
        %p150 = scmp.lt.s32.totalorder %s147, 31
        %s151 = scalar_select %p150, %s147, 31
        %s152 = smul.addr %s149, 32
        %s153 = sadd.s32 %s151, %s152
        %s154 = smul.addr %s153, 4
        %s155 = scalar_lea.vmem %s0, %s154
        %s156 = smul.u32 16, %s17
      $region28: #{c3_forward.7} parent=23 // pred_fallthru
        _
    $region24: #{c3_forward.7} parent=5 // pred_fallthru
      _
    %p157 = scmp.le.s32.totalorder 1, %s9
    %p158 = scmp.lt.s32.totalorder %s9, 5
    %p159 = pnand %p157, %p158
    %p160 = pneg %p159
    // Predicated region
    $region29: #{c3_forward.7} parent=5 // pred_check
      _
    $region30: #{c3_forward.7} parent=5 // pred_check_branch
      %162 = sbr.rel (%p159) target = $region32
    $region31: #{c3_forward.7} parent=5 // pred_region
      %s163 = ssub.s32 %s9, 1
      %s164 = smul.u32 16, %s19
      %p165 = scmp.lt.s32.totalorder %s18, 1
      %s166 = scalar_select %p165, %s18, 1
      %p167 = scmp.lt.s32.totalorder %s164, 31
      %s168 = scalar_select %p167, %s164, 31
      %s169 = smul.addr %s166, 32
      %s170 = sadd.s32 %s168, %s169
      %s171 = smul.addr %s170, 4
      %s172 = scalar_lea.vmem %s0, %s171
      %p173 = pneg %p49
      %p174 = pneg %p46
      %p175 = pneg %p70
      %p176 = pneg %p67
      %p177 = pneg %p91
      %p178 = pneg %p88
      %p179 = pneg %p119
      %p180 = pneg %p116
      %s181 = smul.u32 16, %s19
      %p182 = scmp.lt.s32.totalorder %s18, 1
      %s183 = scalar_select %p182, %s18, 1
      %p184 = scmp.lt.s32.totalorder %s181, 31
      %s185 = scalar_select %p184, %s181, 31
      %s186 = smul.addr %s183, 32
      %s187 = sadd.s32 %s185, %s186
      %s188 = smul.addr %s187, 4
      %s189 = scalar_lea.vmem %s3, %s188
      %s190 = smul.u32 16, %s19
      %p191 = scmp.lt.s32.totalorder %s18, 1
      %s192 = scalar_select %p191, %s18, 1
      %p193 = scmp.lt.s32.totalorder %s190, 31
      %s194 = scalar_select %p193, %s190, 31
      %s195 = smul.addr %s192, 32
      %s196 = sadd.s32 %s194, %s195
      %s197 = smul.addr %s196, 4
      %s198 = scalar_lea.vmem %s0, %s197
      %s199 = smul.u32 16, %s19
      %s200 = smul.u32 16, %s19
      %p201 = scmp.lt.s32.totalorder %s18, 1
      %s202 = scalar_select %p201, %s18, 1
      %p203 = scmp.lt.s32.totalorder %s200, 31
      %s204 = scalar_select %p203, %s200, 31
      %s205 = smul.addr %s202, 32
      %s206 = sadd.s32 %s204, %s205
      %s207 = smul.addr %s206, 4
      %s208 = scalar_lea.vmem %s3, %s207
      %s209 = smul.u32 16, %s19
      %v211 = vld [vmem:[%s198] sm:$0xf]
      %v212 = vld [vmem:[%s198 + $0x4] sm:$0xf]
      %v213 = vld [vmem:[%s198 + $0x8] sm:$0xf]
      %v214 = vld [vmem:[%s198 + $0xc] sm:$0xf]
      %v215 = vld [vmem:[%s198 + $0x10] sm:$0xf]
      %v216 = vld [vmem:[%s198 + $0x14] sm:$0xf]
      %v217 = vld [vmem:[%s198 + $0x18] sm:$0xf]
      %v218 = vld [vmem:[%s198 + $0x1c] sm:$0xf]
      %v219 = vld [vmem:[%s198 + $0x20] sm:$0xf]
      %v220 = vld [vmem:[%s198 + $0x24] sm:$0xf]
      %v221 = vld [vmem:[%s198 + $0x28] sm:$0xf]
      %v222 = vld [vmem:[%s198 + $0x2c] sm:$0xf]
      %v223 = vld [vmem:[%s198 + $0x30] sm:$0xf]
      %v224 = vld [vmem:[%s198 + $0x34] sm:$0xf]
      %v225 = vld [vmem:[%s198 + $0x38] sm:$0xf]
      %v226 = vld [vmem:[%s198 + $0x3c] sm:$0xf]
      %v227 = vld [vmem:[%s1] sm:$0x1]
      %v228 = vld [vmem:[%s2] sm:$0x1]
      %v230 = vlaneseq
      %v231 = vshrl.u32 %v230, 7
      %v232 = vsub.s32 0, %v231
      %v233 = vrot.slane %v228, %v232
      %v251 = vunpack.c.l.b16 %v211
      %v252 = vunpack.c.l.b16 %v212
      %v253 = vunpack.c.l.b16 %v213
      %v254 = vunpack.c.l.b16 %v214
      %v255 = vunpack.c.l.b16 %v215
      %v256 = vunpack.c.l.b16 %v216
      %v257 = vunpack.c.l.b16 %v217
      %v258 = vunpack.c.l.b16 %v218
      %v259 = vunpack.c.l.b16 %v219
      %v260 = vunpack.c.l.b16 %v220
      %v261 = vunpack.c.l.b16 %v221
      %v262 = vunpack.c.l.b16 %v222
      %v263 = vunpack.c.l.b16 %v223
      %v264 = vunpack.c.l.b16 %v224
      %v265 = vunpack.c.l.b16 %v225
      %v266 = vunpack.c.l.b16 %v226
      %v267 = vpack.c.b16 %v252, %v251
      %v268 = vpack.c.b16 %v254, %v253
      %v269 = vpack.c.b16 %v256, %v255
      %v270 = vpack.c.b16 %v258, %v257
      %v271 = vpack.c.b16 %v260, %v259
      %v272 = vpack.c.b16 %v262, %v261
      %v273 = vpack.c.b16 %v264, %v263
      %v274 = vpack.c.b16 %v266, %v265
      %vm275 = vcmask 15360
      %v277 = vsel %vm275, %v267, 0
      %v280 = vsel %vm275, %v268, 0
      %v283 = vsel %vm275, %v269, 0
      %v286 = vsel %vm275, %v270, 0
      %v289 = vsel %vm275, %v271, 0
      %v292 = vsel %vm275, %v272, 0
      %v295 = vsel %vm275, %v273, 0
      %v298 = vsel %vm275, %v274, 0
      %vm300 = vcmask 1040384
      %v302 = vsel %vm300, %v227, 0
      %304 = vmatprep.subr.bf16.mxu0 0
      %305 = vmatpush1.bf16.msra.mxu0 0
      %306 = vmatprep.subr.bf16.mxu0 0
      %307 = vmatpush1.bf16.msra.mxu0 0
      %308 = vmatprep.subr.bf16.mxu0 0
      %309 = vmatpush1.bf16.msra.mxu0 0
      %310 = vmatprep.subr.bf16.mxu0 0
      %311 = vmatpush1.bf16.msra.mxu0 0
      %312 = vmatprep.subr.bf16.mxu0 0
      %313 = vmatpush1.bf16.msra.mxu0 0
      %314 = vmatprep.subr.bf16.mxu0 0
      %315 = vmatpush1.bf16.msra.mxu0 0
      %316 = vmatprep.subr.bf16.mxu0 0
      %317 = vmatpush1.bf16.msra.mxu0 0
      %318 = vmatprep.subr.bf16.mxu0 0
      %319 = vmatpush1.bf16.msra.mxu0 %v302
      %320 = vmatprep.subr.bf16.mxu0 0
      %321 = vmatpush2.bf16.msra.mxu0 0
      %322 = vmatprep.subr.bf16.mxu0 0
      %323 = vmatpush2.bf16.msra.mxu0 0
      %324 = vmatprep.subr.bf16.mxu0 0
      %325 = vmatpush2.bf16.msra.mxu0 0
      %326 = vmatprep.subr.bf16.mxu0 0
      %327 = vmatpush2.bf16.msra.mxu0 0
      %328 = vmatprep.subr.bf16.mxu0 0
      %329 = vmatpush2.bf16.msra.mxu0 0
      %330 = vmatprep.subr.bf16.mxu0 0
      %331 = vmatpush2.bf16.msra.mxu0 0
      %332 = vmatprep.subr.bf16.mxu0 0
      %333 = vmatpush2.bf16.msra.mxu0 0
      %334 = vmatprep.subr.bf16.mxu0 0
      %335 = vmatpush2.bf16.msra.mxu0 0
      %336 = vmatprep.mubr.bf16.mxu0 0
      %337 = vmatmul.mubr.bf16.gmra.mxu0 %v277
      %v338 = vpop.f32.mrf.mxu0
      %v339 = vadd.f32 %v233, %v338
      %v340 = vpop.f32.mrf.mxu0
      %v341 = vpop.f32.mrf.mxu0
      %v342 = vadd.f32 %v233, %v341
      %v343 = vpop.f32.mrf.mxu0
      %344 = vmatprep.mubr.bf16.mxu0 0
      %345 = vmatmul.mubr.bf16.gmra.mxu0 %v280
      %v346 = vpop.f32.mrf.mxu0
      %v347 = vadd.f32 %v233, %v346
      %v348 = vpop.f32.mrf.mxu0
      %v349 = vpop.f32.mrf.mxu0
      %v350 = vadd.f32 %v233, %v349
      %v351 = vpop.f32.mrf.mxu0
      %352 = vmatprep.mubr.bf16.mxu0 0
      %353 = vmatmul.mubr.bf16.gmra.mxu0 %v283
      %v354 = vpop.f32.mrf.mxu0
      %v355 = vadd.f32 %v233, %v354
      %v356 = vpop.f32.mrf.mxu0
      %v357 = vpop.f32.mrf.mxu0
      %v358 = vadd.f32 %v233, %v357
      %v359 = vpop.f32.mrf.mxu0
      %360 = vmatprep.mubr.bf16.mxu0 0
      %361 = vmatmul.mubr.bf16.gmra.mxu0 %v286
      %v362 = vpop.f32.mrf.mxu0
      %v363 = vadd.f32 %v233, %v362
      %v364 = vpop.f32.mrf.mxu0
      %v365 = vpop.f32.mrf.mxu0
      %v366 = vadd.f32 %v233, %v365
      %v367 = vpop.f32.mrf.mxu0
      %368 = vmatprep.mubr.bf16.mxu0 0
      %369 = vmatmul.mubr.bf16.gmra.mxu0 %v289
      %v370 = vpop.f32.mrf.mxu0
      %v371 = vadd.f32 %v233, %v370
      %v372 = vpop.f32.mrf.mxu0
      %v373 = vpop.f32.mrf.mxu0
      %v374 = vadd.f32 %v233, %v373
      %v375 = vpop.f32.mrf.mxu0
      %376 = vmatprep.mubr.bf16.mxu0 0
      %377 = vmatmul.mubr.bf16.gmra.mxu0 %v292
      %v378 = vpop.f32.mrf.mxu0
      %v379 = vadd.f32 %v233, %v378
      %v380 = vpop.f32.mrf.mxu0
      %v381 = vpop.f32.mrf.mxu0
      %v382 = vadd.f32 %v233, %v381
      %v383 = vpop.f32.mrf.mxu0
      %384 = vmatprep.mubr.bf16.mxu0 0
      %385 = vmatmul.mubr.bf16.gmra.mxu0 %v295
      %v386 = vpop.f32.mrf.mxu0
      %v387 = vadd.f32 %v233, %v386
      %v388 = vpop.f32.mrf.mxu0
      %v389 = vpop.f32.mrf.mxu0
      %v390 = vadd.f32 %v233, %v389
      %v391 = vpop.f32.mrf.mxu0
      %392 = vmatprep.mubr.bf16.mxu0 0
      %393 = vmatmul.mubr.bf16.gmra.mxu0 %v298
      %v394 = vpop.f32.mrf.mxu0
      %v395 = vadd.f32 %v233, %v394
      %v396 = vpop.f32.mrf.mxu0
      %v397 = vpop.f32.mrf.mxu0
      %v398 = vadd.f32 %v233, %v397
      %v399 = vpop.f32.mrf.mxu0
      %400 = vdwg.mxu0
      %v401 = vsub.f32 0.0, %v339
      %v402 = vsub.f32 0.0, %v342
      %v403 = vsub.f32 0.0, %v347
      %v404 = vsub.f32 0.0, %v350
      %v405 = vsub.f32 0.0, %v355
      %v406 = vsub.f32 0.0, %v358
      %v407 = vsub.f32 0.0, %v363
      %v408 = vsub.f32 0.0, %v366
      %v409 = vsub.f32 0.0, %v371
      %v410 = vsub.f32 0.0, %v374
      %v411 = vsub.f32 0.0, %v379
      %v412 = vsub.f32 0.0, %v382
      %v413 = vsub.f32 0.0, %v387
      %v414 = vsub.f32 0.0, %v390
      %v415 = vsub.f32 0.0, %v395
      %v416 = vsub.f32 0.0, %v398
      %v417 = vmul.f32 %v401, 1.442695
      %v418 = vpow.pop %v417
      %v419 = vmul.f32 %v402, 1.442695
      %v420 = vpow.pop %v419
      %v421 = vmul.f32 %v403, 1.442695
      %v422 = vpow.pop %v421
      %v423 = vmul.f32 %v404, 1.442695
      %v424 = vpow.pop %v423
      %v425 = vmul.f32 %v405, 1.442695
      %v426 = vpow.pop %v425
      %v427 = vmul.f32 %v406, 1.442695
      %v428 = vpow.pop %v427
      %v429 = vmul.f32 %v407, 1.442695
      %v430 = vpow.pop %v429
      %v431 = vmul.f32 %v408, 1.442695
      %v432 = vpow.pop %v431
      %v433 = vmul.f32 %v409, 1.442695
      %v434 = vpow.pop %v433
      %v435 = vmul.f32 %v410, 1.442695
      %v436 = vpow.pop %v435
      %v437 = vmul.f32 %v411, 1.442695
      %v438 = vpow.pop %v437
      %v439 = vmul.f32 %v412, 1.442695
      %v440 = vpow.pop %v439
      %v441 = vmul.f32 %v413, 1.442695
      %v442 = vpow.pop %v441
      %v443 = vmul.f32 %v414, 1.442695
      %v444 = vpow.pop %v443
      %v445 = vmul.f32 %v415, 1.442695
      %v446 = vpow.pop %v445
      %v447 = vmul.f32 %v416, 1.442695
      %v448 = vpow.pop %v447
      %v449 = vadd.f32 %v418, 1.0
      %v450 = vadd.f32 %v420, 1.0
      %v451 = vadd.f32 %v422, 1.0
      %v452 = vadd.f32 %v424, 1.0
      %v453 = vadd.f32 %v426, 1.0
      %v454 = vadd.f32 %v428, 1.0
      %v455 = vadd.f32 %v430, 1.0
      %v456 = vadd.f32 %v432, 1.0
      %v457 = vadd.f32 %v434, 1.0
      %v458 = vadd.f32 %v436, 1.0
      %v459 = vadd.f32 %v438, 1.0
      %v460 = vadd.f32 %v440, 1.0
      %v461 = vadd.f32 %v442, 1.0
      %v462 = vadd.f32 %v444, 1.0
      %v463 = vadd.f32 %v446, 1.0
      %v464 = vadd.f32 %v448, 1.0
      %v465 = vrcp.pop %v449
      %v466 = vrcp.pop %v450
      %v467 = vrcp.pop %v451
      %v468 = vrcp.pop %v452
      %v469 = vrcp.pop %v453
      %v470 = vrcp.pop %v454
      %v471 = vrcp.pop %v455
      %v472 = vrcp.pop %v456
      %v473 = vrcp.pop %v457
      %v474 = vrcp.pop %v458
      %v475 = vrcp.pop %v459
      %v476 = vrcp.pop %v460
      %v477 = vrcp.pop %v461
      %v478 = vrcp.pop %v462
      %v479 = vrcp.pop %v463
      %v480 = vrcp.pop %v464
      %v481 = vmul.f32 %v339, %v465
      %v482 = vmul.f32 %v342, %v466
      %v483 = vmul.f32 %v347, %v467
      %v484 = vmul.f32 %v350, %v468
      %v485 = vmul.f32 %v355, %v469
      %v486 = vmul.f32 %v358, %v470
      %v487 = vmul.f32 %v363, %v471
      %v488 = vmul.f32 %v366, %v472
      %v489 = vmul.f32 %v371, %v473
      %v490 = vmul.f32 %v374, %v474
      %v491 = vmul.f32 %v379, %v475
      %v492 = vmul.f32 %v382, %v476
      %v493 = vmul.f32 %v387, %v477
      %v494 = vmul.f32 %v390, %v478
      %v495 = vmul.f32 %v395, %v479
      %v496 = vmul.f32 %v398, %v480
      %v497 = vpack.c.bf16 %v482, %v481
      %v498 = vpack.c.bf16 %v484, %v483
      %v499 = vpack.c.bf16 %v486, %v485
      %v500 = vpack.c.bf16 %v488, %v487
      %v501 = vpack.c.bf16 %v490, %v489
      %v502 = vpack.c.bf16 %v492, %v491
      %v503 = vpack.c.bf16 %v494, %v493
      %v504 = vpack.c.bf16 %v496, %v495
      %v513 = vunpack.c.l.b16 %v497
      %v514 = vunpack.c.h.b16 %v497
      %v515 = vunpack.c.l.b16 %v498
      %v516 = vunpack.c.h.b16 %v498
      %v517 = vunpack.c.l.b16 %v499
      %v518 = vunpack.c.h.b16 %v499
      %v519 = vunpack.c.l.b16 %v500
      %v520 = vunpack.c.h.b16 %v500
      %v521 = vunpack.c.l.b16 %v501
      %v522 = vunpack.c.h.b16 %v501
      %v523 = vunpack.c.l.b16 %v502
      %v524 = vunpack.c.h.b16 %v502
      %v525 = vunpack.c.l.b16 %v503
      %v526 = vunpack.c.h.b16 %v503
      %v527 = vunpack.c.l.b16 %v504
      %v528 = vunpack.c.h.b16 %v504
      %v529 = vpack.c.b16 %v513, %v513
      %v530 = vpack.c.b16 %v514, %v514
      %v531 = vpack.c.b16 %v515, %v515
      %v532 = vpack.c.b16 %v516, %v516
      %v533 = vpack.c.b16 %v517, %v517
      %v534 = vpack.c.b16 %v518, %v518
      %v535 = vpack.c.b16 %v519, %v519
      %v536 = vpack.c.b16 %v520, %v520
      %v537 = vpack.c.b16 %v521, %v521
      %v538 = vpack.c.b16 %v522, %v522
      %v539 = vpack.c.b16 %v523, %v523
      %v540 = vpack.c.b16 %v524, %v524
      %v541 = vpack.c.b16 %v525, %v525
      %v542 = vpack.c.b16 %v526, %v526
      %v543 = vpack.c.b16 %v527, %v527
      %v544 = vpack.c.b16 %v528, %v528
      %vm561 = vcmask 11264
      %562 = vst.msk [vmem:[%s208] sm:$0xf] %vm561, %v529
      %563 = vst.msk [vmem:[%s208 + $0x4] sm:$0xf] %vm561, %v530
      %564 = vst.msk [vmem:[%s208 + $0x8] sm:$0xf] %vm561, %v531
      %565 = vst.msk [vmem:[%s208 + $0xc] sm:$0xf] %vm561, %v532
      %566 = vst.msk [vmem:[%s208 + $0x10] sm:$0xf] %vm561, %v533
      %567 = vst.msk [vmem:[%s208 + $0x14] sm:$0xf] %vm561, %v534
      %568 = vst.msk [vmem:[%s208 + $0x18] sm:$0xf] %vm561, %v535
      %569 = vst.msk [vmem:[%s208 + $0x1c] sm:$0xf] %vm561, %v536
      %570 = vst.msk [vmem:[%s208 + $0x20] sm:$0xf] %vm561, %v537
      %571 = vst.msk [vmem:[%s208 + $0x24] sm:$0xf] %vm561, %v538
      %572 = vst.msk [vmem:[%s208 + $0x28] sm:$0xf] %vm561, %v539
      %573 = vst.msk [vmem:[%s208 + $0x2c] sm:$0xf] %vm561, %v540
      %574 = vst.msk [vmem:[%s208 + $0x30] sm:$0xf] %vm561, %v541
      %575 = vst.msk [vmem:[%s208 + $0x34] sm:$0xf] %vm561, %v542
      %576 = vst.msk [vmem:[%s208 + $0x38] sm:$0xf] %vm561, %v543
      %577 = vst.msk [vmem:[%s208 + $0x3c] sm:$0xf] %vm561, %v544
      %s578 = smul.u32 16, %s19
      %p579 = scmp.lt.s32.totalorder %s18, 1
      %s580 = scalar_select %p579, %s18, 1
      %p581 = scmp.lt.s32.totalorder %s578, 31
      %s582 = scalar_select %p581, %s578, 31
      %s583 = smul.addr %s580, 32
      %s584 = sadd.s32 %s582, %s583
      %s585 = smul.addr %s584, 4
      %s586 = scalar_lea.vmem %s3, %s585
      // Predicated region
      $region33: #{c3_forward.7} parent=31 // pred_check
        %p587 = pneg %p116
      $region34: #{c3_forward.7} parent=31 // pred_check_branch
        %589 = sbr.rel (%p587) target = $region36
      $region35: #{c3_forward.7} parent=31 // pred_region
        %s590 = smul.u32 16, %s19
      $region36: #{c3_forward.7} parent=31 // pred_fallthru
        _
    $region32: #{c3_forward.7} parent=5 // pred_fallthru
      _
    %p591 = scmp.le.s32.totalorder 2, %s9
    // Predicated region
    $region37: #{c3_forward.7} parent=5 // pred_check
      %p592 = pneg %p591
    $region38: #{c3_forward.7} parent=5 // pred_check_branch
      %594 = sbr.rel (%p592) target = $region40
    $region39: #{c3_forward.7} parent=5 // pred_region
      %s595 = ssub.s32 %s9, 2
      // Predicated region
      $region41: #{c3_forward.7} parent=39 // pred_check
        %p596 = pneg %p122
      $region42: #{c3_forward.7} parent=39 // pred_check_branch
        %598 = sbr.rel (%p596) target = $region44
      $region43: #{c3_forward.7} parent=39 // pred_region
        %s599 = smul.u32 16, %s21
        %p600 = scmp.lt.s32.totalorder %s20, 1
        %s601 = scalar_select %p600, %s20, 1
        %p602 = scmp.lt.s32.totalorder %s599, 31
        %s603 = scalar_select %p602, %s599, 31
        %s604 = smul.addr %s601, 32
        %s605 = sadd.s32 %s603, %s604
        %s606 = smul.addr %s605, 4
        %s607 = scalar_lea.vmem %s3, %s606
      $region44: #{c3_forward.7} parent=39 // pred_fallthru
        _
    $region40: #{c3_forward.7} parent=5 // pred_fallthru
      _
  $region6: #{c3_forward.7} parent=0 // loop_footer
    %s13 = sadd.s32 1, %s9
  $region7: #{c3_forward.7} parent=0 // loop_footer_branch
    %8 = sbr.rel target = $region3
  $region8: #{c3_forward.7} parent=0 // loop_exit
    _

// kernel: c3_forward.9
$region0: #{c3_forward.9}
  #allocation0 [shape = 'u32[]', space=smem, size = 0x4, offset = 0x4, fixed_abs, tag = 'smem constant byte address 0x4 - core index']
  #allocation1 [shape = 'u32[144,128]{1,0:T(1,128)}', space=vmem, size = 0x12000, scoped, tag = 'internal scratch']
  %s0 = inlined_call_operand.vmem [shape: bf16[2,256,2], index: 0, kind: input, shape index: {}]
  %s1 = inlined_call_operand.vmem [shape: bf16[2,256,2], index: 1, kind: input, shape index: {}]
  %s2 = inlined_call_operand.vmem [shape: bf16[4,2], index: 2, kind: input, shape index: {}]
  %s3 = inlined_call_operand.vmem [shape: bf16[4,2], index: 3, kind: input, shape index: {}]
  %s4 = inlined_call_operand.vmem [shape: f32[4,1], index: 4, kind: input, shape index: {}]
  %s5 = inlined_call_operand.vmem [shape: f32[2,4,256], index: 5, kind: output, shape index: {}]
  %s6 = sld [smem:[#allocation0]]
  $region53: #{c3_forward.9} parent=0
    _
  %s8 = ssub.s32 1, %s6
  %s9 = scalar_select 0, %s8, %s6
  loop: start=0, step=1, limit=6
  $region2: #{c3_forward.9} parent=0 // loop_pre_header
    _
  $region3: #{c3_forward.9} parent=0 // loop_header
    %s11 = sphi 0, %s15
    %p12 = scmp.ge.s32.totalorder %s11, 6
    %s18 = sphi 0, %s30
    %s19 = sphi 0, %s26
    %s20 = sphi 0, %s18
    %s21 = sphi 0, %s19
    %s22 = sphi 0, %s20
    %s23 = sphi 0, %s21
    %s35 = sphi 0, %s37
    %s38 = sphi 0, %s35
    %s39 = sphi 0, %s38
    %s55 = sphi 0, %s39
    %s63 = sphi 0, %s65
    %s66 = sphi 0, %s63
    %s67 = sphi 0, %s66
    %s83 = sphi 0, %s67
    %s87 = sphi 0, %s87
    %s89 = sphi 0, %s87
    %s90 = sphi 0, %s89
    %s104 = sphi 0, %s90
    %s108 = sphi 0, %s108
    %s110 = sphi 0, %s108
    %s111 = sphi 0, %s110
    %s125 = sphi 0, %s111
    %s129 = sphi 0, %s129
    %s131 = sphi 0, %s129
    %s132 = sphi 0, %s131
    %s146 = sphi 0, %s132
    %s154 = sphi 0, %s156
    %s157 = sphi 0, %s154
    %s158 = sphi 0, %s157
    %s174 = sphi 0, %s158
  $region4: #{c3_forward.9} parent=0 // loop_header_branch
    %14 = sbr.rel (%p12) target = $region8
  $region5: #{c3_forward.9} parent=0 // loop_body
    %s16 = ssub.s32 %s11, 1
    %s17 = ssub.s32 %s11, 2
    %s24 = sadd.s32 1, %s19
    %p25 = scmp.ge.s32.totalorder %s24, 2
    %s26 = scalar_select %p25, 0, %s24
    %s27 = sadd.s32 1, %s18
    %s28 = scalar_select %p25, %s27, %s18
    %p29 = scmp.ge.s32.totalorder %s28, 2
    %s30 = scalar_select %p29, 0, %s28
    %s31 = ssub.s32 %s18, %s30
    %s32 = ssub.s32 %s19, %s26
    %s33 = sor.u32 %s31, %s32
    %p34 = scmp.eq.s32.totalorder %s33, 0
    %s36 = sadd.s32 %s35, 1
    %s37 = scalar_select %p34, %s35, %s36
    %p40 = pneg %p34
    %p41 = scmp.eq.s32.totalorder %s11, 3
    %p42 = por %p40, %p41
    %p43 = scmp.ne.s32.totalorder %s35, %s38
    %p44 = scmp.eq.s32.totalorder %s11, 0
    %p45 = por %p43, %p44
    %p46 = scmp.ne.s32.totalorder %s35, %s38
    %p47 = scmp.eq.s32.totalorder %s16, 3
    %p48 = por %p46, %p47
    %p49 = scmp.ne.s32.totalorder %s38, %s39
    %p50 = scmp.eq.s32.totalorder %s16, 0
    %p51 = por %p49, %p50
    %p52 = scmp.ne.s32.totalorder %s38, %s39
    %p53 = scmp.eq.s32.totalorder %s17, 3
    %p54 = por %p52, %p53
    %p56 = scmp.ne.s32.totalorder %s39, %s55
    %p57 = scmp.eq.s32.totalorder %s17, 0
    %p58 = por %p56, %p57
    %s59 = ssub.s32 %s18, %s30
    %s60 = ssub.s32 %s19, %s26
    %s61 = sor.u32 %s59, %s60
    %p62 = scmp.eq.s32.totalorder %s61, 0
    %s64 = sadd.s32 %s63, 1
    %s65 = scalar_select %p62, %s63, %s64
    %p68 = pneg %p62
    %p69 = scmp.eq.s32.totalorder %s11, 3
    %p70 = por %p68, %p69
    %p71 = scmp.ne.s32.totalorder %s63, %s66
    %p72 = scmp.eq.s32.totalorder %s11, 0
    %p73 = por %p71, %p72
    %p74 = scmp.ne.s32.totalorder %s63, %s66
    %p75 = scmp.eq.s32.totalorder %s16, 3
    %p76 = por %p74, %p75
    %p77 = scmp.ne.s32.totalorder %s66, %s67
    %p78 = scmp.eq.s32.totalorder %s16, 0
    %p79 = por %p77, %p78
    %p80 = scmp.ne.s32.totalorder %s66, %s67
    %p81 = scmp.eq.s32.totalorder %s17, 3
    %p82 = por %p80, %p81
    %p84 = scmp.ne.s32.totalorder %s67, %s83
    %p85 = scmp.eq.s32.totalorder %s17, 0
    %p86 = por %p84, %p85
    %s88 = sadd.s32 %s87, 1
    %p91 = scmp.eq.s32.totalorder %s11, 3
    %p92 = scmp.ne.s32.totalorder %s87, %s89
    %p93 = scmp.eq.s32.totalorder %s11, 0
    %p94 = por %p92, %p93
    %p95 = scmp.ne.s32.totalorder %s87, %s89
    %p96 = scmp.eq.s32.totalorder %s16, 3
    %p97 = por %p95, %p96
    %p98 = scmp.ne.s32.totalorder %s89, %s90
    %p99 = scmp.eq.s32.totalorder %s16, 0
    %p100 = por %p98, %p99
    %p101 = scmp.ne.s32.totalorder %s89, %s90
    %p102 = scmp.eq.s32.totalorder %s17, 3
    %p103 = por %p101, %p102
    %p105 = scmp.ne.s32.totalorder %s90, %s104
    %p106 = scmp.eq.s32.totalorder %s17, 0
    %p107 = por %p105, %p106
    %s109 = sadd.s32 %s108, 1
    %p112 = scmp.eq.s32.totalorder %s11, 3
    %p113 = scmp.ne.s32.totalorder %s108, %s110
    %p114 = scmp.eq.s32.totalorder %s11, 0
    %p115 = por %p113, %p114
    %p116 = scmp.ne.s32.totalorder %s108, %s110
    %p117 = scmp.eq.s32.totalorder %s16, 3
    %p118 = por %p116, %p117
    %p119 = scmp.ne.s32.totalorder %s110, %s111
    %p120 = scmp.eq.s32.totalorder %s16, 0
    %p121 = por %p119, %p120
    %p122 = scmp.ne.s32.totalorder %s110, %s111
    %p123 = scmp.eq.s32.totalorder %s17, 3
    %p124 = por %p122, %p123
    %p126 = scmp.ne.s32.totalorder %s111, %s125
    %p127 = scmp.eq.s32.totalorder %s17, 0
    %p128 = por %p126, %p127
    %s130 = sadd.s32 %s129, 1
    %p133 = scmp.eq.s32.totalorder %s11, 3
    %p134 = scmp.ne.s32.totalorder %s129, %s131
    %p135 = scmp.eq.s32.totalorder %s11, 0
    %p136 = por %p134, %p135
    %p137 = scmp.ne.s32.totalorder %s129, %s131
    %p138 = scmp.eq.s32.totalorder %s16, 3
    %p139 = por %p137, %p138
    %p140 = scmp.ne.s32.totalorder %s131, %s132
    %p141 = scmp.eq.s32.totalorder %s16, 0
    %p142 = por %p140, %p141
    %p143 = scmp.ne.s32.totalorder %s131, %s132
    %p144 = scmp.eq.s32.totalorder %s17, 3
    %p145 = por %p143, %p144
    %p147 = scmp.ne.s32.totalorder %s132, %s146
    %p148 = scmp.eq.s32.totalorder %s17, 0
    %p149 = por %p147, %p148
    %s150 = ssub.s32 %s18, %s30
    %s151 = ssub.s32 %s19, %s26
    %s152 = sor.u32 %s150, %s151
    %p153 = scmp.eq.s32.totalorder %s152, 0
    %s155 = sadd.s32 %s154, 1
    %s156 = scalar_select %p153, %s154, %s155
    %p159 = pneg %p153
    %p160 = scmp.eq.s32.totalorder %s11, 3
    %p161 = por %p159, %p160
    %p162 = scmp.ne.s32.totalorder %s154, %s157
    %p163 = scmp.eq.s32.totalorder %s11, 0
    %p164 = por %p162, %p163
    %p165 = scmp.ne.s32.totalorder %s154, %s157
    %p166 = scmp.eq.s32.totalorder %s16, 3
    %p167 = por %p165, %p166
    %p168 = scmp.ne.s32.totalorder %s157, %s158
    %p169 = scmp.eq.s32.totalorder %s16, 0
    %p170 = por %p168, %p169
    %p171 = scmp.ne.s32.totalorder %s157, %s158
    %p172 = scmp.eq.s32.totalorder %s17, 3
    %p173 = por %p171, %p172
    %p175 = scmp.ne.s32.totalorder %s158, %s174
    %p176 = scmp.eq.s32.totalorder %s17, 0
    %p177 = por %p175, %p176
    %p178 = scmp.le.s32.totalorder 1, %s11
    %p179 = scmp.lt.s32.totalorder %s11, 5
    %p180 = pnand %p178, %p179
    %p181 = pneg %p180
    // Predicated region
    $region9: #{c3_forward.9} parent=5 // pred_check
      _
    $region10: #{c3_forward.9} parent=5 // pred_check_branch
      %183 = sbr.rel (%p180) target = $region12
    $region11: #{c3_forward.9} parent=5 // pred_region
      %s184 = ssub.s32 %s11, 1
      // Predicated region
      $region13: #{c3_forward.9} parent=11 // pred_check
        %p185 = pneg %p100
      $region14: #{c3_forward.9} parent=11 // pred_check_branch
        %187 = sbr.rel (%p185) target = $region16
      $region15: #{c3_forward.9} parent=11 // pred_region
        _
      $region16: #{c3_forward.9} parent=11 // pred_fallthru
        _
      // Predicated region
      $region17: #{c3_forward.9} parent=11 // pred_check
        %p188 = pneg %p121
      $region18: #{c3_forward.9} parent=11 // pred_check_branch
        %190 = sbr.rel (%p188) target = $region20
      $region19: #{c3_forward.9} parent=11 // pred_region
        _
      $region20: #{c3_forward.9} parent=11 // pred_fallthru
        _
      // Predicated region
      $region21: #{c3_forward.9} parent=11 // pred_check
        %p191 = pneg %p142
      $region22: #{c3_forward.9} parent=11 // pred_check_branch
        %193 = sbr.rel (%p191) target = $region24
      $region23: #{c3_forward.9} parent=11 // pred_region
        _
      $region24: #{c3_forward.9} parent=11 // pred_fallthru
        _
    $region12: #{c3_forward.9} parent=5 // pred_fallthru
      _
    %p194 = scmp.lt.s32.totalorder %s11, 4
    // Predicated region
    $region25: #{c3_forward.9} parent=5 // pred_check
      %p195 = pneg %p194
    $region26: #{c3_forward.9} parent=5 // pred_check_branch
      %197 = sbr.rel (%p195) target = $region28
    $region27: #{c3_forward.9} parent=5 // pred_region
      // Predicated region
      $region29: #{c3_forward.9} parent=27 // pred_check
        %p198 = pneg %p45
      $region30: #{c3_forward.9} parent=27 // pred_check_branch
        %200 = sbr.rel (%p198) target = $region32
      $region31: #{c3_forward.9} parent=27 // pred_region
        %s201 = smul.u32 16, %s19
        %p202 = scmp.lt.s32.totalorder %s18, 1
        %s203 = scalar_select %p202, %s18, 1
        %p204 = scmp.lt.s32.totalorder %s201, 31
        %s205 = scalar_select %p204, %s201, 31
        %s206 = smul.addr %s203, 32
        %s207 = sadd.s32 %s205, %s206
        %s208 = smul.addr %s207, 4
        %s209 = scalar_lea.vmem %s0, %s208
        %s210 = smul.u32 16, %s19
      $region32: #{c3_forward.9} parent=27 // pred_fallthru
        _
      // Predicated region
      $region33: #{c3_forward.9} parent=27 // pred_check
        %p211 = pneg %p73
      $region34: #{c3_forward.9} parent=27 // pred_check_branch
        %213 = sbr.rel (%p211) target = $region36
      $region35: #{c3_forward.9} parent=27 // pred_region
        %s214 = smul.u32 16, %s19
        %p215 = scmp.lt.s32.totalorder %s18, 1
        %s216 = scalar_select %p215, %s18, 1
        %p217 = scmp.lt.s32.totalorder %s214, 31
        %s218 = scalar_select %p217, %s214, 31
        %s219 = smul.addr %s216, 32
        %s220 = sadd.s32 %s218, %s219
        %s221 = smul.addr %s220, 4
        %s222 = scalar_lea.vmem %s1, %s221
        %s223 = smul.u32 16, %s19
      $region36: #{c3_forward.9} parent=27 // pred_fallthru
        _
    $region28: #{c3_forward.9} parent=5 // pred_fallthru
      _
    %p224 = scmp.le.s32.totalorder 1, %s11
    %p225 = scmp.lt.s32.totalorder %s11, 5
    %p226 = pnand %p224, %p225
    %p227 = pneg %p226
    // Predicated region
    $region37: #{c3_forward.9} parent=5 // pred_check
      _
    $region38: #{c3_forward.9} parent=5 // pred_check_branch
      %229 = sbr.rel (%p226) target = $region40
    $region39: #{c3_forward.9} parent=5 // pred_region
      %s230 = ssub.s32 %s11, 1
      %s231 = smul.u32 16, %s21
      %p232 = scmp.lt.s32.totalorder %s20, 1
      %s233 = scalar_select %p232, %s20, 1
      %p234 = scmp.lt.s32.totalorder %s231, 31
      %s235 = scalar_select %p234, %s231, 31
      %s236 = smul.addr %s233, 32
      %s237 = sadd.s32 %s235, %s236
      %s238 = smul.addr %s237, 4
      %s239 = scalar_lea.vmem %s0, %s238
      %p240 = pneg %p51
      %p241 = pneg %p48
      %s242 = smul.u32 16, %s21
      %p243 = scmp.lt.s32.totalorder %s20, 1
      %s244 = scalar_select %p243, %s20, 1
      %p245 = scmp.lt.s32.totalorder %s242, 31
      %s246 = scalar_select %p245, %s242, 31
      %s247 = smul.addr %s244, 32
      %s248 = sadd.s32 %s246, %s247
      %s249 = smul.addr %s248, 4
      %s250 = scalar_lea.vmem %s1, %s249
      %p251 = pneg %p79
      %p252 = pneg %p76
      %p253 = pneg %p100
      %p254 = pneg %p97
      %p255 = pneg %p121
      %p256 = pneg %p118
      %p257 = pneg %p142
      %p258 = pneg %p139
      %p259 = pneg %p170
      %p260 = pneg %p167
      %p261 = scmp.lt.s32.totalorder %s20, 1
      %s262 = scalar_select %p261, %s20, 1
      %p263 = scmp.lt.s32.totalorder %s21, 1
      %s264 = scalar_select %p263, %s21, 1
      %s265 = smul.addr %s262, 2
      %s266 = sadd.s32 %s264, %s265
      %s267 = smul.addr %s266, 4
      %s268 = scalar_lea.vmem %s5, %s267
      %s269 = smul.u32 16, %s21
      %p270 = scmp.lt.s32.totalorder %s20, 1
      %s271 = scalar_select %p270, %s20, 1
      %p272 = scmp.lt.s32.totalorder %s269, 31
      %s273 = scalar_select %p272, %s269, 31
      %s274 = smul.addr %s271, 32
      %s275 = sadd.s32 %s273, %s274
      %s276 = smul.addr %s275, 4
      %s277 = scalar_lea.vmem %s0, %s276
      %s278 = smul.u32 16, %s21
      %s279 = smul.u32 16, %s21
      %p280 = scmp.lt.s32.totalorder %s20, 1
      %s281 = scalar_select %p280, %s20, 1
      %p282 = scmp.lt.s32.totalorder %s279, 31
      %s283 = scalar_select %p282, %s279, 31
      %s284 = smul.addr %s281, 32
      %s285 = sadd.s32 %s283, %s284
      %s286 = smul.addr %s285, 4
      %s287 = scalar_lea.vmem %s1, %s286
      %s288 = smul.u32 16, %s21
      %p289 = scmp.lt.s32.totalorder %s20, 1
      %s290 = scalar_select %p289, %s20, 1
      %p291 = scmp.lt.s32.totalorder %s21, 1
      %s292 = scalar_select %p291, %s21, 1
      %s293 = smul.addr %s290, 2
      %s294 = sadd.s32 %s292, %s293
      %s295 = smul.addr %s294, 4
      %s296 = scalar_lea.vmem %s5, %s295
      %v298 = vld [vmem:[%s2] sm:$0x3]
      %v299 = vld [vmem:[%s277] sm:$0xf]
      %v300 = vld [vmem:[%s277 + $0x4] sm:$0xf]
      %v301 = vld [vmem:[%s277 + $0x8] sm:$0xf]
      %v302 = vld [vmem:[%s277 + $0xc] sm:$0xf]
      %v303 = vld [vmem:[%s277 + $0x10] sm:$0xf]
      %v304 = vld [vmem:[%s277 + $0x14] sm:$0xf]
      %v305 = vld [vmem:[%s277 + $0x18] sm:$0xf]
      %v306 = vld [vmem:[%s277 + $0x1c] sm:$0xf]
      %v307 = vld [vmem:[%s277 + $0x20] sm:$0xf]
      %v308 = vld [vmem:[%s277 + $0x24] sm:$0xf]
      %v309 = vld [vmem:[%s277 + $0x28] sm:$0xf]
      %v310 = vld [vmem:[%s277 + $0x2c] sm:$0xf]
      %v311 = vld [vmem:[%s277 + $0x30] sm:$0xf]
      %v312 = vld [vmem:[%s277 + $0x34] sm:$0xf]
      %v313 = vld [vmem:[%s277 + $0x38] sm:$0xf]
      %v314 = vld [vmem:[%s277 + $0x3c] sm:$0xf]
      %v315 = vld [vmem:[%s3] sm:$0x3]
      %v316 = vld [vmem:[%s287] sm:$0xf]
      %v317 = vld [vmem:[%s287 + $0x4] sm:$0xf]
      %v318 = vld [vmem:[%s287 + $0x8] sm:$0xf]
      %v319 = vld [vmem:[%s287 + $0xc] sm:$0xf]
      %v320 = vld [vmem:[%s287 + $0x10] sm:$0xf]
      %v321 = vld [vmem:[%s287 + $0x14] sm:$0xf]
      %v322 = vld [vmem:[%s287 + $0x18] sm:$0xf]
      %v323 = vld [vmem:[%s287 + $0x1c] sm:$0xf]
      %v324 = vld [vmem:[%s287 + $0x20] sm:$0xf]
      %v325 = vld [vmem:[%s287 + $0x24] sm:$0xf]
      %v326 = vld [vmem:[%s287 + $0x28] sm:$0xf]
      %v327 = vld [vmem:[%s287 + $0x2c] sm:$0xf]
      %v328 = vld [vmem:[%s287 + $0x30] sm:$0xf]
      %v329 = vld [vmem:[%s287 + $0x34] sm:$0xf]
      %v330 = vld [vmem:[%s287 + $0x38] sm:$0xf]
      %v331 = vld [vmem:[%s287 + $0x3c] sm:$0xf]
      %v348 = vunpack.c.l.b16 %v316
      %v349 = vunpack.c.l.b16 %v317
      %v350 = vunpack.c.l.b16 %v318
      %v351 = vunpack.c.l.b16 %v319
      %v352 = vunpack.c.l.b16 %v320
      %v353 = vunpack.c.l.b16 %v321
      %v354 = vunpack.c.l.b16 %v322
      %v355 = vunpack.c.l.b16 %v323
      %v356 = vunpack.c.l.b16 %v324
      %v357 = vunpack.c.l.b16 %v325
      %v358 = vunpack.c.l.b16 %v326
      %v359 = vunpack.c.l.b16 %v327
      %v360 = vunpack.c.l.b16 %v328
      %v361 = vunpack.c.l.b16 %v329
      %v362 = vunpack.c.l.b16 %v330
      %v363 = vunpack.c.l.b16 %v331
      %v364 = vpack.c.b16 %v349, %v348
      %v365 = vpack.c.b16 %v351, %v350
      %v366 = vpack.c.b16 %v353, %v352
      %v367 = vpack.c.b16 %v355, %v354
      %v368 = vpack.c.b16 %v357, %v356
      %v369 = vpack.c.b16 %v359, %v358
      %v370 = vpack.c.b16 %v361, %v360
      %v371 = vpack.c.b16 %v363, %v362
      %vm372 = vcmask 15360
      %v374 = vsel %vm372, %v315, 0
      %v377 = vsel %vm372, %v364, 0
      %v380 = vsel %vm372, %v365, 0
      %v383 = vsel %vm372, %v366, 0
      %v386 = vsel %vm372, %v367, 0
      %v389 = vsel %vm372, %v368, 0
      %v392 = vsel %vm372, %v369, 0
      %v395 = vsel %vm372, %v370, 0
      %v398 = vsel %vm372, %v371, 0
      %400 = vmatprep.subr.bf16.mxu0 0
      %401 = vmatpush1.bf16.xpose.msra.mxu0 %v398
      %402 = vmatprep.subr.bf16.mxu0 0
      %403 = vmatpush1.bf16.xpose.msra.mxu0 %v395
      %404 = vmatprep.subr.bf16.mxu0 0
      %405 = vmatpush1.bf16.xpose.msra.mxu0 %v392
      %406 = vmatprep.subr.bf16.mxu0 0
      %407 = vmatpush1.bf16.xpose.msra.mxu0 %v389
      %408 = vmatprep.subr.bf16.mxu0 0
      %409 = vmatpush1.bf16.xpose.msra.mxu0 %v386
      %410 = vmatprep.subr.bf16.mxu0 0
      %411 = vmatpush1.bf16.xpose.msra.mxu0 %v383
      %412 = vmatprep.subr.bf16.mxu0 0
      %413 = vmatpush1.bf16.xpose.msra.mxu0 %v380
      %414 = vmatprep.subr.bf16.mxu0 0
      %415 = vmatpush1.bf16.xpose.msra.mxu0 %v377
      %416 = vmatprep.subr.bf16.mxu0 0
      %417 = vmatpush2.bf16.xpose.msra.mxu0 0
      %418 = vmatprep.subr.bf16.mxu0 0
      %419 = vmatpush2.bf16.xpose.msra.mxu0 0
      %420 = vmatprep.subr.bf16.mxu0 0
      %421 = vmatpush2.bf16.xpose.msra.mxu0 0
      %422 = vmatprep.subr.bf16.mxu0 0
      %423 = vmatpush2.bf16.xpose.msra.mxu0 0
      %424 = vmatprep.subr.bf16.mxu0 0
      %425 = vmatpush2.bf16.xpose.msra.mxu0 0
      %426 = vmatprep.subr.bf16.mxu0 0
      %427 = vmatpush2.bf16.xpose.msra.mxu0 0
      %428 = vmatprep.subr.bf16.mxu0 0
      %429 = vmatpush2.bf16.xpose.msra.mxu0 0
      %430 = vmatprep.subr.bf16.mxu0 0
      %431 = vmatpush2.bf16.xpose.msra.mxu0 0
      %432 = vmatprep.mubr.bf16.mxu0 0
      %433 = vmatmul.mubr.bf16.gmra.mxu0 %v374
      %v434 = vpop.f32.mrf.mxu0
      %v435 = vadd.f32 0.0, %v434
      %v436 = vpop.f32.mrf.mxu0
      %v437 = vpop.f32.mrf.mxu0
      %v438 = vpop.f32.mrf.mxu0
      %439 = vdwg.mxu0
      %v456 = vunpack.c.l.b16 %v299
      %v457 = vunpack.c.l.b16 %v300
      %v458 = vunpack.c.l.b16 %v301
      %v459 = vunpack.c.l.b16 %v302
      %v460 = vunpack.c.l.b16 %v303
      %v461 = vunpack.c.l.b16 %v304
      %v462 = vunpack.c.l.b16 %v305
      %v463 = vunpack.c.l.b16 %v306
      %v464 = vunpack.c.l.b16 %v307
      %v465 = vunpack.c.l.b16 %v308
      %v466 = vunpack.c.l.b16 %v309
      %v467 = vunpack.c.l.b16 %v310
      %v468 = vunpack.c.l.b16 %v311
      %v469 = vunpack.c.l.b16 %v312
      %v470 = vunpack.c.l.b16 %v313
      %v471 = vunpack.c.l.b16 %v314
      %v472 = vpack.c.b16 %v457, %v456
      %v473 = vpack.c.b16 %v459, %v458
      %v474 = vpack.c.b16 %v461, %v460
      %v475 = vpack.c.b16 %v463, %v462
      %v476 = vpack.c.b16 %v465, %v464
      %v477 = vpack.c.b16 %v467, %v466
      %v478 = vpack.c.b16 %v469, %v468
      %v479 = vpack.c.b16 %v471, %v470
      %v481 = vsel %vm372, %v298, 0
      %v484 = vsel %vm372, %v472, 0
      %v487 = vsel %vm372, %v473, 0
      %v490 = vsel %vm372, %v474, 0
      %v493 = vsel %vm372, %v475, 0
      %v496 = vsel %vm372, %v476, 0
      %v499 = vsel %vm372, %v477, 0
      %v502 = vsel %vm372, %v478, 0
      %v505 = vsel %vm372, %v479, 0
      %507 = vmatprep.subr.bf16.mxu0 0
      %508 = vmatpush1.bf16.xpose.msra.mxu0 %v505
      %509 = vmatprep.subr.bf16.mxu0 0
      %510 = vmatpush1.bf16.xpose.msra.mxu0 %v502
      %511 = vmatprep.subr.bf16.mxu0 0
      %512 = vmatpush1.bf16.xpose.msra.mxu0 %v499
      %513 = vmatprep.subr.bf16.mxu0 0
      %514 = vmatpush1.bf16.xpose.msra.mxu0 %v496
      %515 = vmatprep.subr.bf16.mxu0 0
      %516 = vmatpush1.bf16.xpose.msra.mxu0 %v493
      %517 = vmatprep.subr.bf16.mxu0 0
      %518 = vmatpush1.bf16.xpose.msra.mxu0 %v490
      %519 = vmatprep.subr.bf16.mxu0 0
      %520 = vmatpush1.bf16.xpose.msra.mxu0 %v487
      %521 = vmatprep.subr.bf16.mxu0 0
      %522 = vmatpush1.bf16.xpose.msra.mxu0 %v484
      %523 = vmatprep.subr.bf16.mxu0 0
      %524 = vmatpush2.bf16.xpose.msra.mxu0 0
      %525 = vmatprep.subr.bf16.mxu0 0
      %526 = vmatpush2.bf16.xpose.msra.mxu0 0
      %527 = vmatprep.subr.bf16.mxu0 0
      %528 = vmatpush2.bf16.xpose.msra.mxu0 0
      %529 = vmatprep.subr.bf16.mxu0 0
      %530 = vmatpush2.bf16.xpose.msra.mxu0 0
      %531 = vmatprep.subr.bf16.mxu0 0
      %532 = vmatpush2.bf16.xpose.msra.mxu0 0
      %533 = vmatprep.subr.bf16.mxu0 0
      %534 = vmatpush2.bf16.xpose.msra.mxu0 0
      %535 = vmatprep.subr.bf16.mxu0 0
      %536 = vmatpush2.bf16.xpose.msra.mxu0 0
      %537 = vmatprep.subr.bf16.mxu0 0
      %538 = vmatpush2.bf16.xpose.msra.mxu0 0
      %539 = vmatprep.mubr.bf16.mxu0 0
      %540 = vmatmul.mubr.bf16.gmra.mxu0 %v481
      %v541 = vpop.f32.mrf.mxu0
      %v542 = vadd.f32 %v435, %v541
      %v543 = vpop.f32.mrf.mxu0
      %v544 = vpop.f32.mrf.mxu0
      %v545 = vpop.f32.mrf.mxu0
      %546 = vdwg.mxu0
      %v547 = vld [vmem:[%s4] sm:$0xf]
      %549 = vset.pattern.permute.xlu0 0
      %550 = vperm.xlu0 %549, %v547
      %v551 = vpop.permute.xlu0 %550
      %v553 = vadd.f32 %v542, %v551
      %v554 = vsub.f32 0.0, %v553
      %v555 = vmul.f32 %v554, 1.442695
      %v556 = vpow.pop %v555
      %v557 = vadd.f32 %v556, 1.0
      %v558 = vrcp.pop %v557
      %v559 = vmul.f32 %v553, %v558
      %560 = vst [vmem:[%s296] sm:$0xf] %v559
      %p561 = scmp.lt.s32.totalorder %s20, 1
      %s562 = scalar_select %p561, %s20, 1
      %p563 = scmp.lt.s32.totalorder %s21, 1
      %s564 = scalar_select %p563, %s21, 1
      %s565 = smul.addr %s562, 2
      %s566 = sadd.s32 %s564, %s565
      %s567 = smul.addr %s566, 4
      %s568 = scalar_lea.vmem %s5, %s567
      // Predicated region
      $region41: #{c3_forward.9} parent=39 // pred_check
        %p569 = pneg %p167
      $region42: #{c3_forward.9} parent=39 // pred_check_branch
        %571 = sbr.rel (%p569) target = $region44
      $region43: #{c3_forward.9} parent=39 // pred_region
        _
      $region44: #{c3_forward.9} parent=39 // pred_fallthru
        _
    $region40: #{c3_forward.9} parent=5 // pred_fallthru
      _
    %p572 = scmp.le.s32.totalorder 2, %s11
    // Predicated region
    $region45: #{c3_forward.9} parent=5 // pred_check
      %p573 = pneg %p572
    $region46: #{c3_forward.9} parent=5 // pred_check_branch
      %575 = sbr.rel (%p573) target = $region48
    $region47: #{c3_forward.9} parent=5 // pred_region
      %s576 = ssub.s32 %s11, 2
      // Predicated region
      $region49: #{c3_forward.9} parent=47 // pred_check
        %p577 = pneg %p173
      $region50: #{c3_forward.9} parent=47 // pred_check_branch
        %579 = sbr.rel (%p577) target = $region52
      $region51: #{c3_forward.9} parent=47 // pred_region
        %p580 = scmp.lt.s32.totalorder %s22, 1
        %s581 = scalar_select %p580, %s22, 1
        %p582 = scmp.lt.s32.totalorder %s23, 1
        %s583 = scalar_select %p582, %s23, 1
        %s584 = smul.addr %s581, 2
        %s585 = sadd.s32 %s583, %s584
        %s586 = smul.addr %s585, 4
        %s587 = scalar_lea.vmem %s5, %s586
      $region52: #{c3_forward.9} parent=47 // pred_fallthru
        _
    $region48: #{c3_forward.9} parent=5 // pred_fallthru
      _
  $region6: #{c3_forward.9} parent=0 // loop_footer
    %s15 = sadd.s32 1, %s11
  $region7: #{c3_forward.9} parent=0 // loop_footer_branch
    %10 = sbr.rel target = $region3
  $region8: #{c3_forward.9} parent=0 // loop_exit
    _

// kernel: c3_forward.8
$region0: #{c3_forward.8}
  #allocation0 [shape = 'u32[]', space=smem, size = 0x4, offset = 0x4, fixed_abs, tag = 'smem constant byte address 0x4 - core index']
  #allocation1 [shape = 'u32[144,128]{1,0:T(1,128)}', space=vmem, size = 0x12000, scoped, tag = 'internal scratch']
  #allocation2 [shape = 'bf16[10,18,2]{2,1,0:T(8,128)(2,1)}', space=vmem, size = 0xf000, scoped, tag = 'scratch operand']
  %s0 = inlined_call_operand.vmem [shape: bf16[2,16,16,2], index: 0, kind: input, shape index: {}, may-alias: {0,1,2}]
  %s1 = inlined_call_operand.vmem [shape: bf16[2,16,16,2], index: 1, kind: input, shape index: {}, may-alias: {0,1,2}]
  %s2 = inlined_call_operand.vmem [shape: bf16[2,16,16,2], index: 2, kind: input, shape index: {}, may-alias: {0,1,2}]
  %s3 = inlined_call_operand.vmem [shape: bf16[18,2], index: 3, kind: input, shape index: {}]
  %s4 = inlined_call_operand.vmem [shape: f32[1,2], index: 4, kind: input, shape index: {}]
  %s5 = inlined_call_operand.vmem [shape: bf16[2,16,16,2], index: 5, kind: input, shape index: {}]
  %s6 = inlined_call_operand.vmem [shape: bf16[2,16,16,2], index: 6, kind: output, shape index: {}]
  %s7 = sld [smem:[#allocation0]]
  $region65: #{c3_forward.8} parent=0
    _
  %s9 = ssub.s32 1, %s7
  %s10 = scalar_select 0, %s9, %s7
  loop: start=0, step=1, limit=6
  $region2: #{c3_forward.8} parent=0 // loop_pre_header
    _
  $region3: #{c3_forward.8} parent=0 // loop_header
    %s12 = sphi 0, %s16
    %p13 = scmp.ge.s32.totalorder %s12, 6
    %s19 = sphi 0, %s31
    %s20 = sphi 0, %s27
    %s21 = sphi 0, %s19
    %s22 = sphi 0, %s20
    %s23 = sphi 0, %s21
    %s24 = sphi 0, %s22
    %s44 = sphi 0, %s46
    %s47 = sphi 0, %s44
    %s48 = sphi 0, %s47
    %s64 = sphi 0, %s48
    %s72 = sphi 0, %s74
    %s75 = sphi 0, %s72
    %s76 = sphi 0, %s75
    %s92 = sphi 0, %s76
    %s108 = sphi 0, %s110
    %s111 = sphi 0, %s108
    %s112 = sphi 0, %s111
    %s128 = sphi 0, %s112
    %s132 = sphi 0, %s132
    %s134 = sphi 0, %s132
    %s135 = sphi 0, %s134
    %s149 = sphi 0, %s135
    %s153 = sphi 0, %s153
    %s155 = sphi 0, %s153
    %s156 = sphi 0, %s155
    %s170 = sphi 0, %s156
    %s178 = sphi 0, %s180
    %s181 = sphi 0, %s178
    %s182 = sphi 0, %s181
    %s198 = sphi 0, %s182
    %s206 = sphi 0, %s208
    %s209 = sphi 0, %s206
    %s210 = sphi 0, %s209
    %s226 = sphi 0, %s210
  $region4: #{c3_forward.8} parent=0 // loop_header_branch
    %15 = sbr.rel (%p13) target = $region8
  $region5: #{c3_forward.8} parent=0 // loop_body
    %s17 = ssub.s32 %s12, 1
    %s18 = ssub.s32 %s12, 2
    %s25 = sadd.s32 1, %s20
    %p26 = scmp.ge.s32.totalorder %s25, 2
    %s27 = scalar_select %p26, 0, %s25
    %s28 = sadd.s32 1, %s19
    %s29 = scalar_select %p26, %s28, %s19
    %p30 = scmp.ge.s32.totalorder %s29, 2
    %s31 = scalar_select %p30, 0, %s29
    %s32 = smul.u32 %s20, 8
    %s33 = ssub.s32 %s32, 1
    %p34 = scmp.gt.s32.totalorder %s33, 0
    %s35 = scalar_select %p34, %s33, 0
    %s36 = smul.u32 %s27, 8
    %s37 = ssub.s32 %s36, 1
    %p38 = scmp.gt.s32.totalorder %s37, 0
    %s39 = scalar_select %p38, %s37, 0
    %s40 = ssub.s32 %s19, %s31
    %s41 = ssub.s32 %s35, %s39
    %s42 = sor.u32 %s40, %s41
    %p43 = scmp.eq.s32.totalorder %s42, 0
    %s45 = sadd.s32 %s44, 1
    %s46 = scalar_select %p43, %s44, %s45
    %p49 = pneg %p43
    %p50 = scmp.eq.s32.totalorder %s12, 3
    %p51 = por %p49, %p50
    %p52 = scmp.ne.s32.totalorder %s44, %s47
    %p53 = scmp.eq.s32.totalorder %s12, 0
    %p54 = por %p52, %p53
    %p55 = scmp.ne.s32.totalorder %s44, %s47
    %p56 = scmp.eq.s32.totalorder %s17, 3
    %p57 = por %p55, %p56
    %p58 = scmp.ne.s32.totalorder %s47, %s48
    %p59 = scmp.eq.s32.totalorder %s17, 0
    %p60 = por %p58, %p59
    %p61 = scmp.ne.s32.totalorder %s47, %s48
    %p62 = scmp.eq.s32.totalorder %s18, 3
    %p63 = por %p61, %p62
    %p65 = scmp.ne.s32.totalorder %s48, %s64
    %p66 = scmp.eq.s32.totalorder %s18, 0
    %p67 = por %p65, %p66
    %s68 = ssub.s32 %s19, %s31
    %s69 = ssub.s32 %s20, %s27
    %s70 = sor.u32 %s68, %s69
    %p71 = scmp.eq.s32.totalorder %s70, 0
    %s73 = sadd.s32 %s72, 1
    %s74 = scalar_select %p71, %s72, %s73
    %p77 = pneg %p71
    %p78 = scmp.eq.s32.totalorder %s12, 3
    %p79 = por %p77, %p78
    %p80 = scmp.ne.s32.totalorder %s72, %s75
    %p81 = scmp.eq.s32.totalorder %s12, 0
    %p82 = por %p80, %p81
    %p83 = scmp.ne.s32.totalorder %s72, %s75
    %p84 = scmp.eq.s32.totalorder %s17, 3
    %p85 = por %p83, %p84
    %p86 = scmp.ne.s32.totalorder %s75, %s76
    %p87 = scmp.eq.s32.totalorder %s17, 0
    %p88 = por %p86, %p87
    %p89 = scmp.ne.s32.totalorder %s75, %s76
    %p90 = scmp.eq.s32.totalorder %s18, 3
    %p91 = por %p89, %p90
    %p93 = scmp.ne.s32.totalorder %s76, %s92
    %p94 = scmp.eq.s32.totalorder %s18, 0
    %p95 = por %p93, %p94
    %s96 = smul.u32 %s20, 8
    %s97 = sadd.s32 %s96, 8
    %p98 = scmp.lt.s32.totalorder %s97, 15
    %s99 = scalar_select %p98, %s97, 15
    %s100 = smul.u32 %s27, 8
    %s101 = sadd.s32 %s100, 8
    %p102 = scmp.lt.s32.totalorder %s101, 15
    %s103 = scalar_select %p102, %s101, 15
    %s104 = ssub.s32 %s19, %s31
    %s105 = ssub.s32 %s99, %s103
    %s106 = sor.u32 %s104, %s105
    %p107 = scmp.eq.s32.totalorder %s106, 0
    %s109 = sadd.s32 %s108, 1
    %s110 = scalar_select %p107, %s108, %s109
    %p113 = pneg %p107
    %p114 = scmp.eq.s32.totalorder %s12, 3
    %p115 = por %p113, %p114
    %p116 = scmp.ne.s32.totalorder %s108, %s111
    %p117 = scmp.eq.s32.totalorder %s12, 0
    %p118 = por %p116, %p117
    %p119 = scmp.ne.s32.totalorder %s108, %s111
    %p120 = scmp.eq.s32.totalorder %s17, 3
    %p121 = por %p119, %p120
    %p122 = scmp.ne.s32.totalorder %s111, %s112
    %p123 = scmp.eq.s32.totalorder %s17, 0
    %p124 = por %p122, %p123
    %p125 = scmp.ne.s32.totalorder %s111, %s112
    %p126 = scmp.eq.s32.totalorder %s18, 3
    %p127 = por %p125, %p126
    %p129 = scmp.ne.s32.totalorder %s112, %s128
    %p130 = scmp.eq.s32.totalorder %s18, 0
    %p131 = por %p129, %p130
    %s133 = sadd.s32 %s132, 1
    %p136 = scmp.eq.s32.totalorder %s12, 3
    %p137 = scmp.ne.s32.totalorder %s132, %s134
    %p138 = scmp.eq.s32.totalorder %s12, 0
    %p139 = por %p137, %p138
    %p140 = scmp.ne.s32.totalorder %s132, %s134
    %p141 = scmp.eq.s32.totalorder %s17, 3
    %p142 = por %p140, %p141
    %p143 = scmp.ne.s32.totalorder %s134, %s135
    %p144 = scmp.eq.s32.totalorder %s17, 0
    %p145 = por %p143, %p144
    %p146 = scmp.ne.s32.totalorder %s134, %s135
    %p147 = scmp.eq.s32.totalorder %s18, 3
    %p148 = por %p146, %p147
    %p150 = scmp.ne.s32.totalorder %s135, %s149
    %p151 = scmp.eq.s32.totalorder %s18, 0
    %p152 = por %p150, %p151
    %s154 = sadd.s32 %s153, 1
    %p157 = scmp.eq.s32.totalorder %s12, 3
    %p158 = scmp.ne.s32.totalorder %s153, %s155
    %p159 = scmp.eq.s32.totalorder %s12, 0
    %p160 = por %p158, %p159
    %p161 = scmp.ne.s32.totalorder %s153, %s155
    %p162 = scmp.eq.s32.totalorder %s17, 3
    %p163 = por %p161, %p162
    %p164 = scmp.ne.s32.totalorder %s155, %s156
    %p165 = scmp.eq.s32.totalorder %s17, 0
    %p166 = por %p164, %p165
    %p167 = scmp.ne.s32.totalorder %s155, %s156
    %p168 = scmp.eq.s32.totalorder %s18, 3
    %p169 = por %p167, %p168
    %p171 = scmp.ne.s32.totalorder %s156, %s170
    %p172 = scmp.eq.s32.totalorder %s18, 0
    %p173 = por %p171, %p172
    %s174 = ssub.s32 %s19, %s31
    %s175 = ssub.s32 %s20, %s27
    %s176 = sor.u32 %s174, %s175
    %p177 = scmp.eq.s32.totalorder %s176, 0
    %s179 = sadd.s32 %s178, 1
    %s180 = scalar_select %p177, %s178, %s179
    %p183 = pneg %p177
    %p184 = scmp.eq.s32.totalorder %s12, 3
    %p185 = por %p183, %p184
    %p186 = scmp.ne.s32.totalorder %s178, %s181
    %p187 = scmp.eq.s32.totalorder %s12, 0
    %p188 = por %p186, %p187
    %p189 = scmp.ne.s32.totalorder %s178, %s181
    %p190 = scmp.eq.s32.totalorder %s17, 3
    %p191 = por %p189, %p190
    %p192 = scmp.ne.s32.totalorder %s181, %s182
    %p193 = scmp.eq.s32.totalorder %s17, 0
    %p194 = por %p192, %p193
    %p195 = scmp.ne.s32.totalorder %s181, %s182
    %p196 = scmp.eq.s32.totalorder %s18, 3
    %p197 = por %p195, %p196
    %p199 = scmp.ne.s32.totalorder %s182, %s198
    %p200 = scmp.eq.s32.totalorder %s18, 0
    %p201 = por %p199, %p200
    %s202 = ssub.s32 %s19, %s31
    %s203 = ssub.s32 %s20, %s27
    %s204 = sor.u32 %s202, %s203
    %p205 = scmp.eq.s32.totalorder %s204, 0
    %s207 = sadd.s32 %s206, 1
    %s208 = scalar_select %p205, %s206, %s207
    %p211 = pneg %p205
    %p212 = scmp.eq.s32.totalorder %s12, 3
    %p213 = por %p211, %p212
    %p214 = scmp.ne.s32.totalorder %s206, %s209
    %p215 = scmp.eq.s32.totalorder %s12, 0
    %p216 = por %p214, %p215
    %p217 = scmp.ne.s32.totalorder %s206, %s209
    %p218 = scmp.eq.s32.totalorder %s17, 3
    %p219 = por %p217, %p218
    %p220 = scmp.ne.s32.totalorder %s209, %s210
    %p221 = scmp.eq.s32.totalorder %s17, 0
    %p222 = por %p220, %p221
    %p223 = scmp.ne.s32.totalorder %s209, %s210
    %p224 = scmp.eq.s32.totalorder %s18, 3
    %p225 = por %p223, %p224
    %p227 = scmp.ne.s32.totalorder %s210, %s226
    %p228 = scmp.eq.s32.totalorder %s18, 0
    %p229 = por %p227, %p228
    %p230 = scmp.le.s32.totalorder 1, %s12
    %p231 = scmp.lt.s32.totalorder %s12, 5
    %p232 = pnand %p230, %p231
    %p233 = pneg %p232
    // Predicated region
    $region9: #{c3_forward.8} parent=5 // pred_check
      _
    $region10: #{c3_forward.8} parent=5 // pred_check_branch
      %235 = sbr.rel (%p232) target = $region12
    $region11: #{c3_forward.8} parent=5 // pred_region
      %s236 = ssub.s32 %s12, 1
      // Predicated region
      $region13: #{c3_forward.8} parent=11 // pred_check
        %p237 = pneg %p145
      $region14: #{c3_forward.8} parent=11 // pred_check_branch
        %239 = sbr.rel (%p237) target = $region16
      $region15: #{c3_forward.8} parent=11 // pred_region
        _
      $region16: #{c3_forward.8} parent=11 // pred_fallthru
        _
      // Predicated region
      $region17: #{c3_forward.8} parent=11 // pred_check
        %p240 = pneg %p166
      $region18: #{c3_forward.8} parent=11 // pred_check_branch
        %242 = sbr.rel (%p240) target = $region20
      $region19: #{c3_forward.8} parent=11 // pred_region
        _
      $region20: #{c3_forward.8} parent=11 // pred_fallthru
        _
    $region12: #{c3_forward.8} parent=5 // pred_fallthru
      _
    %p243 = scmp.lt.s32.totalorder %s12, 4
    // Predicated region
    $region21: #{c3_forward.8} parent=5 // pred_check
      %p244 = pneg %p243
    $region22: #{c3_forward.8} parent=5 // pred_check_branch
      %246 = sbr.rel (%p244) target = $region24
    $region23: #{c3_forward.8} parent=5 // pred_region
      // Predicated region
      $region25: #{c3_forward.8} parent=23 // pred_check
        %p247 = pneg %p54
      $region26: #{c3_forward.8} parent=23 // pred_check_branch
        %249 = sbr.rel (%p247) target = $region28
      $region27: #{c3_forward.8} parent=23 // pred_region
        %s250 = smul.u32 %s20, 8
        %s251 = ssub.s32 %s250, 1
        %p252 = scmp.gt.s32.totalorder %s251, 0
        %s253 = scalar_select %p252, %s251, 0
        %p254 = scmp.lt.s32.totalorder %s19, 1
        %s255 = scalar_select %p254, %s19, 1
        %p256 = scmp.lt.s32.totalorder %s253, 15
        %s257 = scalar_select %p256, %s253, 15
        %s258 = smul.addr %s257, 2
        %s259 = smul.addr %s255, 32
        %s260 = sadd.s32 %s258, %s259
        %s261 = smul.addr %s260, 4
        %s262 = scalar_lea.vmem %s0, %s261
        %s263 = smul.u32 %s20, 8
        %s264 = ssub.s32 %s263, 1
        %p265 = scmp.gt.s32.totalorder %s264, 0
        %s266 = scalar_select %p265, %s264, 0
      $region28: #{c3_forward.8} parent=23 // pred_fallthru
        _
      // Predicated region
      $region29: #{c3_forward.8} parent=23 // pred_check
        %p267 = pneg %p82
      $region30: #{c3_forward.8} parent=23 // pred_check_branch
        %269 = sbr.rel (%p267) target = $region32
      $region31: #{c3_forward.8} parent=23 // pred_region
        %s270 = smul.u32 8, %s20
        %p271 = scmp.lt.s32.totalorder %s19, 1
        %s272 = scalar_select %p271, %s19, 1
        %p273 = scmp.lt.s32.totalorder %s270, 15
        %s274 = scalar_select %p273, %s270, 15
        %s275 = smul.addr %s274, 2
        %s276 = smul.addr %s272, 32
        %s277 = sadd.s32 %s275, %s276
        %s278 = smul.addr %s277, 4
        %s279 = scalar_lea.vmem %s1, %s278
        %s280 = smul.u32 8, %s20
      $region32: #{c3_forward.8} parent=23 // pred_fallthru
        _
      // Predicated region
      $region33: #{c3_forward.8} parent=23 // pred_check
        %p281 = pneg %p118
      $region34: #{c3_forward.8} parent=23 // pred_check_branch
        %283 = sbr.rel (%p281) target = $region36
      $region35: #{c3_forward.8} parent=23 // pred_region
        %s284 = smul.u32 %s20, 8
        %s285 = sadd.s32 %s284, 8
        %p286 = scmp.lt.s32.totalorder %s285, 15
        %s287 = scalar_select %p286, %s285, 15
        %p288 = scmp.lt.s32.totalorder %s19, 1
        %s289 = scalar_select %p288, %s19, 1
        %p290 = scmp.lt.s32.totalorder %s287, 15
        %s291 = scalar_select %p290, %s287, 15
        %s292 = smul.addr %s291, 2
        %s293 = smul.addr %s289, 32
        %s294 = sadd.s32 %s292, %s293
        %s295 = smul.addr %s294, 4
        %s296 = scalar_lea.vmem %s2, %s295
        %s297 = smul.u32 %s20, 8
        %s298 = sadd.s32 %s297, 8
        %p299 = scmp.lt.s32.totalorder %s298, 15
        %s300 = scalar_select %p299, %s298, 15
      $region36: #{c3_forward.8} parent=23 // pred_fallthru
        _
      // Predicated region
      $region37: #{c3_forward.8} parent=23 // pred_check
        %p301 = pneg %p188
      $region38: #{c3_forward.8} parent=23 // pred_check_branch
        %303 = sbr.rel (%p301) target = $region40
      $region39: #{c3_forward.8} parent=23 // pred_region
        %s304 = smul.u32 8, %s20
        %p305 = scmp.lt.s32.totalorder %s19, 1
        %s306 = scalar_select %p305, %s19, 1
        %p307 = scmp.lt.s32.totalorder %s304, 15
        %s308 = scalar_select %p307, %s304, 15
        %s309 = smul.addr %s308, 2
        %s310 = smul.addr %s306, 32
        %s311 = sadd.s32 %s309, %s310
        %s312 = smul.addr %s311, 4
        %s313 = scalar_lea.vmem %s5, %s312
        %s314 = smul.u32 8, %s20
      $region40: #{c3_forward.8} parent=23 // pred_fallthru
        _
    $region24: #{c3_forward.8} parent=5 // pred_fallthru
      _
    %p315 = scmp.le.s32.totalorder 1, %s12
    %p316 = scmp.lt.s32.totalorder %s12, 5
    %p317 = pnand %p315, %p316
    %p318 = pneg %p317
    // Predicated region
    $region41: #{c3_forward.8} parent=5 // pred_check
      _
    $region42: #{c3_forward.8} parent=5 // pred_check_branch
      %320 = sbr.rel (%p317) target = $region44
    $region43: #{c3_forward.8} parent=5 // pred_region
      %s321 = ssub.s32 %s12, 1
      %s322 = smul.u32 %s22, 8
      %s323 = ssub.s32 %s322, 1
      %p324 = scmp.gt.s32.totalorder %s323, 0
      %s325 = scalar_select %p324, %s323, 0
      %p326 = scmp.lt.s32.totalorder %s21, 1
      %s327 = scalar_select %p326, %s21, 1
      %p328 = scmp.lt.s32.totalorder %s325, 15
      %s329 = scalar_select %p328, %s325, 15
      %s330 = smul.addr %s329, 2
      %s331 = smul.addr %s327, 32
      %s332 = sadd.s32 %s330, %s331
      %s333 = smul.addr %s332, 4
      %s334 = scalar_lea.vmem %s0, %s333
      %p335 = pneg %p60
      %p336 = pneg %p57
      %s337 = smul.u32 8, %s22
      %p338 = scmp.lt.s32.totalorder %s21, 1
      %s339 = scalar_select %p338, %s21, 1
      %p340 = scmp.lt.s32.totalorder %s337, 15
      %s341 = scalar_select %p340, %s337, 15
      %s342 = smul.addr %s341, 2
      %s343 = smul.addr %s339, 32
      %s344 = sadd.s32 %s342, %s343
      %s345 = smul.addr %s344, 4
      %s346 = scalar_lea.vmem %s1, %s345
      %p347 = pneg %p88
      %p348 = pneg %p85
      %s349 = smul.u32 %s22, 8
      %s350 = sadd.s32 %s349, 8
      %p351 = scmp.lt.s32.totalorder %s350, 15
      %s352 = scalar_select %p351, %s350, 15
      %p353 = scmp.lt.s32.totalorder %s21, 1
      %s354 = scalar_select %p353, %s21, 1
      %p355 = scmp.lt.s32.totalorder %s352, 15
      %s356 = scalar_select %p355, %s352, 15
      %s357 = smul.addr %s356, 2
      %s358 = smul.addr %s354, 32
      %s359 = sadd.s32 %s357, %s358
      %s360 = smul.addr %s359, 4
      %s361 = scalar_lea.vmem %s2, %s360
      %p362 = pneg %p124
      %p363 = pneg %p121
      %p364 = pneg %p145
      %p365 = pneg %p142
      %p366 = pneg %p166
      %p367 = pneg %p163
      %s368 = smul.u32 8, %s22
      %p369 = scmp.lt.s32.totalorder %s21, 1
      %s370 = scalar_select %p369, %s21, 1
      %p371 = scmp.lt.s32.totalorder %s368, 15
      %s372 = scalar_select %p371, %s368, 15
      %s373 = smul.addr %s372, 2
      %s374 = smul.addr %s370, 32
      %s375 = sadd.s32 %s373, %s374
      %s376 = smul.addr %s375, 4
      %s377 = scalar_lea.vmem %s5, %s376
      %p378 = pneg %p194
      %p379 = pneg %p191
      %p380 = pneg %p222
      %p381 = pneg %p219
      %s382 = smul.u32 8, %s22
      %p383 = scmp.lt.s32.totalorder %s21, 1
      %s384 = scalar_select %p383, %s21, 1
      %p385 = scmp.lt.s32.totalorder %s382, 15
      %s386 = scalar_select %p385, %s382, 15
      %s387 = smul.addr %s386, 2
      %s388 = smul.addr %s384, 32
      %s389 = sadd.s32 %s387, %s388
      %s390 = smul.addr %s389, 4
      %s391 = scalar_lea.vmem %s6, %s390
      %s392 = smul.u32 %s22, 8
      %s393 = ssub.s32 %s392, 1
      %p394 = scmp.gt.s32.totalorder %s393, 0
      %s395 = scalar_select %p394, %s393, 0
      %p396 = scmp.lt.s32.totalorder %s21, 1
      %s397 = scalar_select %p396, %s21, 1
      %p398 = scmp.lt.s32.totalorder %s395, 15
      %s399 = scalar_select %p398, %s395, 15
      %s400 = smul.addr %s399, 2
      %s401 = smul.addr %s397, 32
      %s402 = sadd.s32 %s400, %s401
      %s403 = smul.addr %s402, 4
      %s404 = scalar_lea.vmem %s0, %s403
      %s405 = smul.u32 %s22, 8
      %s406 = ssub.s32 %s405, 1
      %p407 = scmp.gt.s32.totalorder %s406, 0
      %s408 = scalar_select %p407, %s406, 0
      %s409 = smul.u32 8, %s22
      %p410 = scmp.lt.s32.totalorder %s21, 1
      %s411 = scalar_select %p410, %s21, 1
      %p412 = scmp.lt.s32.totalorder %s409, 15
      %s413 = scalar_select %p412, %s409, 15
      %s414 = smul.addr %s413, 2
      %s415 = smul.addr %s411, 32
      %s416 = sadd.s32 %s414, %s415
      %s417 = smul.addr %s416, 4
      %s418 = scalar_lea.vmem %s1, %s417
      %s419 = smul.u32 8, %s22
      %s420 = smul.u32 %s22, 8
      %s421 = sadd.s32 %s420, 8
      %p422 = scmp.lt.s32.totalorder %s421, 15
      %s423 = scalar_select %p422, %s421, 15
      %p424 = scmp.lt.s32.totalorder %s21, 1
      %s425 = scalar_select %p424, %s21, 1
      %p426 = scmp.lt.s32.totalorder %s423, 15
      %s427 = scalar_select %p426, %s423, 15
      %s428 = smul.addr %s427, 2
      %s429 = smul.addr %s425, 32
      %s430 = sadd.s32 %s428, %s429
      %s431 = smul.addr %s430, 4
      %s432 = scalar_lea.vmem %s2, %s431
      %s433 = smul.u32 %s22, 8
      %s434 = sadd.s32 %s433, 8
      %p435 = scmp.lt.s32.totalorder %s434, 15
      %s436 = scalar_select %p435, %s434, 15
      %s437 = smul.u32 8, %s22
      %p438 = scmp.lt.s32.totalorder %s21, 1
      %s439 = scalar_select %p438, %s21, 1
      %p440 = scmp.lt.s32.totalorder %s437, 15
      %s441 = scalar_select %p440, %s437, 15
      %s442 = smul.addr %s441, 2
      %s443 = smul.addr %s439, 32
      %s444 = sadd.s32 %s442, %s443
      %s445 = smul.addr %s444, 4
      %s446 = scalar_lea.vmem %s5, %s445
      %s447 = smul.u32 8, %s22
      %s448 = smul.u32 8, %s22
      %p449 = scmp.lt.s32.totalorder %s21, 1
      %s450 = scalar_select %p449, %s21, 1
      %p451 = scmp.lt.s32.totalorder %s448, 15
      %s452 = scalar_select %p451, %s448, 15
      %s453 = smul.addr %s452, 2
      %s454 = smul.addr %s450, 32
      %s455 = sadd.s32 %s453, %s454
      %s456 = smul.addr %s455, 4
      %s457 = scalar_lea.vmem %s6, %s456
      %s458 = smul.u32 8, %s22
      %vm460 = vcmask 11264
      %461 = vst.msk [vmem:[#allocation2] sm:$0xf] %vm460, 0
      %462 = vst.msk [vmem:[#allocation2 + $0x4] sm:$0xf] %vm460, 0
      %vm463 = vcmask 8192
      %464 = vst.msk [vmem:[#allocation2 + $0x8] sm:$0x1] %vm463, 0
      %465 = vst.msk [vmem:[#allocation2 + $0xc] sm:$0xf] %vm460, 0
      %466 = vst.msk [vmem:[#allocation2 + $0x10] sm:$0xf] %vm460, 0
      %467 = vst.msk [vmem:[#allocation2 + $0x14] sm:$0x1] %vm463, 0
      %468 = vst.msk [vmem:[#allocation2 + $0x18] sm:$0xf] %vm460, 0
      %469 = vst.msk [vmem:[#allocation2 + $0x1c] sm:$0xf] %vm460, 0
      %470 = vst.msk [vmem:[#allocation2 + $0x20] sm:$0x1] %vm463, 0
      %471 = vst.msk [vmem:[#allocation2 + $0x24] sm:$0xf] %vm460, 0
      %472 = vst.msk [vmem:[#allocation2 + $0x28] sm:$0xf] %vm460, 0
      %473 = vst.msk [vmem:[#allocation2 + $0x2c] sm:$0x1] %vm463, 0
      %474 = vst.msk [vmem:[#allocation2 + $0x30] sm:$0xf] %vm460, 0
      %475 = vst.msk [vmem:[#allocation2 + $0x34] sm:$0xf] %vm460, 0
      %476 = vst.msk [vmem:[#allocation2 + $0x38] sm:$0x1] %vm463, 0
      %477 = vst.msk [vmem:[#allocation2 + $0x3c] sm:$0xf] %vm460, 0
      %478 = vst.msk [vmem:[#allocation2 + $0x40] sm:$0xf] %vm460, 0
      %479 = vst.msk [vmem:[#allocation2 + $0x44] sm:$0x1] %vm463, 0
      %480 = vst.msk [vmem:[#allocation2 + $0x48] sm:$0xf] %vm460, 0
      %481 = vst.msk [vmem:[#allocation2 + $0x4c] sm:$0xf] %vm460, 0
      %482 = vst.msk [vmem:[#allocation2 + $0x50] sm:$0x1] %vm463, 0
      %483 = vst.msk [vmem:[#allocation2 + $0x54] sm:$0xf] %vm460, 0
      %484 = vst.msk [vmem:[#allocation2 + $0x58] sm:$0xf] %vm460, 0
      %485 = vst.msk [vmem:[#allocation2 + $0x5c] sm:$0x1] %vm463, 0
      %486 = vst.msk [vmem:[#allocation2 + $0x60] sm:$0xf] %vm460, 0
      %487 = vst.msk [vmem:[#allocation2 + $0x64] sm:$0xf] %vm460, 0
      %488 = vst.msk [vmem:[#allocation2 + $0x68] sm:$0x1] %vm463, 0
      %489 = vst.msk [vmem:[#allocation2 + $0x6c] sm:$0xf] %vm460, 0
      %490 = vst.msk [vmem:[#allocation2 + $0x70] sm:$0xf] %vm460, 0
      %491 = vst.msk [vmem:[#allocation2 + $0x74] sm:$0x1] %vm463, 0
      %v492 = vld [vmem:[%s418] sm:$0xf]
      %v493 = vld [vmem:[%s418 + $0x4] sm:$0xf]
      %v494 = vld [vmem:[%s418 + $0x8] sm:$0xf]
      %v495 = vld [vmem:[%s418 + $0xc] sm:$0xf]
      %v496 = vld [vmem:[%s418 + $0x10] sm:$0xf]
      %v497 = vld [vmem:[%s418 + $0x14] sm:$0xf]
      %v498 = vld [vmem:[%s418 + $0x18] sm:$0xf]
      %v499 = vld [vmem:[%s418 + $0x1c] sm:$0xf]
      %v500 = vld [vmem:[%s418 + $0x20] sm:$0xf]
      %v501 = vld [vmem:[%s418 + $0x24] sm:$0xf]
      %v502 = vld [vmem:[%s418 + $0x28] sm:$0xf]
      %v503 = vld [vmem:[%s418 + $0x2c] sm:$0xf]
      %v504 = vld [vmem:[%s418 + $0x30] sm:$0xf]
      %v505 = vld [vmem:[%s418 + $0x34] sm:$0xf]
      %v506 = vld [vmem:[%s418 + $0x38] sm:$0xf]
      %v507 = vld [vmem:[%s418 + $0x3c] sm:$0xf]
      %vm508 = vsmask.f32 256
      %vm509 = vsmask.f32 4368
      %vm510 = vmor %vm508, %vm509
      %v512 = vshrl.u32 %v492, 16
      %v514 = vrot.slane %v512, 7
      %v515 = vshll.u32 %v492, 16
      %v517 = vor.u32 %v514, %v515
      %v518 = vrot.slane %v514, 4
      %v520 = vshrl.u32 %v493, 16
      %v522 = vrot.slane %v520, 7
      %v523 = vshll.u32 %v493, 16
      %v525 = vor.u32 %v522, %v523
      %v526 = vsel %vm510, %v518, %v525
      %v527 = vrot.slane %v522, 4
      %v529 = vshrl.u32 %v494, 16
      %v531 = vrot.slane %v529, 7
      %v532 = vshll.u32 %v494, 16
      %v534 = vor.u32 %v531, %v532
      %v535 = vrot.slane %v531, 4
      %v537 = vshrl.u32 %v495, 16
      %v539 = vrot.slane %v537, 7
      %v540 = vshll.u32 %v495, 16
      %v542 = vor.u32 %v539, %v540
      %v543 = vsel %vm510, %v535, %v542
      %v544 = vrot.slane %v539, 4
      %v546 = vshrl.u32 %v496, 16
      %v548 = vrot.slane %v546, 7
      %v549 = vshll.u32 %v496, 16
      %v551 = vor.u32 %v548, %v549
      %v552 = vrot.slane %v548, 4
      %v554 = vshrl.u32 %v497, 16
      %v556 = vrot.slane %v554, 7
      %v557 = vshll.u32 %v497, 16
      %v559 = vor.u32 %v556, %v557
      %v560 = vsel %vm510, %v552, %v559
      %v561 = vrot.slane %v556, 4
      %v563 = vshrl.u32 %v498, 16
      %v565 = vrot.slane %v563, 7
      %v566 = vshll.u32 %v498, 16
      %v568 = vor.u32 %v565, %v566
      %v569 = vrot.slane %v565, 4
      %v571 = vshrl.u32 %v499, 16
      %v573 = vrot.slane %v571, 7
      %v574 = vshll.u32 %v499, 16
      %v576 = vor.u32 %v573, %v574
      %v577 = vsel %vm510, %v569, %v576
      %v578 = vrot.slane %v573, 4
      %v580 = vshrl.u32 %v500, 16
      %v582 = vrot.slane %v580, 7
      %v583 = vshll.u32 %v500, 16
      %v585 = vor.u32 %v582, %v583
      %v586 = vrot.slane %v582, 4
      %v588 = vshrl.u32 %v501, 16
      %v590 = vrot.slane %v588, 7
      %v591 = vshll.u32 %v501, 16
      %v593 = vor.u32 %v590, %v591
      %v594 = vsel %vm510, %v586, %v593
      %v595 = vrot.slane %v590, 4
      %v597 = vshrl.u32 %v502, 16
      %v599 = vrot.slane %v597, 7
      %v600 = vshll.u32 %v502, 16
      %v602 = vor.u32 %v599, %v600
      %v603 = vrot.slane %v599, 4
      %v605 = vshrl.u32 %v503, 16
      %v607 = vrot.slane %v605, 7
      %v608 = vshll.u32 %v503, 16
      %v610 = vor.u32 %v607, %v608
      %v611 = vsel %vm510, %v603, %v610
      %v612 = vrot.slane %v607, 4
      %v614 = vshrl.u32 %v504, 16
      %v616 = vrot.slane %v614, 7
      %v617 = vshll.u32 %v504, 16
      %v619 = vor.u32 %v616, %v617
      %v620 = vrot.slane %v616, 4
      %v622 = vshrl.u32 %v505, 16
      %v624 = vrot.slane %v622, 7
      %v625 = vshll.u32 %v505, 16
      %v627 = vor.u32 %v624, %v625
      %v628 = vsel %vm510, %v620, %v627
      %v629 = vrot.slane %v624, 4
      %v631 = vshrl.u32 %v506, 16
      %v633 = vrot.slane %v631, 7
      %v634 = vshll.u32 %v506, 16
      %v636 = vor.u32 %v633, %v634
      %v637 = vrot.slane %v633, 4
      %v639 = vshrl.u32 %v507, 16
      %v641 = vrot.slane %v639, 7
      %v642 = vshll.u32 %v507, 16
      %v644 = vor.u32 %v641, %v642
      %v645 = vsel %vm510, %v637, %v644
      %v646 = vrot.slane %v641, 4
      %s671 = scalar_lea.vmem [#allocation2], 12
      %vm672 = vcmask 11264
      %vm673 = vsmask.f32 7938
      %vm674 = vmand %vm672, %vm673
      %v675 = vld [vmem:[%s671] sm:$0xf]
      %v676 = vsel %vm674, %v517, %v675
      %677 = vst [vmem:[%s671] sm:$0xf] %v676
      %678 = vst.msk [vmem:[%s671 + $0x4] sm:$0xf] %vm460, %v526
      %vm679 = vcmask 8192
      %vm680 = vmand %vm679, %vm508
      %v681 = vld [vmem:[%s671 + $0x8] sm:$0x1]
      %v682 = vsel %vm680, %v527, %v681
      %683 = vst [vmem:[%s671 + $0x8] sm:$0x1] %v682
      %v684 = vld [vmem:[%s671 + $0xc] sm:$0xf]
      %v685 = vsel %vm674, %v534, %v684
      %686 = vst [vmem:[%s671 + $0xc] sm:$0xf] %v685
      %687 = vst.msk [vmem:[%s671 + $0x10] sm:$0xf] %vm460, %v543
      %v688 = vld [vmem:[%s671 + $0x14] sm:$0x1]
      %v689 = vsel %vm680, %v544, %v688
      %690 = vst [vmem:[%s671 + $0x14] sm:$0x1] %v689
      %v691 = vld [vmem:[%s671 + $0x18] sm:$0xf]
      %v692 = vsel %vm674, %v551, %v691
      %693 = vst [vmem:[%s671 + $0x18] sm:$0xf] %v692
      %694 = vst.msk [vmem:[%s671 + $0x1c] sm:$0xf] %vm460, %v560
      %v695 = vld [vmem:[%s671 + $0x20] sm:$0x1]
      %v696 = vsel %vm680, %v561, %v695
      %697 = vst [vmem:[%s671 + $0x20] sm:$0x1] %v696
      %v698 = vld [vmem:[%s671 + $0x24] sm:$0xf]
      %v699 = vsel %vm674, %v568, %v698
      %700 = vst [vmem:[%s671 + $0x24] sm:$0xf] %v699
      %701 = vst.msk [vmem:[%s671 + $0x28] sm:$0xf] %vm460, %v577
      %v702 = vld [vmem:[%s671 + $0x2c] sm:$0x1]
      %v703 = vsel %vm680, %v578, %v702
      %704 = vst [vmem:[%s671 + $0x2c] sm:$0x1] %v703
      %v705 = vld [vmem:[%s671 + $0x30] sm:$0xf]
      %v706 = vsel %vm674, %v585, %v705
      %707 = vst [vmem:[%s671 + $0x30] sm:$0xf] %v706
      %708 = vst.msk [vmem:[%s671 + $0x34] sm:$0xf] %vm460, %v594
      %v709 = vld [vmem:[%s671 + $0x38] sm:$0x1]
      %v710 = vsel %vm680, %v595, %v709
      %711 = vst [vmem:[%s671 + $0x38] sm:$0x1] %v710
      %v712 = vld [vmem:[%s671 + $0x3c] sm:$0xf]
      %v713 = vsel %vm674, %v602, %v712
      %714 = vst [vmem:[%s671 + $0x3c] sm:$0xf] %v713
      %715 = vst.msk [vmem:[%s671 + $0x40] sm:$0xf] %vm460, %v611
      %v716 = vld [vmem:[%s671 + $0x44] sm:$0x1]
      %v717 = vsel %vm680, %v612, %v716
      %718 = vst [vmem:[%s671 + $0x44] sm:$0x1] %v717
      %v719 = vld [vmem:[%s671 + $0x48] sm:$0xf]
      %v720 = vsel %vm674, %v619, %v719
      %721 = vst [vmem:[%s671 + $0x48] sm:$0xf] %v720
      %722 = vst.msk [vmem:[%s671 + $0x4c] sm:$0xf] %vm460, %v628
      %v723 = vld [vmem:[%s671 + $0x50] sm:$0x1]
      %v724 = vsel %vm680, %v629, %v723
      %725 = vst [vmem:[%s671 + $0x50] sm:$0x1] %v724
      %v726 = vld [vmem:[%s671 + $0x54] sm:$0xf]
      %v727 = vsel %vm674, %v636, %v726
      %728 = vst [vmem:[%s671 + $0x54] sm:$0xf] %v727
      %729 = vst.msk [vmem:[%s671 + $0x58] sm:$0xf] %vm460, %v645
      %v730 = vld [vmem:[%s671 + $0x5c] sm:$0x1]
      %v731 = vsel %vm680, %v646, %v730
      %732 = vst [vmem:[%s671 + $0x5c] sm:$0x1] %v731
      %p733 = scmp.gt.s32.totalorder %s22, 0
      // Predicated region
      $region45: #{c3_forward.8} parent=43 // pred_check
        %p734 = pneg %p733
      $region46: #{c3_forward.8} parent=43 // pred_check_branch
        %736 = sbr.rel (%p734) target = $region48
      $region47: #{c3_forward.8} parent=43 // pred_region
        %v737 = vld [vmem:[%s404] sm:$0xf]
        %v738 = vld [vmem:[%s404 + $0x4] sm:$0xf]
        %v740 = vshrl.u32 %v737, 16
        %v742 = vrot.slane %v740, 7
        %v743 = vshll.u32 %v737, 16
        %v745 = vor.u32 %v742, %v743
        %v746 = vrot.slane %v742, 4
        %v748 = vshrl.u32 %v738, 16
        %v750 = vrot.slane %v748, 7
        %v751 = vshll.u32 %v738, 16
        %v753 = vor.u32 %v750, %v751
        %v754 = vsel %vm510, %v746, %v753
        %v755 = vrot.slane %v750, 4
        %v759 = vld [vmem:[#allocation2] sm:$0xf]
        %v760 = vsel %vm674, %v745, %v759
        %761 = vst [vmem:[#allocation2] sm:$0xf] %v760
        %762 = vst.msk [vmem:[#allocation2 + $0x4] sm:$0xf] %vm460, %v754
        %v763 = vld [vmem:[#allocation2 + $0x8] sm:$0x1]
        %v764 = vsel %vm680, %v755, %v763
        %765 = vst [vmem:[#allocation2 + $0x8] sm:$0x1] %v764
      $region48: #{c3_forward.8} parent=43 // pred_fallthru
        _
      %p766 = scmp.lt.s32.totalorder %s22, 1
      // Predicated region
      $region49: #{c3_forward.8} parent=43 // pred_check
        %p767 = pneg %p766
      $region50: #{c3_forward.8} parent=43 // pred_check_branch
        %769 = sbr.rel (%p767) target = $region52
      $region51: #{c3_forward.8} parent=43 // pred_region
        %v770 = vld [vmem:[%s432] sm:$0xf]
        %v771 = vld [vmem:[%s432 + $0x4] sm:$0xf]
        %v773 = vshrl.u32 %v770, 16
        %v775 = vrot.slane %v773, 7
        %v776 = vshll.u32 %v770, 16
        %v778 = vor.u32 %v775, %v776
        %v779 = vrot.slane %v775, 4
        %v781 = vshrl.u32 %v771, 16
        %v783 = vrot.slane %v781, 7
        %v784 = vshll.u32 %v771, 16
        %v786 = vor.u32 %v783, %v784
        %v787 = vsel %vm510, %v779, %v786
        %v788 = vrot.slane %v783, 4
        %s792 = scalar_lea.vmem [#allocation2], 108
        %v793 = vld [vmem:[%s792] sm:$0xf]
        %v794 = vsel %vm674, %v778, %v793
        %795 = vst [vmem:[%s792] sm:$0xf] %v794
        %796 = vst.msk [vmem:[%s792 + $0x4] sm:$0xf] %vm460, %v787
        %v797 = vld [vmem:[%s792 + $0x8] sm:$0x1]
        %v798 = vsel %vm680, %v788, %v797
        %799 = vst [vmem:[%s792 + $0x8] sm:$0x1] %v798
      $region52: #{c3_forward.8} parent=43 // pred_fallthru
        _
      %v800 = vld [vmem:[#allocation2] sm:$0xf]
      %v801 = vld [vmem:[#allocation2 + $0x4] sm:$0xf]
      %v802 = vld [vmem:[#allocation2 + $0x8] sm:$0x1]
      %v803 = vld [vmem:[#allocation2 + $0xc] sm:$0xf]
      %v804 = vld [vmem:[#allocation2 + $0x10] sm:$0xf]
      %v805 = vld [vmem:[#allocation2 + $0x14] sm:$0x1]
      %v806 = vld [vmem:[#allocation2 + $0x18] sm:$0xf]
      %v807 = vld [vmem:[#allocation2 + $0x1c] sm:$0xf]
      %v808 = vld [vmem:[#allocation2 + $0x20] sm:$0x1]
      %v809 = vld [vmem:[#allocation2 + $0x24] sm:$0xf]
      %v810 = vld [vmem:[#allocation2 + $0x28] sm:$0xf]
      %v811 = vld [vmem:[#allocation2 + $0x2c] sm:$0x1]
      %v812 = vld [vmem:[#allocation2 + $0x30] sm:$0xf]
      %v813 = vld [vmem:[#allocation2 + $0x34] sm:$0xf]
      %v814 = vld [vmem:[#allocation2 + $0x38] sm:$0x1]
      %v815 = vld [vmem:[#allocation2 + $0x3c] sm:$0xf]
      %v816 = vld [vmem:[#allocation2 + $0x40] sm:$0xf]
      %v817 = vld [vmem:[#allocation2 + $0x44] sm:$0x1]
      %v818 = vld [vmem:[#allocation2 + $0x48] sm:$0xf]
      %v819 = vld [vmem:[#allocation2 + $0x4c] sm:$0xf]
      %v820 = vld [vmem:[#allocation2 + $0x50] sm:$0x1]
      %v821 = vld [vmem:[#allocation2 + $0x54] sm:$0xf]
      %v822 = vld [vmem:[#allocation2 + $0x58] sm:$0xf]
      %v823 = vld [vmem:[#allocation2 + $0x5c] sm:$0x1]
      %v824 = vld [vmem:[#allocation2 + $0x60] sm:$0xf]
      %v825 = vld [vmem:[#allocation2 + $0x64] sm:$0xf]
      %v826 = vld [vmem:[#allocation2 + $0x68] sm:$0x1]
      %v827 = vld [vmem:[#allocation2 + $0x6c] sm:$0xf]
      %v828 = vld [vmem:[#allocation2 + $0x70] sm:$0xf]
      %v829 = vld [vmem:[#allocation2 + $0x74] sm:$0x1]
      %vm830 = vsmask.f32 3328
      %vm831 = vsmask.f32 7440
      %vm832 = vmor %vm830, %vm831
      %v834 = vshrl.u32 %v800, 16
      %v836 = vrot.slane %v834, 4
      %v837 = vshll.u32 %v800, 16
      %v839 = vrot.slane %v837, 5
      %v840 = vor.u32 %v836, %v839
      %v841 = vrot.slane %v840, 4
      %v843 = vshll.u32 %v801, 16
      %v845 = vrot.slane %v843, 5
      %v846 = vsel %vm832, %v841, %v845
      %v847 = vshrl.u32 %v801, 16
      %v849 = vrot.slane %v847, 4
      %v850 = vor.u32 %v849, %v845
      %v851 = vrot.slane %v850, 4
      %v853 = vshll.u32 %v802, 16
      %v855 = vrot.slane %v853, 5
      %v856 = vsel %vm832, %v851, %v855
      %v858 = vshrl.u32 %v803, 16
      %v860 = vrot.slane %v858, 4
      %v861 = vshll.u32 %v803, 16
      %v863 = vrot.slane %v861, 5
      %v864 = vor.u32 %v860, %v863
      %v865 = vrot.slane %v864, 4
      %v867 = vshll.u32 %v804, 16
      %v869 = vrot.slane %v867, 5
      %v870 = vsel %vm832, %v865, %v869
      %v871 = vshrl.u32 %v804, 16
      %v873 = vrot.slane %v871, 4
      %v874 = vor.u32 %v873, %v869
      %v875 = vrot.slane %v874, 4
      %v877 = vshll.u32 %v805, 16
      %v879 = vrot.slane %v877, 5
      %v880 = vsel %vm832, %v875, %v879
      %v882 = vshrl.u32 %v806, 16
      %v884 = vrot.slane %v882, 4
      %v885 = vshll.u32 %v806, 16
      %v887 = vrot.slane %v885, 5
      %v888 = vor.u32 %v884, %v887
      %v889 = vrot.slane %v888, 4
      %v891 = vshll.u32 %v807, 16
      %v893 = vrot.slane %v891, 5
      %v894 = vsel %vm832, %v889, %v893
      %v895 = vshrl.u32 %v807, 16
      %v897 = vrot.slane %v895, 4
      %v898 = vor.u32 %v897, %v893
      %v899 = vrot.slane %v898, 4
      %v901 = vshll.u32 %v808, 16
      %v903 = vrot.slane %v901, 5
      %v904 = vsel %vm832, %v899, %v903
      %v906 = vshrl.u32 %v809, 16
      %v908 = vrot.slane %v906, 4
      %v909 = vshll.u32 %v809, 16
      %v911 = vrot.slane %v909, 5
      %v912 = vor.u32 %v908, %v911
      %v913 = vrot.slane %v912, 4
      %v915 = vshll.u32 %v810, 16
      %v917 = vrot.slane %v915, 5
      %v918 = vsel %vm832, %v913, %v917
      %v919 = vshrl.u32 %v810, 16
      %v921 = vrot.slane %v919, 4
      %v922 = vor.u32 %v921, %v917
      %v923 = vrot.slane %v922, 4
      %v925 = vshll.u32 %v811, 16
      %v927 = vrot.slane %v925, 5
      %v928 = vsel %vm832, %v923, %v927
      %v930 = vshrl.u32 %v812, 16
      %v932 = vrot.slane %v930, 4
      %v933 = vshll.u32 %v812, 16
      %v935 = vrot.slane %v933, 5
      %v936 = vor.u32 %v932, %v935
      %v937 = vrot.slane %v936, 4
      %v939 = vshll.u32 %v813, 16
      %v941 = vrot.slane %v939, 5
      %v942 = vsel %vm832, %v937, %v941
      %v943 = vshrl.u32 %v813, 16
      %v945 = vrot.slane %v943, 4
      %v946 = vor.u32 %v945, %v941
      %v947 = vrot.slane %v946, 4
      %v949 = vshll.u32 %v814, 16
      %v951 = vrot.slane %v949, 5
      %v952 = vsel %vm832, %v947, %v951
      %v954 = vshrl.u32 %v815, 16
      %v956 = vrot.slane %v954, 4
      %v957 = vshll.u32 %v815, 16
      %v959 = vrot.slane %v957, 5
      %v960 = vor.u32 %v956, %v959
      %v961 = vrot.slane %v960, 4
      %v963 = vshll.u32 %v816, 16
      %v965 = vrot.slane %v963, 5
      %v966 = vsel %vm832, %v961, %v965
      %v967 = vshrl.u32 %v816, 16
      %v969 = vrot.slane %v967, 4
      %v970 = vor.u32 %v969, %v965
      %v971 = vrot.slane %v970, 4
      %v973 = vshll.u32 %v817, 16
      %v975 = vrot.slane %v973, 5
      %v976 = vsel %vm832, %v971, %v975
      %v978 = vshrl.u32 %v818, 16
      %v980 = vrot.slane %v978, 4
      %v981 = vshll.u32 %v818, 16
      %v983 = vrot.slane %v981, 5
      %v984 = vor.u32 %v980, %v983
      %v985 = vrot.slane %v984, 4
      %v987 = vshll.u32 %v819, 16
      %v989 = vrot.slane %v987, 5
      %v990 = vsel %vm832, %v985, %v989
      %v991 = vshrl.u32 %v819, 16
      %v993 = vrot.slane %v991, 4
      %v994 = vor.u32 %v993, %v989
      %v995 = vrot.slane %v994, 4
      %v997 = vshll.u32 %v820, 16
      %v999 = vrot.slane %v997, 5
      %v1000 = vsel %vm832, %v995, %v999
      %v1002 = vshrl.u32 %v821, 16
      %v1004 = vrot.slane %v1002, 4
      %v1005 = vshll.u32 %v821, 16
      %v1007 = vrot.slane %v1005, 5
      %v1008 = vor.u32 %v1004, %v1007
      %v1009 = vrot.slane %v1008, 4
      %v1011 = vshll.u32 %v822, 16
      %v1013 = vrot.slane %v1011, 5
      %v1014 = vsel %vm832, %v1009, %v1013
      %v1015 = vshrl.u32 %v822, 16
      %v1017 = vrot.slane %v1015, 4
      %v1018 = vor.u32 %v1017, %v1013
      %v1019 = vrot.slane %v1018, 4
      %v1021 = vshll.u32 %v823, 16
      %v1023 = vrot.slane %v1021, 5
      %v1024 = vsel %vm832, %v1019, %v1023
      %vm1049 = vcmask 1042432
      %vm1050 = vcmask 1046532
      %vm1051 = vmor %vm1049, %vm1050
      %v1052 = vrot.slane %v800, 5
      %v1053 = vrot.slane %v1052, 4
      %v1054 = vrot.slane %v801, 5
      %v1055 = vsel %vm1051, %v1053, %v1054
      %v1056 = vrot.slane %v1054, 4
      %v1057 = vrot.slane %v802, 5
      %v1058 = vsel %vm1051, %v1056, %v1057
      %v1059 = vrot.slane %v803, 5
      %v1060 = vrot.slane %v1059, 4
      %v1061 = vrot.slane %v804, 5
      %v1062 = vsel %vm1051, %v1060, %v1061
      %v1063 = vrot.slane %v1061, 4
      %v1064 = vrot.slane %v805, 5
      %v1065 = vsel %vm1051, %v1063, %v1064
      %v1066 = vrot.slane %v806, 5
      %v1067 = vrot.slane %v1066, 4
      %v1068 = vrot.slane %v807, 5
      %v1069 = vsel %vm1051, %v1067, %v1068
      %v1070 = vrot.slane %v1068, 4
      %v1071 = vrot.slane %v808, 5
      %v1072 = vsel %vm1051, %v1070, %v1071
      %v1073 = vrot.slane %v809, 5
      %v1074 = vrot.slane %v1073, 4
      %v1075 = vrot.slane %v810, 5
      %v1076 = vsel %vm1051, %v1074, %v1075
      %v1077 = vrot.slane %v1075, 4
      %v1078 = vrot.slane %v811, 5
      %v1079 = vsel %vm1051, %v1077, %v1078
      %v1080 = vrot.slane %v812, 5
      %v1081 = vrot.slane %v1080, 4
      %v1082 = vrot.slane %v813, 5
      %v1083 = vsel %vm1051, %v1081, %v1082
      %v1084 = vrot.slane %v1082, 4
      %v1085 = vrot.slane %v814, 5
      %v1086 = vsel %vm1051, %v1084, %v1085
      %v1087 = vrot.slane %v815, 5
      %v1088 = vrot.slane %v1087, 4
      %v1089 = vrot.slane %v816, 5
      %v1090 = vsel %vm1051, %v1088, %v1089
      %v1091 = vrot.slane %v1089, 4
      %v1092 = vrot.slane %v817, 5
      %v1093 = vsel %vm1051, %v1091, %v1092
      %v1094 = vrot.slane %v818, 5
      %v1095 = vrot.slane %v1094, 4
      %v1096 = vrot.slane %v819, 5
      %v1097 = vsel %vm1051, %v1095, %v1096
      %v1098 = vrot.slane %v1096, 4
      %v1099 = vrot.slane %v820, 5
      %v1100 = vsel %vm1051, %v1098, %v1099
      %v1101 = vrot.slane %v821, 5
      %v1102 = vrot.slane %v1101, 4
      %v1103 = vrot.slane %v822, 5
      %v1104 = vsel %vm1051, %v1102, %v1103
      %v1105 = vrot.slane %v1103, 4
      %v1106 = vrot.slane %v823, 5
      %v1107 = vsel %vm1051, %v1105, %v1106
      %v1109 = vshrl.u32 %v824, 16
      %v1111 = vrot.slane %v1109, 4
      %v1112 = vshll.u32 %v824, 16
      %v1114 = vrot.slane %v1112, 5
      %v1115 = vor.u32 %v1111, %v1114
      %v1116 = vrot.slane %v1115, 4
      %v1118 = vshll.u32 %v825, 16
      %v1120 = vrot.slane %v1118, 5
      %v1121 = vsel %vm832, %v1116, %v1120
      %v1122 = vshrl.u32 %v825, 16
      %v1124 = vrot.slane %v1122, 4
      %v1125 = vor.u32 %v1124, %v1120
      %v1126 = vrot.slane %v1125, 4
      %v1128 = vshll.u32 %v826, 16
      %v1130 = vrot.slane %v1128, 5
      %v1131 = vsel %vm832, %v1126, %v1130
      %v1135 = vrot.slane %v824, 5
      %v1136 = vrot.slane %v1135, 4
      %v1137 = vrot.slane %v825, 5
      %v1138 = vsel %vm1051, %v1136, %v1137
      %v1139 = vrot.slane %v1137, 4
      %v1140 = vrot.slane %v826, 5
      %v1141 = vsel %vm1051, %v1139, %v1140
      %v1143 = vshrl.u32 %v827, 16
      %v1145 = vrot.slane %v1143, 4
      %v1146 = vshll.u32 %v827, 16
      %v1148 = vrot.slane %v1146, 5
      %v1149 = vor.u32 %v1145, %v1148
      %v1150 = vrot.slane %v1149, 4
      %v1152 = vshll.u32 %v828, 16
      %v1154 = vrot.slane %v1152, 5
      %v1155 = vsel %vm832, %v1150, %v1154
      %v1156 = vshrl.u32 %v828, 16
      %v1158 = vrot.slane %v1156, 4
      %v1159 = vor.u32 %v1158, %v1154
      %v1160 = vrot.slane %v1159, 4
      %v1162 = vshll.u32 %v829, 16
      %v1164 = vrot.slane %v1162, 5
      %v1165 = vsel %vm832, %v1160, %v1164
      %v1169 = vrot.slane %v827, 5
      %v1170 = vrot.slane %v1169, 4
      %v1171 = vrot.slane %v828, 5
      %v1172 = vsel %vm1051, %v1170, %v1171
      %v1173 = vrot.slane %v1171, 4
      %v1174 = vrot.slane %v829, 5
      %v1175 = vsel %vm1051, %v1173, %v1174
      %v1176 = vunpack.c.l.b16 %v800
      %v1177 = vunpack.c.l.b16 %v801
      %v1178 = vunpack.c.l.b16 %v803
      %v1179 = vunpack.c.l.b16 %v804
      %v1180 = vunpack.c.l.b16 %v806
      %v1181 = vunpack.c.l.b16 %v807
      %v1182 = vunpack.c.l.b16 %v809
      %v1183 = vunpack.c.l.b16 %v810
      %v1184 = vunpack.c.l.b16 %v812
      %v1185 = vunpack.c.l.b16 %v813
      %v1186 = vunpack.c.l.b16 %v815
      %v1187 = vunpack.c.l.b16 %v816
      %v1188 = vunpack.c.l.b16 %v818
      %v1189 = vunpack.c.l.b16 %v819
      %v1190 = vunpack.c.l.b16 %v821
      %v1191 = vunpack.c.l.b16 %v822
      %v1192 = vpack.c.b16 %v1177, %v1176
      %v1193 = vpack.c.b16 %v1179, %v1178
      %v1194 = vpack.c.b16 %v1181, %v1180
      %v1195 = vpack.c.b16 %v1183, %v1182
      %v1196 = vpack.c.b16 %v1185, %v1184
      %v1197 = vpack.c.b16 %v1187, %v1186
      %v1198 = vpack.c.b16 %v1189, %v1188
      %v1199 = vpack.c.b16 %v1191, %v1190
      %v1200 = vunpack.c.l.b16 %v846
      %v1201 = vunpack.c.l.b16 %v856
      %v1202 = vunpack.c.l.b16 %v870
      %v1203 = vunpack.c.l.b16 %v880
      %v1204 = vunpack.c.l.b16 %v894
      %v1205 = vunpack.c.l.b16 %v904
      %v1206 = vunpack.c.l.b16 %v918
      %v1207 = vunpack.c.l.b16 %v928
      %v1208 = vunpack.c.l.b16 %v942
      %v1209 = vunpack.c.l.b16 %v952
      %v1210 = vunpack.c.l.b16 %v966
      %v1211 = vunpack.c.l.b16 %v976
      %v1212 = vunpack.c.l.b16 %v990
      %v1213 = vunpack.c.l.b16 %v1000
      %v1214 = vunpack.c.l.b16 %v1014
      %v1215 = vunpack.c.l.b16 %v1024
      %v1216 = vpack.c.b16 %v1201, %v1200
      %v1217 = vpack.c.b16 %v1203, %v1202
      %v1218 = vpack.c.b16 %v1205, %v1204
      %v1219 = vpack.c.b16 %v1207, %v1206
      %v1220 = vpack.c.b16 %v1209, %v1208
      %v1221 = vpack.c.b16 %v1211, %v1210
      %v1222 = vpack.c.b16 %v1213, %v1212
      %v1223 = vpack.c.b16 %v1215, %v1214
      %1224 = vrot.lane.b32.xlu0 %v1216, 2
      %v1225 = vpop.permute.xlu0 %1224
      %1226 = vrot.lane.b32.xlu0 %v1217, 2
      %v1227 = vpop.permute.xlu0 %1226
      %1228 = vrot.lane.b32.xlu0 %v1218, 2
      %v1229 = vpop.permute.xlu0 %1228
      %1230 = vrot.lane.b32.xlu0 %v1219, 2
      %v1231 = vpop.permute.xlu0 %1230
      %1232 = vrot.lane.b32.xlu0 %v1220, 2
      %v1233 = vpop.permute.xlu0 %1232
      %1234 = vrot.lane.b32.xlu0 %v1221, 2
      %v1235 = vpop.permute.xlu0 %1234
      %1236 = vrot.lane.b32.xlu0 %v1222, 2
      %v1237 = vpop.permute.xlu0 %1236
      %1238 = vrot.lane.b32.xlu0 %v1223, 2
      %v1239 = vpop.permute.xlu0 %1238
      %v1240 = vunpack.c.l.b16 %v1055
      %v1241 = vunpack.c.l.b16 %v1058
      %v1242 = vunpack.c.l.b16 %v1062
      %v1243 = vunpack.c.l.b16 %v1065
      %v1244 = vunpack.c.l.b16 %v1069
      %v1245 = vunpack.c.l.b16 %v1072
      %v1246 = vunpack.c.l.b16 %v1076
      %v1247 = vunpack.c.l.b16 %v1079
      %v1248 = vunpack.c.l.b16 %v1083
      %v1249 = vunpack.c.l.b16 %v1086
      %v1250 = vunpack.c.l.b16 %v1090
      %v1251 = vunpack.c.l.b16 %v1093
      %v1252 = vunpack.c.l.b16 %v1097
      %v1253 = vunpack.c.l.b16 %v1100
      %v1254 = vunpack.c.l.b16 %v1104
      %v1255 = vunpack.c.l.b16 %v1107
      %v1256 = vpack.c.b16 %v1241, %v1240
      %v1257 = vpack.c.b16 %v1243, %v1242
      %v1258 = vpack.c.b16 %v1245, %v1244
      %v1259 = vpack.c.b16 %v1247, %v1246
      %v1260 = vpack.c.b16 %v1249, %v1248
      %v1261 = vpack.c.b16 %v1251, %v1250
      %v1262 = vpack.c.b16 %v1253, %v1252
      %v1263 = vpack.c.b16 %v1255, %v1254
      %1264 = vrot.lane.b32.xlu0 %v1256, 4
      %v1265 = vpop.permute.xlu0 %1264
      %1266 = vrot.lane.b32.xlu0 %v1257, 4
      %v1267 = vpop.permute.xlu0 %1266
      %1268 = vrot.lane.b32.xlu0 %v1258, 4
      %v1269 = vpop.permute.xlu0 %1268
      %1270 = vrot.lane.b32.xlu0 %v1259, 4
      %v1271 = vpop.permute.xlu0 %1270
      %1272 = vrot.lane.b32.xlu0 %v1260, 4
      %v1273 = vpop.permute.xlu0 %1272
      %1274 = vrot.lane.b32.xlu0 %v1261, 4
      %v1275 = vpop.permute.xlu0 %1274
      %1276 = vrot.lane.b32.xlu0 %v1262, 4
      %v1277 = vpop.permute.xlu0 %1276
      %1278 = vrot.lane.b32.xlu0 %v1263, 4
      %v1279 = vpop.permute.xlu0 %1278
      %v1280 = vunpack.c.l.b16 %v824
      %v1281 = vunpack.c.l.b16 %v825
      %v1282 = vpack.c.b16 %v1281, %v1280
      %1283 = vrot.lane.b32.xlu0 %v1193, 6
      %v1284 = vpop.permute.xlu0 %1283
      %1285 = vrot.lane.b32.xlu0 %v1194, 6
      %v1286 = vpop.permute.xlu0 %1285
      %1287 = vrot.lane.b32.xlu0 %v1195, 6
      %v1288 = vpop.permute.xlu0 %1287
      %1289 = vrot.lane.b32.xlu0 %v1196, 6
      %v1290 = vpop.permute.xlu0 %1289
      %1291 = vrot.lane.b32.xlu0 %v1197, 6
      %v1292 = vpop.permute.xlu0 %1291
      %1293 = vrot.lane.b32.xlu0 %v1198, 6
      %v1294 = vpop.permute.xlu0 %1293
      %1295 = vrot.lane.b32.xlu0 %v1199, 6
      %v1296 = vpop.permute.xlu0 %1295
      %1297 = vrot.lane.b32.xlu0 %v1282, 6
      %v1298 = vpop.permute.xlu0 %1297
      %v1299 = vunpack.c.l.b16 %v1121
      %v1300 = vunpack.c.l.b16 %v1131
      %v1301 = vpack.c.b16 %v1300, %v1299
      %1302 = vrot.lane.b32.xlu0 %v1217, 8
      %v1303 = vpop.permute.xlu0 %1302
      %1304 = vrot.lane.b32.xlu0 %v1218, 8
      %v1305 = vpop.permute.xlu0 %1304
      %1306 = vrot.lane.b32.xlu0 %v1219, 8
      %v1307 = vpop.permute.xlu0 %1306
      %1308 = vrot.lane.b32.xlu0 %v1220, 8
      %v1309 = vpop.permute.xlu0 %1308
      %1310 = vrot.lane.b32.xlu0 %v1221, 8
      %v1311 = vpop.permute.xlu0 %1310
      %1312 = vrot.lane.b32.xlu0 %v1222, 8
      %v1313 = vpop.permute.xlu0 %1312
      %1314 = vrot.lane.b32.xlu0 %v1223, 8
      %v1315 = vpop.permute.xlu0 %1314
      %1316 = vrot.lane.b32.xlu0 %v1301, 8
      %v1317 = vpop.permute.xlu0 %1316
      %v1318 = vunpack.c.l.b16 %v1138
      %v1319 = vunpack.c.l.b16 %v1141
      %v1320 = vpack.c.b16 %v1319, %v1318
      %1321 = vrot.lane.b32.xlu0 %v1257, 10
      %v1322 = vpop.permute.xlu0 %1321
      %1323 = vrot.lane.b32.xlu0 %v1258, 10
      %v1324 = vpop.permute.xlu0 %1323
      %1325 = vrot.lane.b32.xlu0 %v1259, 10
      %v1326 = vpop.permute.xlu0 %1325
      %1327 = vrot.lane.b32.xlu0 %v1260, 10
      %v1328 = vpop.permute.xlu0 %1327
      %1329 = vrot.lane.b32.xlu0 %v1261, 10
      %v1330 = vpop.permute.xlu0 %1329
      %1331 = vrot.lane.b32.xlu0 %v1262, 10
      %v1332 = vpop.permute.xlu0 %1331
      %1333 = vrot.lane.b32.xlu0 %v1263, 10
      %v1334 = vpop.permute.xlu0 %1333
      %1335 = vrot.lane.b32.xlu0 %v1320, 10
      %v1336 = vpop.permute.xlu0 %1335
      %v1337 = vunpack.c.l.b16 %v827
      %v1338 = vunpack.c.l.b16 %v828
      %v1339 = vpack.c.b16 %v1338, %v1337
      %1340 = vrot.lane.b32.xlu0 %v1194, 12
      %v1341 = vpop.permute.xlu0 %1340
      %1342 = vrot.lane.b32.xlu0 %v1195, 12
      %v1343 = vpop.permute.xlu0 %1342
      %1344 = vrot.lane.b32.xlu0 %v1196, 12
      %v1345 = vpop.permute.xlu0 %1344
      %1346 = vrot.lane.b32.xlu0 %v1197, 12
      %v1347 = vpop.permute.xlu0 %1346
      %1348 = vrot.lane.b32.xlu0 %v1198, 12
      %v1349 = vpop.permute.xlu0 %1348
      %1350 = vrot.lane.b32.xlu0 %v1199, 12
      %v1351 = vpop.permute.xlu0 %1350
      %1352 = vrot.lane.b32.xlu0 %v1282, 12
      %v1353 = vpop.permute.xlu0 %1352
      %1354 = vrot.lane.b32.xlu0 %v1339, 12
      %v1355 = vpop.permute.xlu0 %1354
      %v1356 = vunpack.c.l.b16 %v1155
      %v1357 = vunpack.c.l.b16 %v1165
      %v1358 = vpack.c.b16 %v1357, %v1356
      %1359 = vrot.lane.b32.xlu0 %v1218, 14
      %v1360 = vpop.permute.xlu0 %1359
      %1361 = vrot.lane.b32.xlu0 %v1219, 14
      %v1362 = vpop.permute.xlu0 %1361
      %1363 = vrot.lane.b32.xlu0 %v1220, 14
      %v1364 = vpop.permute.xlu0 %1363
      %1365 = vrot.lane.b32.xlu0 %v1221, 14
      %v1366 = vpop.permute.xlu0 %1365
      %1367 = vrot.lane.b32.xlu0 %v1222, 14
      %v1368 = vpop.permute.xlu0 %1367
      %1369 = vrot.lane.b32.xlu0 %v1223, 14
      %v1370 = vpop.permute.xlu0 %1369
      %1371 = vrot.lane.b32.xlu0 %v1301, 14
      %v1372 = vpop.permute.xlu0 %1371
      %1373 = vrot.lane.b32.xlu0 %v1358, 14
      %v1374 = vpop.permute.xlu0 %1373
      %v1375 = vunpack.c.l.b16 %v1172
      %v1376 = vunpack.c.l.b16 %v1175
      %v1377 = vpack.c.b16 %v1376, %v1375
      %1378 = vrot.lane.b32.xlu0 %v1258, 16
      %v1379 = vpop.permute.xlu0 %1378
      %1380 = vrot.lane.b32.xlu0 %v1259, 16
      %v1381 = vpop.permute.xlu0 %1380
      %1382 = vrot.lane.b32.xlu0 %v1260, 16
      %v1383 = vpop.permute.xlu0 %1382
      %1384 = vrot.lane.b32.xlu0 %v1261, 16
      %v1385 = vpop.permute.xlu0 %1384
      %1386 = vrot.lane.b32.xlu0 %v1262, 16
      %v1387 = vpop.permute.xlu0 %1386
      %1388 = vrot.lane.b32.xlu0 %v1263, 16
      %v1389 = vpop.permute.xlu0 %1388
      %1390 = vrot.lane.b32.xlu0 %v1320, 16
      %v1391 = vpop.permute.xlu0 %1390
      %1392 = vrot.lane.b32.xlu0 %v1377, 16
      %v1393 = vpop.permute.xlu0 %1392
      %vm1394 = vcmask 15360
      %v1397 = vsel %vm1394, %v1192, %v1225
      %v1400 = vsel %vm1394, %v1193, %v1227
      %v1403 = vsel %vm1394, %v1194, %v1229
      %v1406 = vsel %vm1394, %v1195, %v1231
      %v1409 = vsel %vm1394, %v1196, %v1233
      %v1412 = vsel %vm1394, %v1197, %v1235
      %v1415 = vsel %vm1394, %v1198, %v1237
      %v1418 = vsel %vm1394, %v1199, %v1239
      %vm1419 = vcmask 31744
      %v1421 = vsel %vm1419, %v1397, %v1265
      %v1423 = vsel %vm1419, %v1400, %v1267
      %v1425 = vsel %vm1419, %v1403, %v1269
      %v1427 = vsel %vm1419, %v1406, %v1271
      %v1429 = vsel %vm1419, %v1409, %v1273
      %v1431 = vsel %vm1419, %v1412, %v1275
      %v1433 = vsel %vm1419, %v1415, %v1277
      %v1435 = vsel %vm1419, %v1418, %v1279
      %vm1436 = vcmask 48128
      %v1438 = vsel %vm1436, %v1421, %v1284
      %v1440 = vsel %vm1436, %v1423, %v1286
      %v1442 = vsel %vm1436, %v1425, %v1288
      %v1444 = vsel %vm1436, %v1427, %v1290
      %v1446 = vsel %vm1436, %v1429, %v1292
      %v1448 = vsel %vm1436, %v1431, %v1294
      %v1450 = vsel %vm1436, %v1433, %v1296
      %v1452 = vsel %vm1436, %v1435, %v1298
      %vm1453 = vcmask 64512
      %v1455 = vsel %vm1453, %v1438, %v1303
      %v1457 = vsel %vm1453, %v1440, %v1305
      %v1459 = vsel %vm1453, %v1442, %v1307
      %v1461 = vsel %vm1453, %v1444, %v1309
      %v1463 = vsel %vm1453, %v1446, %v1311
      %v1465 = vsel %vm1453, %v1448, %v1313
      %v1467 = vsel %vm1453, %v1450, %v1315
      %v1469 = vsel %vm1453, %v1452, %v1317
      %vm1470 = vcmask 80896
      %v1472 = vsel %vm1470, %v1455, %v1322
      %v1474 = vsel %vm1470, %v1457, %v1324
      %v1476 = vsel %vm1470, %v1459, %v1326
      %v1478 = vsel %vm1470, %v1461, %v1328
      %v1480 = vsel %vm1470, %v1463, %v1330
      %v1482 = vsel %vm1470, %v1465, %v1332
      %v1484 = vsel %vm1470, %v1467, %v1334
      %v1486 = vsel %vm1470, %v1469, %v1336
      %vm1487 = vcmask 97280
      %v1489 = vsel %vm1487, %v1472, %v1341
      %v1491 = vsel %vm1487, %v1474, %v1343
      %v1493 = vsel %vm1487, %v1476, %v1345
      %v1495 = vsel %vm1487, %v1478, %v1347
      %v1497 = vsel %vm1487, %v1480, %v1349
      %v1499 = vsel %vm1487, %v1482, %v1351
      %v1501 = vsel %vm1487, %v1484, %v1353
      %v1503 = vsel %vm1487, %v1486, %v1355
      %vm1504 = vcmask 113664
      %v1506 = vsel %vm1504, %v1489, %v1360
      %v1508 = vsel %vm1504, %v1491, %v1362
      %v1510 = vsel %vm1504, %v1493, %v1364
      %v1512 = vsel %vm1504, %v1495, %v1366
      %v1514 = vsel %vm1504, %v1497, %v1368
      %v1516 = vsel %vm1504, %v1499, %v1370
      %v1518 = vsel %vm1504, %v1501, %v1372
      %v1520 = vsel %vm1504, %v1503, %v1374
      %vm1521 = vcmask 130048
      %v1523 = vsel %vm1521, %v1506, %v1379
      %v1525 = vsel %vm1521, %v1508, %v1381
      %v1527 = vsel %vm1521, %v1510, %v1383
      %v1529 = vsel %vm1521, %v1512, %v1385
      %v1531 = vsel %vm1521, %v1514, %v1387
      %v1533 = vsel %vm1521, %v1516, %v1389
      %v1535 = vsel %vm1521, %v1518, %v1391
      %v1537 = vsel %vm1521, %v1520, %v1393
      %v1538 = vld [vmem:[%s3] sm:$0xf]
      %v1539 = vld [vmem:[%s3 + $0x4] sm:$0xf]
      %v1540 = vld [vmem:[%s3 + $0x8] sm:$0x1]
      %v1541 = vld [vmem:[%s4] sm:$0x1]
      %v1543 = vlaneseq
      %v1544 = vshrl.u32 %v1543, 7
      %v1545 = vsub.s32 0, %v1544
      %v1546 = vrot.slane %v1541, %v1545
      %v1551 = vunpack.c.l.b16 %v1538
      %v1552 = vunpack.c.l.b16 %v1539
      %v1553 = vunpack.c.l.b16 %v1540
      %v1554 = vpack.c.b16 %v1552, %v1551
      %v1555 = vpack.c.b16 %v1553, %v1553
      %vm1557 = vcmask 146432
      %v1558 = vsel %vm1557, %v1523, 0
      %v1560 = vsel %vm1557, %v1525, 0
      %v1562 = vsel %vm1557, %v1527, 0
      %v1564 = vsel %vm1557, %v1529, 0
      %v1566 = vsel %vm1557, %v1531, 0
      %v1568 = vsel %vm1557, %v1533, 0
      %v1570 = vsel %vm1557, %v1535, 0
      %v1572 = vsel %vm1557, %v1537, 0
      %vm1574 = vcmask 1040384
      %v1576 = vsel %vm1574, %v1555, 0
      %1578 = vmatprep.subr.bf16.mxu0 0
      %1579 = vmatpush1.bf16.msra.mxu0 0
      %1580 = vmatprep.subr.bf16.mxu0 0
      %1581 = vmatpush1.bf16.msra.mxu0 0
      %1582 = vmatprep.subr.bf16.mxu0 0
      %1583 = vmatpush1.bf16.msra.mxu0 0
      %1584 = vmatprep.subr.bf16.mxu0 0
      %1585 = vmatpush1.bf16.msra.mxu0 0
      %1586 = vmatprep.subr.bf16.mxu0 0
      %1587 = vmatpush1.bf16.msra.mxu0 0
      %1588 = vmatprep.subr.bf16.mxu0 0
      %1589 = vmatpush1.bf16.msra.mxu0 0
      %1590 = vmatprep.subr.bf16.mxu0 0
      %1591 = vmatpush1.bf16.msra.mxu0 %v1576
      %1592 = vmatprep.subr.bf16.mxu0 0
      %1593 = vmatpush1.bf16.msra.mxu0 %v1554
      %1594 = vmatprep.subr.bf16.mxu0 0
      %1595 = vmatpush2.bf16.msra.mxu0 0
      %1596 = vmatprep.subr.bf16.mxu0 0
      %1597 = vmatpush2.bf16.msra.mxu0 0
      %1598 = vmatprep.subr.bf16.mxu0 0
      %1599 = vmatpush2.bf16.msra.mxu0 0
      %1600 = vmatprep.subr.bf16.mxu0 0
      %1601 = vmatpush2.bf16.msra.mxu0 0
      %1602 = vmatprep.subr.bf16.mxu0 0
      %1603 = vmatpush2.bf16.msra.mxu0 0
      %1604 = vmatprep.subr.bf16.mxu0 0
      %1605 = vmatpush2.bf16.msra.mxu0 0
      %1606 = vmatprep.subr.bf16.mxu0 0
      %1607 = vmatpush2.bf16.msra.mxu0 0
      %1608 = vmatprep.subr.bf16.mxu0 0
      %1609 = vmatpush2.bf16.msra.mxu0 0
      %1610 = vmatprep.mubr.bf16.mxu0 0
      %1611 = vmatmul.mubr.bf16.gmra.mxu0 %v1558
      %v1612 = vpop.f32.mrf.mxu0
      %v1613 = vadd.f32 %v1546, %v1612
      %v1614 = vpop.f32.mrf.mxu0
      %v1615 = vpop.f32.mrf.mxu0
      %v1616 = vadd.f32 %v1546, %v1615
      %v1617 = vpop.f32.mrf.mxu0
      %1618 = vmatprep.mubr.bf16.mxu0 0
      %1619 = vmatmul.mubr.bf16.gmra.mxu0 %v1560
      %v1620 = vpop.f32.mrf.mxu0
      %v1621 = vadd.f32 %v1546, %v1620
      %v1622 = vpop.f32.mrf.mxu0
      %v1623 = vpop.f32.mrf.mxu0
      %v1624 = vadd.f32 %v1546, %v1623
      %v1625 = vpop.f32.mrf.mxu0
      %1626 = vmatprep.mubr.bf16.mxu0 0
      %1627 = vmatmul.mubr.bf16.gmra.mxu0 %v1562
      %v1628 = vpop.f32.mrf.mxu0
      %v1629 = vadd.f32 %v1546, %v1628
      %v1630 = vpop.f32.mrf.mxu0
      %v1631 = vpop.f32.mrf.mxu0
      %v1632 = vadd.f32 %v1546, %v1631
      %v1633 = vpop.f32.mrf.mxu0
      %1634 = vmatprep.mubr.bf16.mxu0 0
      %1635 = vmatmul.mubr.bf16.gmra.mxu0 %v1564
      %v1636 = vpop.f32.mrf.mxu0
      %v1637 = vadd.f32 %v1546, %v1636
      %v1638 = vpop.f32.mrf.mxu0
      %v1639 = vpop.f32.mrf.mxu0
      %v1640 = vadd.f32 %v1546, %v1639
      %v1641 = vpop.f32.mrf.mxu0
      %1642 = vmatprep.mubr.bf16.mxu0 0
      %1643 = vmatmul.mubr.bf16.gmra.mxu0 %v1566
      %v1644 = vpop.f32.mrf.mxu0
      %v1645 = vadd.f32 %v1546, %v1644
      %v1646 = vpop.f32.mrf.mxu0
      %v1647 = vpop.f32.mrf.mxu0
      %v1648 = vadd.f32 %v1546, %v1647
      %v1649 = vpop.f32.mrf.mxu0
      %1650 = vmatprep.mubr.bf16.mxu0 0
      %1651 = vmatmul.mubr.bf16.gmra.mxu0 %v1568
      %v1652 = vpop.f32.mrf.mxu0
      %v1653 = vadd.f32 %v1546, %v1652
      %v1654 = vpop.f32.mrf.mxu0
      %v1655 = vpop.f32.mrf.mxu0
      %v1656 = vadd.f32 %v1546, %v1655
      %v1657 = vpop.f32.mrf.mxu0
      %1658 = vmatprep.mubr.bf16.mxu0 0
      %1659 = vmatmul.mubr.bf16.gmra.mxu0 %v1570
      %v1660 = vpop.f32.mrf.mxu0
      %v1661 = vadd.f32 %v1546, %v1660
      %v1662 = vpop.f32.mrf.mxu0
      %v1663 = vpop.f32.mrf.mxu0
      %v1664 = vadd.f32 %v1546, %v1663
      %v1665 = vpop.f32.mrf.mxu0
      %1666 = vmatprep.mubr.bf16.mxu0 0
      %1667 = vmatmul.mubr.bf16.gmra.mxu0 %v1572
      %v1668 = vpop.f32.mrf.mxu0
      %v1669 = vadd.f32 %v1546, %v1668
      %v1670 = vpop.f32.mrf.mxu0
      %v1671 = vpop.f32.mrf.mxu0
      %v1672 = vadd.f32 %v1546, %v1671
      %v1673 = vpop.f32.mrf.mxu0
      %1674 = vdwg.mxu0
      %v1675 = vsub.f32 0.0, %v1613
      %v1676 = vsub.f32 0.0, %v1616
      %v1677 = vsub.f32 0.0, %v1621
      %v1678 = vsub.f32 0.0, %v1624
      %v1679 = vsub.f32 0.0, %v1629
      %v1680 = vsub.f32 0.0, %v1632
      %v1681 = vsub.f32 0.0, %v1637
      %v1682 = vsub.f32 0.0, %v1640
      %v1683 = vsub.f32 0.0, %v1645
      %v1684 = vsub.f32 0.0, %v1648
      %v1685 = vsub.f32 0.0, %v1653
      %v1686 = vsub.f32 0.0, %v1656
      %v1687 = vsub.f32 0.0, %v1661
      %v1688 = vsub.f32 0.0, %v1664
      %v1689 = vsub.f32 0.0, %v1669
      %v1690 = vsub.f32 0.0, %v1672
      %v1691 = vmul.f32 %v1675, 1.442695
      %v1692 = vpow.pop %v1691
      %v1693 = vmul.f32 %v1676, 1.442695
      %v1694 = vpow.pop %v1693
      %v1695 = vmul.f32 %v1677, 1.442695
      %v1696 = vpow.pop %v1695
      %v1697 = vmul.f32 %v1678, 1.442695
      %v1698 = vpow.pop %v1697
      %v1699 = vmul.f32 %v1679, 1.442695
      %v1700 = vpow.pop %v1699
      %v1701 = vmul.f32 %v1680, 1.442695
      %v1702 = vpow.pop %v1701
      %v1703 = vmul.f32 %v1681, 1.442695
      %v1704 = vpow.pop %v1703
      %v1705 = vmul.f32 %v1682, 1.442695
      %v1706 = vpow.pop %v1705
      %v1707 = vmul.f32 %v1683, 1.442695
      %v1708 = vpow.pop %v1707
      %v1709 = vmul.f32 %v1684, 1.442695
      %v1710 = vpow.pop %v1709
      %v1711 = vmul.f32 %v1685, 1.442695
      %v1712 = vpow.pop %v1711
      %v1713 = vmul.f32 %v1686, 1.442695
      %v1714 = vpow.pop %v1713
      %v1715 = vmul.f32 %v1687, 1.442695
      %v1716 = vpow.pop %v1715
      %v1717 = vmul.f32 %v1688, 1.442695
      %v1718 = vpow.pop %v1717
      %v1719 = vmul.f32 %v1689, 1.442695
      %v1720 = vpow.pop %v1719
      %v1721 = vmul.f32 %v1690, 1.442695
      %v1722 = vpow.pop %v1721
      %v1723 = vadd.f32 %v1692, 1.0
      %v1724 = vadd.f32 %v1694, 1.0
      %v1725 = vadd.f32 %v1696, 1.0
      %v1726 = vadd.f32 %v1698, 1.0
      %v1727 = vadd.f32 %v1700, 1.0
      %v1728 = vadd.f32 %v1702, 1.0
      %v1729 = vadd.f32 %v1704, 1.0
      %v1730 = vadd.f32 %v1706, 1.0
      %v1731 = vadd.f32 %v1708, 1.0
      %v1732 = vadd.f32 %v1710, 1.0
      %v1733 = vadd.f32 %v1712, 1.0
      %v1734 = vadd.f32 %v1714, 1.0
      %v1735 = vadd.f32 %v1716, 1.0
      %v1736 = vadd.f32 %v1718, 1.0
      %v1737 = vadd.f32 %v1720, 1.0
      %v1738 = vadd.f32 %v1722, 1.0
      %v1739 = vrcp.pop %v1723
      %v1740 = vrcp.pop %v1724
      %v1741 = vrcp.pop %v1725
      %v1742 = vrcp.pop %v1726
      %v1743 = vrcp.pop %v1727
      %v1744 = vrcp.pop %v1728
      %v1745 = vrcp.pop %v1729
      %v1746 = vrcp.pop %v1730
      %v1747 = vrcp.pop %v1731
      %v1748 = vrcp.pop %v1732
      %v1749 = vrcp.pop %v1733
      %v1750 = vrcp.pop %v1734
      %v1751 = vrcp.pop %v1735
      %v1752 = vrcp.pop %v1736
      %v1753 = vrcp.pop %v1737
      %v1754 = vrcp.pop %v1738
      %v1755 = vmul.f32 %v1613, %v1739
      %v1756 = vmul.f32 %v1616, %v1740
      %v1757 = vmul.f32 %v1621, %v1741
      %v1758 = vmul.f32 %v1624, %v1742
      %v1759 = vmul.f32 %v1629, %v1743
      %v1760 = vmul.f32 %v1632, %v1744
      %v1761 = vmul.f32 %v1637, %v1745
      %v1762 = vmul.f32 %v1640, %v1746
      %v1763 = vmul.f32 %v1645, %v1747
      %v1764 = vmul.f32 %v1648, %v1748
      %v1765 = vmul.f32 %v1653, %v1749
      %v1766 = vmul.f32 %v1656, %v1750
      %v1767 = vmul.f32 %v1661, %v1751
      %v1768 = vmul.f32 %v1664, %v1752
      %v1769 = vmul.f32 %v1669, %v1753
      %v1770 = vmul.f32 %v1672, %v1754
      %v1771 = vld [vmem:[%s446] sm:$0xf]
      %v1772 = vld [vmem:[%s446 + $0x4] sm:$0xf]
      %v1773 = vld [vmem:[%s446 + $0x8] sm:$0xf]
      %v1774 = vld [vmem:[%s446 + $0xc] sm:$0xf]
      %v1775 = vld [vmem:[%s446 + $0x10] sm:$0xf]
      %v1776 = vld [vmem:[%s446 + $0x14] sm:$0xf]
      %v1777 = vld [vmem:[%s446 + $0x18] sm:$0xf]
      %v1778 = vld [vmem:[%s446 + $0x1c] sm:$0xf]
      %v1779 = vld [vmem:[%s446 + $0x20] sm:$0xf]
      %v1780 = vld [vmem:[%s446 + $0x24] sm:$0xf]
      %v1781 = vld [vmem:[%s446 + $0x28] sm:$0xf]
      %v1782 = vld [vmem:[%s446 + $0x2c] sm:$0xf]
      %v1783 = vld [vmem:[%s446 + $0x30] sm:$0xf]
      %v1784 = vld [vmem:[%s446 + $0x34] sm:$0xf]
      %v1785 = vld [vmem:[%s446 + $0x38] sm:$0xf]
      %v1786 = vld [vmem:[%s446 + $0x3c] sm:$0xf]
      %v1787 = vunpack.c.l.bf16 %v1771
      %v1788 = vunpack.c.l.bf16 %v1772
      %v1789 = vunpack.c.l.bf16 %v1773
      %v1790 = vunpack.c.l.bf16 %v1774
      %v1791 = vunpack.c.l.bf16 %v1775
      %v1792 = vunpack.c.l.bf16 %v1776
      %v1793 = vunpack.c.l.bf16 %v1777
      %v1794 = vunpack.c.l.bf16 %v1778
      %v1795 = vunpack.c.l.bf16 %v1779
      %v1796 = vunpack.c.l.bf16 %v1780
      %v1797 = vunpack.c.l.bf16 %v1781
      %v1798 = vunpack.c.l.bf16 %v1782
      %v1799 = vunpack.c.l.bf16 %v1783
      %v1800 = vunpack.c.l.bf16 %v1784
      %v1801 = vunpack.c.l.bf16 %v1785
      %v1802 = vunpack.c.l.bf16 %v1786
      %v1803 = vadd.f32 %v1755, %v1787
      %v1804 = vadd.f32 %v1756, %v1788
      %v1805 = vadd.f32 %v1757, %v1789
      %v1806 = vadd.f32 %v1758, %v1790
      %v1807 = vadd.f32 %v1759, %v1791
      %v1808 = vadd.f32 %v1760, %v1792
      %v1809 = vadd.f32 %v1761, %v1793
      %v1810 = vadd.f32 %v1762, %v1794
      %v1811 = vadd.f32 %v1763, %v1795
      %v1812 = vadd.f32 %v1764, %v1796
      %v1813 = vadd.f32 %v1765, %v1797
      %v1814 = vadd.f32 %v1766, %v1798
      %v1815 = vadd.f32 %v1767, %v1799
      %v1816 = vadd.f32 %v1768, %v1800
      %v1817 = vadd.f32 %v1769, %v1801
      %v1818 = vadd.f32 %v1770, %v1802
      %v1819 = vpack.c.bf16 %v1804, %v1803
      %v1820 = vpack.c.bf16 %v1806, %v1805
      %v1821 = vpack.c.bf16 %v1808, %v1807
      %v1822 = vpack.c.bf16 %v1810, %v1809
      %v1823 = vpack.c.bf16 %v1812, %v1811
      %v1824 = vpack.c.bf16 %v1814, %v1813
      %v1825 = vpack.c.bf16 %v1816, %v1815
      %v1826 = vpack.c.bf16 %v1818, %v1817
      %v1835 = vunpack.c.l.b16 %v1819
      %v1836 = vunpack.c.h.b16 %v1819
      %v1837 = vunpack.c.l.b16 %v1820
      %v1838 = vunpack.c.h.b16 %v1820
      %v1839 = vunpack.c.l.b16 %v1821
      %v1840 = vunpack.c.h.b16 %v1821
      %v1841 = vunpack.c.l.b16 %v1822
      %v1842 = vunpack.c.h.b16 %v1822
      %v1843 = vunpack.c.l.b16 %v1823
      %v1844 = vunpack.c.h.b16 %v1823
      %v1845 = vunpack.c.l.b16 %v1824
      %v1846 = vunpack.c.h.b16 %v1824
      %v1847 = vunpack.c.l.b16 %v1825
      %v1848 = vunpack.c.h.b16 %v1825
      %v1849 = vunpack.c.l.b16 %v1826
      %v1850 = vunpack.c.h.b16 %v1826
      %v1851 = vpack.c.b16 %v1835, %v1835
      %v1852 = vpack.c.b16 %v1836, %v1836
      %v1853 = vpack.c.b16 %v1837, %v1837
      %v1854 = vpack.c.b16 %v1838, %v1838
      %v1855 = vpack.c.b16 %v1839, %v1839
      %v1856 = vpack.c.b16 %v1840, %v1840
      %v1857 = vpack.c.b16 %v1841, %v1841
      %v1858 = vpack.c.b16 %v1842, %v1842
      %v1859 = vpack.c.b16 %v1843, %v1843
      %v1860 = vpack.c.b16 %v1844, %v1844
      %v1861 = vpack.c.b16 %v1845, %v1845
      %v1862 = vpack.c.b16 %v1846, %v1846
      %v1863 = vpack.c.b16 %v1847, %v1847
      %v1864 = vpack.c.b16 %v1848, %v1848
      %v1865 = vpack.c.b16 %v1849, %v1849
      %v1866 = vpack.c.b16 %v1850, %v1850
      %1883 = vst.msk [vmem:[%s457] sm:$0xf] %vm460, %v1851
      %1884 = vst.msk [vmem:[%s457 + $0x4] sm:$0xf] %vm460, %v1852
      %1885 = vst.msk [vmem:[%s457 + $0x8] sm:$0xf] %vm460, %v1853
      %1886 = vst.msk [vmem:[%s457 + $0xc] sm:$0xf] %vm460, %v1854
      %1887 = vst.msk [vmem:[%s457 + $0x10] sm:$0xf] %vm460, %v1855
      %1888 = vst.msk [vmem:[%s457 + $0x14] sm:$0xf] %vm460, %v1856
      %1889 = vst.msk [vmem:[%s457 + $0x18] sm:$0xf] %vm460, %v1857
      %1890 = vst.msk [vmem:[%s457 + $0x1c] sm:$0xf] %vm460, %v1858
      %1891 = vst.msk [vmem:[%s457 + $0x20] sm:$0xf] %vm460, %v1859
      %1892 = vst.msk [vmem:[%s457 + $0x24] sm:$0xf] %vm460, %v1860
      %1893 = vst.msk [vmem:[%s457 + $0x28] sm:$0xf] %vm460, %v1861
      %1894 = vst.msk [vmem:[%s457 + $0x2c] sm:$0xf] %vm460, %v1862
      %1895 = vst.msk [vmem:[%s457 + $0x30] sm:$0xf] %vm460, %v1863
      %1896 = vst.msk [vmem:[%s457 + $0x34] sm:$0xf] %vm460, %v1864
      %1897 = vst.msk [vmem:[%s457 + $0x38] sm:$0xf] %vm460, %v1865
      %1898 = vst.msk [vmem:[%s457 + $0x3c] sm:$0xf] %vm460, %v1866
      %s1899 = smul.u32 8, %s22
      %p1900 = scmp.lt.s32.totalorder %s21, 1
      %s1901 = scalar_select %p1900, %s21, 1
      %p1902 = scmp.lt.s32.totalorder %s1899, 15
      %s1903 = scalar_select %p1902, %s1899, 15
      %s1904 = smul.addr %s1903, 2
      %s1905 = smul.addr %s1901, 32
      %s1906 = sadd.s32 %s1904, %s1905
      %s1907 = smul.addr %s1906, 4
      %s1908 = scalar_lea.vmem %s6, %s1907
      // Predicated region
      $region53: #{c3_forward.8} parent=43 // pred_check
        %p1909 = pneg %p219
      $region54: #{c3_forward.8} parent=43 // pred_check_branch
        %1911 = sbr.rel (%p1909) target = $region56
      $region55: #{c3_forward.8} parent=43 // pred_region
        %s1912 = smul.u32 8, %s22
      $region56: #{c3_forward.8} parent=43 // pred_fallthru
        _
    $region44: #{c3_forward.8} parent=5 // pred_fallthru
      _
    %p1913 = scmp.le.s32.totalorder 2, %s12
    // Predicated region
    $region57: #{c3_forward.8} parent=5 // pred_check
      %p1914 = pneg %p1913
    $region58: #{c3_forward.8} parent=5 // pred_check_branch
      %1916 = sbr.rel (%p1914) target = $region60
    $region59: #{c3_forward.8} parent=5 // pred_region
      %s1917 = ssub.s32 %s12, 2
      // Predicated region
      $region61: #{c3_forward.8} parent=59 // pred_check
        %p1918 = pneg %p225
      $region62: #{c3_forward.8} parent=59 // pred_check_branch
        %1920 = sbr.rel (%p1918) target = $region64
      $region63: #{c3_forward.8} parent=59 // pred_region
        %s1921 = smul.u32 8, %s24
        %p1922 = scmp.lt.s32.totalorder %s23, 1
        %s1923 = scalar_select %p1922, %s23, 1
        %p1924 = scmp.lt.s32.totalorder %s1921, 15
        %s1925 = scalar_select %p1924, %s1921, 15
        %s1926 = smul.addr %s1925, 2
        %s1927 = smul.addr %s1923, 32
        %s1928 = sadd.s32 %s1926, %s1927
        %s1929 = smul.addr %s1928, 4
        %s1930 = scalar_lea.vmem %s6, %s1929
      $region64: #{c3_forward.8} parent=59 // pred_fallthru
        _
    $region60: #{c3_forward.8} parent=5 // pred_fallthru
      _
  $region6: #{c3_forward.8} parent=0 // loop_footer
    %s16 = sadd.s32 1, %s12
  $region7: #{c3_forward.8} parent=0 // loop_footer_branch
    %11 = sbr.rel target = $region3
  $region8: #{c3_forward.8} parent=0 // loop_exit
    _

</llo_original>
